<compile_context>
chip_gen: v7x
topology: tpu7x:2x2x1
jax: 0.10.0
libtpu: 0.0.40
codegen_flags: <defaults>
</compile_context>

<pallas_src>
import functools

import jax
import jax.numpy as jnp
from jax.experimental import pallas as pl
from jax.experimental.pallas import tpu as pltpu


def _round_up(x, m):
    return (x + m - 1) // m * m


def _make_conv_bn_silu_kernel(kh, kw, stride, dilation, oh, ow, ic, ocp, out_dtype):
    """Build per-image kernel: fused sum-over-taps matmul + BN affine + SiLU."""

    def kernel(x_ref, w_ref, scale_ref, bias_ref, o_ref):
        # x_ref:     (1, Hp, Wp, IC)   padded image (bf16), fetched once per batch
        # w_ref:     (KH*KW, IC, OCp)  per-tap weights (bf16), resident across grid
        # scale_ref: (1, OCp)          folded BN scale (f32)
        # bias_ref:  (1, OCp)          folded conv-bias + BN bias (f32)
        # o_ref:     (1, OH, OW, OCp)  lane-dense output block
        acc = jnp.zeros((oh * ow, ocp), jnp.float32)
        for i in range(kh):                 # static unroll over taps: im2col fused
            for j in range(kw):
                h0 = i * dilation
                w0 = j * dilation
                if stride == 1:
                    xt = x_ref[0, h0:h0 + oh, w0:w0 + ow, :]
                else:
                    xt = x_ref[0, pl.ds(h0, oh, stride), pl.ds(w0, ow, stride), :]
                xt = xt.reshape(oh * ow, ic)          # lane dim kept -> cheap reshape
                acc = acc + jnp.dot(xt, w_ref[i * kw + j],
                                    preferred_element_type=jnp.float32)
        y = acc * scale_ref[...] + bias_ref[...]      # fused BatchNorm (eval) affine
        y = y * jax.nn.sigmoid(y)                     # SiLU in f32
        o_ref[...] = y.reshape(1, oh, ow, ocp).astype(out_dtype)

    return kernel


@functools.partial(jax.jit,
                   static_argnames=("stride", "dilation", "padding", "use_bf16"))
def conv_module_forward(x_nchw, weight, conv_bias, gamma, beta, run_mean, run_var,
                        *, stride=1, dilation=1, padding=0, eps=1e-3, use_bf16=True):
    """ConvModule.forward: SiLU(BatchNorm2d(Conv2d(x))), BN in eval mode."""
    oc, ic, kh, kw = weight.shape
    n, _, h, w = x_nchw.shape
    oh = (h + 2 * padding - dilation * (kh - 1) - 1) // stride + 1
    ow = (w + 2 * padding - dilation * (kw - 1) - 1) // stride + 1

    # ---- glue (plain JAX): layout + zero-pad + parameter folding ----
    x_nhwc = jnp.transpose(x_nchw, (0, 2, 3, 1))      # drop if producer already gives NHWC
    x_pad = jnp.pad(x_nhwc, ((0, 0), (padding, padding), (padding, padding), (0, 0)))
    hp, wp = x_pad.shape[1], x_pad.shape[2]

    ocp = _round_up(oc, 128)                          # lane-dense output channels

    # (OC, IC, KH, KW) -> (KH*KW, IC, OCp)
    w_taps = jnp.transpose(weight, (2, 3, 1, 0)).reshape(kh * kw, ic, oc)
    w_taps = jnp.pad(w_taps, ((0, 0), (0, 0), (0, ocp - oc)))

    # fold conv bias + BatchNorm(eval, eps=1e-3 per module spec) into one affine
    inv_std = 1.0 / jnp.sqrt(run_var + eps)
    scale = gamma * inv_std
    bias = (conv_bias - run_mean) * gamma * inv_std + beta
    scale = jnp.pad(scale, (0, ocp - oc)).reshape(1, ocp).astype(jnp.float32)
    bias = jnp.pad(bias, (0, ocp - oc)).reshape(1, ocp).astype(jnp.float32)

    mxu_dtype = jnp.bfloat16 if use_bf16 else x_nchw.dtype
    x_pad = x_pad.astype(mxu_dtype)
    w_taps = w_taps.astype(mxu_dtype)

    kernel = _make_conv_bn_silu_kernel(kh, kw, stride, dilation, oh, ow, ic, ocp,
                                       x_nchw.dtype)

    out = pl.pallas_call(
        kernel,
        out_shape=jax.ShapeDtypeStruct((n, oh, ow, ocp), x_nchw.dtype),
        grid_spec=pltpu.PrefetchScalarGridSpec(
            num_scalar_prefetch=0,
            grid=(n,),
            in_specs=[
                # one padded image per grid step; DMA'd exactly once (fused im2col)
                pl.BlockSpec((1, hp, wp, ic), lambda b: (b, 0, 0, 0)),
                # weights / BN params resident across the whole grid (constant index)
                pl.BlockSpec((kh * kw, ic, ocp), lambda b: (0, 0, 0)),
                pl.BlockSpec((1, ocp), lambda b: (0, 0)),
                pl.BlockSpec((1, ocp), lambda b: (0, 0)),
            ],
            out_specs=pl.BlockSpec((1, oh, ow, ocp), lambda b: (b, 0, 0, 0)),
        ),
        compiler_params=pltpu.CompilerParams(
            dimension_semantics=("parallel",),        # batch axis shards across TCs (v7x)
            vmem_limit_bytes=32 * 1024 * 1024,        # safe on v5e/v6e/v7x; blocks are small
        ),
    )(x_pad, w_taps, scale, bias)

    out = out[..., :oc]                               # drop OC lane padding
    return jnp.transpose(out, (0, 3, 1, 2))           # NHWC -> NCHW (drop if consumer is NHWC)


def _reference(x_nchw, weight, conv_bias, gamma, beta, run_mean, run_var,
               *, stride, dilation, padding, eps=1e-3):
    y = jax.lax.conv_general_dilated(
        x_nchw, weight,
        window_strides=(stride, stride),
        padding=[(padding, padding), (padding, padding)],
        rhs_dilation=(dilation, dilation),
        dimension_numbers=("NCHW", "OIHW", "NCHW"))
    y = y + conv_bias.reshape(1, -1, 1, 1)
    y = (y - run_mean.reshape(1, -1, 1, 1)) / jnp.sqrt(run_var.reshape(1, -1, 1, 1) + eps)
    y = y * gamma.reshape(1, -1, 1, 1) + beta.reshape(1, -1, 1, 1)
    return y * jax.nn.sigmoid(y)


if __name__ == "__main__":
    # batch=2, in_channels=4, out_channels=8, spatial=16, kernel=3, stride=1,
    # padding=1, dilation=1  (arc=False)
    N, IC, H, W = 2, 4, 16, 16
    OC, KH, KW = 8, 3, 3
    stride, dilation, padding = 1, 1, 1

    key = jax.random.PRNGKey(0)
    kx, kw_, kb, kg, kbeta, km, kv = jax.random.split(key, 7)
    x = jax.random.normal(kx, (N, IC, H, W), jnp.float32)
    weight = jax.random.normal(kw_, (OC, IC, KH, KW), jnp.float32) * 0.1
    conv_bias = jax.random.normal(kb, (OC,), jnp.float32) * 0.1
    gamma = 1.0 + 0.1 * jax.random.normal(kg, (OC,), jnp.float32)
    beta = 0.1 * jax.random.normal(kbeta, (OC,), jnp.float32)
    run_mean = 0.1 * jax.random.normal(km, (OC,), jnp.float32)
    run_var = jnp.abs(1.0 + 0.1 * jax.random.normal(kv, (OC,), jnp.float32))

    ref = _reference(x, weight, conv_bias, gamma, beta, run_mean, run_var,
                     stride=stride, dilation=dilation, padding=padding)

    # f32 path: validates the fused conv + BN + SiLU math tightly
    out_f32 = conv_module_forward(x, weight, conv_bias, gamma, beta, run_mean, run_var,
                                  stride=stride, dilation=dilation, padding=padding,
                                  use_bf16=False)
    out_f32 = jax.block_until_ready(out_f32)
    assert out_f32.shape == (N, OC, H, W), out_f32.shape
    assert jnp.allclose(out_f32, ref, rtol=1e-3, atol=1e-3), \
        float(jnp.max(jnp.abs(out_f32 - ref)))

    # default (optimized) path: bf16 MXU inputs, f32 accumulate / BN / SiLU
    out = conv_module_forward(x, weight, conv_bias, gamma, beta, run_mean, run_var,
                              stride=stride, dilation=dilation, padding=padding)
    out = jax.block_until_ready(out)
    assert out.shape == (N, OC, H, W), out.shape
    assert jnp.allclose(out, ref, rtol=3e-2, atol=3e-2), \
        float(jnp.max(jnp.abs(out - ref)))

    print("KERNEL_OK")
</pallas_src>

<mosaic_0001>
module attributes {stable_mosaic.version = 11 : i64} {
  func.func @kernel(%arg0: i32, %arg1: memref<1x18x18x4xf32, #tpu.memory_space<vmem>>, %arg2: memref<9x4x128xf32, #tpu.memory_space<vmem>>, %arg3: memref<1x128xf32, #tpu.memory_space<vmem>>, %arg4: memref<1x128xf32, #tpu.memory_space<vmem>>, %arg5: memref<1x16x16x128xf32, #tpu.memory_space<vmem>>) attributes {dimension_semantics = [#tpu.dimension_semantics<parallel>], iteration_bounds = array<i64: 2>, scalar_prefetch = 0 : i64, scratch_operands = 0 : i64, tpu.core_type = #tpu.core_type<tc>, window_params = [{transform_indices = @transform_0, window_bounds = array<i64: 1, 18, 18, 4>}, {pipeline_mode = #tpu.pipeline_mode<synchronous>, transform_indices = @transform_1, window_bounds = array<i64: 9, 4, 128>}, {pipeline_mode = #tpu.pipeline_mode<synchronous>, transform_indices = @transform_2, window_bounds = array<i64: 1, 128>}, {pipeline_mode = #tpu.pipeline_mode<synchronous>, transform_indices = @transform_3, window_bounds = array<i64: 1, 128>}, {transform_indices = @transform_4, window_bounds = array<i64: 1, 16, 16, 128>}]} {
    %cst = arith.constant 0.000000e+00 : f32
    %0 = vector.broadcast %cst : f32 to vector<256x128xf32>
    %c0 = arith.constant 0 : index
    %c0_0 = arith.constant 0 : index
    %c0_1 = arith.constant 0 : index
    %c0_2 = arith.constant 0 : index
    %1 = vector.load %arg1[%c0, %c0_0, %c0_1, %c0_2] : memref<1x18x18x4xf32, #tpu.memory_space<vmem>>, vector<1x16x16x4xf32>
    %2 = vector.shape_cast %1 : vector<1x16x16x4xf32> to vector<16x16x4xf32>
    %3 = vector.shape_cast %2 : vector<16x16x4xf32> to vector<256x4xf32>
    %c0_3 = arith.constant 0 : index
    %c0_4 = arith.constant 0 : index
    %c0_5 = arith.constant 0 : index
    %4 = vector.load %arg2[%c0_3, %c0_4, %c0_5] : memref<9x4x128xf32, #tpu.memory_space<vmem>>, vector<1x4x128xf32>
    %5 = vector.shape_cast %4 : vector<1x4x128xf32> to vector<4x128xf32>
    %cst_6 = arith.constant dense<0.000000e+00> : vector<256x128xf32>
    %6 = tpu.matmul %3, %5, %cst_6 {dimension_numbers = #tpu.dot_dimension_numbers<[1], [0], [0], [1], [0, 0, 1, 1], [], []>} : vector<256x4xf32>, vector<4x128xf32>, vector<256x128xf32> -> vector<256x128xf32>
    %7 = arith.addf %0, %6 : vector<256x128xf32>
    %c0_7 = arith.constant 0 : index
    %c0_8 = arith.constant 0 : index
    %c1 = arith.constant 1 : index
    %c0_9 = arith.constant 0 : index
    %8 = vector.load %arg1[%c0_7, %c0_8, %c1, %c0_9] : memref<1x18x18x4xf32, #tpu.memory_space<vmem>>, vector<1x16x16x4xf32>
    %9 = vector.shape_cast %8 : vector<1x16x16x4xf32> to vector<16x16x4xf32>
    %10 = vector.shape_cast %9 : vector<16x16x4xf32> to vector<256x4xf32>
    %c1_10 = arith.constant 1 : index
    %c0_11 = arith.constant 0 : index
    %c0_12 = arith.constant 0 : index
    %11 = vector.load %arg2[%c1_10, %c0_11, %c0_12] : memref<9x4x128xf32, #tpu.memory_space<vmem>>, vector<1x4x128xf32>
    %12 = vector.shape_cast %11 : vector<1x4x128xf32> to vector<4x128xf32>
    %cst_13 = arith.constant dense<0.000000e+00> : vector<256x128xf32>
    %13 = tpu.matmul %10, %12, %cst_13 {dimension_numbers = #tpu.dot_dimension_numbers<[1], [0], [0], [1], [0, 0, 1, 1], [], []>} : vector<256x4xf32>, vector<4x128xf32>, vector<256x128xf32> -> vector<256x128xf32>
    %14 = arith.addf %7, %13 : vector<256x128xf32>
    %c0_14 = arith.constant 0 : index
    %c0_15 = arith.constant 0 : index
    %c2 = arith.constant 2 : index
    %c0_16 = arith.constant 0 : index
    %15 = vector.load %arg1[%c0_14, %c0_15, %c2, %c0_16] : memref<1x18x18x4xf32, #tpu.memory_space<vmem>>, vector<1x16x16x4xf32>
    %16 = vector.shape_cast %15 : vector<1x16x16x4xf32> to vector<16x16x4xf32>
    %17 = vector.shape_cast %16 : vector<16x16x4xf32> to vector<256x4xf32>
    %c2_17 = arith.constant 2 : index
    %c0_18 = arith.constant 0 : index
    %c0_19 = arith.constant 0 : index
    %18 = vector.load %arg2[%c2_17, %c0_18, %c0_19] : memref<9x4x128xf32, #tpu.memory_space<vmem>>, vector<1x4x128xf32>
    %19 = vector.shape_cast %18 : vector<1x4x128xf32> to vector<4x128xf32>
    %cst_20 = arith.constant dense<0.000000e+00> : vector<256x128xf32>
    %20 = tpu.matmul %17, %19, %cst_20 {dimension_numbers = #tpu.dot_dimension_numbers<[1], [0], [0], [1], [0, 0, 1, 1], [], []>} : vector<256x4xf32>, vector<4x128xf32>, vector<256x128xf32> -> vector<256x128xf32>
    %21 = arith.addf %14, %20 : vector<256x128xf32>
    %c0_21 = arith.constant 0 : index
    %c1_22 = arith.constant 1 : index
    %c0_23 = arith.constant 0 : index
    %c0_24 = arith.constant 0 : index
    %22 = vector.load %arg1[%c0_21, %c1_22, %c0_23, %c0_24] : memref<1x18x18x4xf32, #tpu.memory_space<vmem>>, vector<1x16x16x4xf32>
    %23 = vector.shape_cast %22 : vector<1x16x16x4xf32> to vector<16x16x4xf32>
    %24 = vector.shape_cast %23 : vector<16x16x4xf32> to vector<256x4xf32>
    %c3 = arith.constant 3 : index
    %c0_25 = arith.constant 0 : index
    %c0_26 = arith.constant 0 : index
    %25 = vector.load %arg2[%c3, %c0_25, %c0_26] : memref<9x4x128xf32, #tpu.memory_space<vmem>>, vector<1x4x128xf32>
    %26 = vector.shape_cast %25 : vector<1x4x128xf32> to vector<4x128xf32>
    %cst_27 = arith.constant dense<0.000000e+00> : vector<256x128xf32>
    %27 = tpu.matmul %24, %26, %cst_27 {dimension_numbers = #tpu.dot_dimension_numbers<[1], [0], [0], [1], [0, 0, 1, 1], [], []>} : vector<256x4xf32>, vector<4x128xf32>, vector<256x128xf32> -> vector<256x128xf32>
    %28 = arith.addf %21, %27 : vector<256x128xf32>
    %c0_28 = arith.constant 0 : index
    %c1_29 = arith.constant 1 : index
    %c1_30 = arith.constant 1 : index
    %c0_31 = arith.constant 0 : index
    %29 = vector.load %arg1[%c0_28, %c1_29, %c1_30, %c0_31] : memref<1x18x18x4xf32, #tpu.memory_space<vmem>>, vector<1x16x16x4xf32>
    %30 = vector.shape_cast %29 : vector<1x16x16x4xf32> to vector<16x16x4xf32>
    %31 = vector.shape_cast %30 : vector<16x16x4xf32> to vector<256x4xf32>
    %c4 = arith.constant 4 : index
    %c0_32 = arith.constant 0 : index
    %c0_33 = arith.constant 0 : index
    %32 = vector.load %arg2[%c4, %c0_32, %c0_33] : memref<9x4x128xf32, #tpu.memory_space<vmem>>, vector<1x4x128xf32>
    %33 = vector.shape_cast %32 : vector<1x4x128xf32> to vector<4x128xf32>
    %cst_34 = arith.constant dense<0.000000e+00> : vector<256x128xf32>
    %34 = tpu.matmul %31, %33, %cst_34 {dimension_numbers = #tpu.dot_dimension_numbers<[1], [0], [0], [1], [0, 0, 1, 1], [], []>} : vector<256x4xf32>, vector<4x128xf32>, vector<256x128xf32> -> vector<256x128xf32>
    %35 = arith.addf %28, %34 : vector<256x128xf32>
    %c0_35 = arith.constant 0 : index
    %c1_36 = arith.constant 1 : index
    %c2_37 = arith.constant 2 : index
    %c0_38 = arith.constant 0 : index
    %36 = vector.load %arg1[%c0_35, %c1_36, %c2_37, %c0_38] : memref<1x18x18x4xf32, #tpu.memory_space<vmem>>, vector<1x16x16x4xf32>
    %37 = vector.shape_cast %36 : vector<1x16x16x4xf32> to vector<16x16x4xf32>
    %38 = vector.shape_cast %37 : vector<16x16x4xf32> to vector<256x4xf32>
    %c5 = arith.constant 5 : index
    %c0_39 = arith.constant 0 : index
    %c0_40 = arith.constant 0 : index
    %39 = vector.load %arg2[%c5, %c0_39, %c0_40] : memref<9x4x128xf32, #tpu.memory_space<vmem>>, vector<1x4x128xf32>
    %40 = vector.shape_cast %39 : vector<1x4x128xf32> to vector<4x128xf32>
    %cst_41 = arith.constant dense<0.000000e+00> : vector<256x128xf32>
    %41 = tpu.matmul %38, %40, %cst_41 {dimension_numbers = #tpu.dot_dimension_numbers<[1], [0], [0], [1], [0, 0, 1, 1], [], []>} : vector<256x4xf32>, vector<4x128xf32>, vector<256x128xf32> -> vector<256x128xf32>
    %42 = arith.addf %35, %41 : vector<256x128xf32>
    %c0_42 = arith.constant 0 : index
    %c2_43 = arith.constant 2 : index
    %c0_44 = arith.constant 0 : index
    %c0_45 = arith.constant 0 : index
    %43 = vector.load %arg1[%c0_42, %c2_43, %c0_44, %c0_45] : memref<1x18x18x4xf32, #tpu.memory_space<vmem>>, vector<1x16x16x4xf32>
    %44 = vector.shape_cast %43 : vector<1x16x16x4xf32> to vector<16x16x4xf32>
    %45 = vector.shape_cast %44 : vector<16x16x4xf32> to vector<256x4xf32>
    %c6 = arith.constant 6 : index
    %c0_46 = arith.constant 0 : index
    %c0_47 = arith.constant 0 : index
    %46 = vector.load %arg2[%c6, %c0_46, %c0_47] : memref<9x4x128xf32, #tpu.memory_space<vmem>>, vector<1x4x128xf32>
    %47 = vector.shape_cast %46 : vector<1x4x128xf32> to vector<4x128xf32>
    %cst_48 = arith.constant dense<0.000000e+00> : vector<256x128xf32>
    %48 = tpu.matmul %45, %47, %cst_48 {dimension_numbers = #tpu.dot_dimension_numbers<[1], [0], [0], [1], [0, 0, 1, 1], [], []>} : vector<256x4xf32>, vector<4x128xf32>, vector<256x128xf32> -> vector<256x128xf32>
    %49 = arith.addf %42, %48 : vector<256x128xf32>
    %c0_49 = arith.constant 0 : index
    %c2_50 = arith.constant 2 : index
    %c1_51 = arith.constant 1 : index
    %c0_52 = arith.constant 0 : index
    %50 = vector.load %arg1[%c0_49, %c2_50, %c1_51, %c0_52] : memref<1x18x18x4xf32, #tpu.memory_space<vmem>>, vector<1x16x16x4xf32>
    %51 = vector.shape_cast %50 : vector<1x16x16x4xf32> to vector<16x16x4xf32>
    %52 = vector.shape_cast %51 : vector<16x16x4xf32> to vector<256x4xf32>
    %c7 = arith.constant 7 : index
    %c0_53 = arith.constant 0 : index
    %c0_54 = arith.constant 0 : index
    %53 = vector.load %arg2[%c7, %c0_53, %c0_54] : memref<9x4x128xf32, #tpu.memory_space<vmem>>, vector<1x4x128xf32>
    %54 = vector.shape_cast %53 : vector<1x4x128xf32> to vector<4x128xf32>
    %cst_55 = arith.constant dense<0.000000e+00> : vector<256x128xf32>
    %55 = tpu.matmul %52, %54, %cst_55 {dimension_numbers = #tpu.dot_dimension_numbers<[1], [0], [0], [1], [0, 0, 1, 1], [], []>} : vector<256x4xf32>, vector<4x128xf32>, vector<256x128xf32> -> vector<256x128xf32>
    %56 = arith.addf %49, %55 : vector<256x128xf32>
    %c0_56 = arith.constant 0 : index
    %c2_57 = arith.constant 2 : index
    %c2_58 = arith.constant 2 : index
    %c0_59 = arith.constant 0 : index
    %57 = vector.load %arg1[%c0_56, %c2_57, %c2_58, %c0_59] : memref<1x18x18x4xf32, #tpu.memory_space<vmem>>, vector<1x16x16x4xf32>
    %58 = vector.shape_cast %57 : vector<1x16x16x4xf32> to vector<16x16x4xf32>
    %59 = vector.shape_cast %58 : vector<16x16x4xf32> to vector<256x4xf32>
    %c8 = arith.constant 8 : index
    %c0_60 = arith.constant 0 : index
    %c0_61 = arith.constant 0 : index
    %60 = vector.load %arg2[%c8, %c0_60, %c0_61] : memref<9x4x128xf32, #tpu.memory_space<vmem>>, vector<1x4x128xf32>
    %61 = vector.shape_cast %60 : vector<1x4x128xf32> to vector<4x128xf32>
    %cst_62 = arith.constant dense<0.000000e+00> : vector<256x128xf32>
    %62 = tpu.matmul %59, %61, %cst_62 {dimension_numbers = #tpu.dot_dimension_numbers<[1], [0], [0], [1], [0, 0, 1, 1], [], []>} : vector<256x4xf32>, vector<4x128xf32>, vector<256x128xf32> -> vector<256x128xf32>
    %63 = arith.addf %56, %62 : vector<256x128xf32>
    %c0_63 = arith.constant 0 : index
    %c0_64 = arith.constant 0 : index
    %64 = vector.load %arg3[%c0_63, %c0_64] : memref<1x128xf32, #tpu.memory_space<vmem>>, vector<1x128xf32>
    %65 = vector.broadcast %64 : vector<1x128xf32> to vector<256x128xf32>
    %66 = arith.mulf %63, %65 : vector<256x128xf32>
    %c0_65 = arith.constant 0 : index
    %c0_66 = arith.constant 0 : index
    %67 = vector.load %arg4[%c0_65, %c0_66] : memref<1x128xf32, #tpu.memory_space<vmem>>, vector<1x128xf32>
    %68 = vector.broadcast %67 : vector<1x128xf32> to vector<256x128xf32>
    %69 = arith.addf %66, %68 : vector<256x128xf32>
    %70 = arith.negf %69 : vector<256x128xf32>
    %71 = math.exp %70 : vector<256x128xf32>
    %cst_67 = arith.constant 1.000000e+00 : f32
    %72 = vector.broadcast %cst_67 : f32 to vector<256x128xf32>
    %73 = arith.addf %72, %71 : vector<256x128xf32>
    %74 = arith.divf %72, %73 : vector<256x128xf32>
    %75 = arith.mulf %69, %74 : vector<256x128xf32>
    %76 = vector.shape_cast %75 : vector<256x128xf32> to vector<1x16x16x128xf32>
    %c0_68 = arith.constant 0 : index
    %c0_69 = arith.constant 0 : index
    %c0_70 = arith.constant 0 : index
    %c0_71 = arith.constant 0 : index
    %77 = vector.load %arg5[%c0_68, %c0_69, %c0_70, %c0_71] : memref<1x16x16x128xf32, #tpu.memory_space<vmem>>, vector<1x16x16x128xf32>
    tpu.vector_store %arg5[%c0_68, %c0_69, %c0_70, %c0_71], %76 {strides = array<i32>} : memref<1x16x16x128xf32, #tpu.memory_space<vmem>>, vector<1x16x16x128xf32>,
    return
  }
  func.func @transform_0(%arg0: i32) -> (i32, i32, i32, i32) {
    %c0_i32 = arith.constant 0 : i32
    %c0_i32_0 = arith.constant 0 : i32
    %c0_i32_1 = arith.constant 0 : i32
    %c0_i32_2 = arith.constant 0 : i32
    return %arg0, %c0_i32, %c0_i32_0, %c0_i32_1 : i32, i32, i32, i32
  }
  func.func @transform_1(%arg0: i32) -> (i32, i32, i32) {
    %c0_i32 = arith.constant 0 : i32
    %c0_i32_0 = arith.constant 0 : i32
    %c0_i32_1 = arith.constant 0 : i32
    %c0_i32_2 = arith.constant 0 : i32
    return %c0_i32, %c0_i32_0, %c0_i32_1 : i32, i32, i32
  }
  func.func @transform_2(%arg0: i32) -> (i32, i32) {
    %c0_i32 = arith.constant 0 : i32
    %c0_i32_0 = arith.constant 0 : i32
    %c0_i32_1 = arith.constant 0 : i32
    return %c0_i32, %c0_i32_0 : i32, i32
  }
  func.func @transform_3(%arg0: i32) -> (i32, i32) {
    %c0_i32 = arith.constant 0 : i32
    %c0_i32_0 = arith.constant 0 : i32
    %c0_i32_1 = arith.constant 0 : i32
    return %c0_i32, %c0_i32_0 : i32, i32
  }
  func.func @transform_4(%arg0: i32) -> (i32, i32, i32, i32) {
    %c0_i32 = arith.constant 0 : i32
    %c0_i32_0 = arith.constant 0 : i32
    %c0_i32_1 = arith.constant 0 : i32
    %c0_i32_2 = arith.constant 0 : i32
    return %arg0, %c0_i32, %c0_i32_0, %c0_i32_1 : i32, i32, i32, i32
  }
}

</mosaic_0001>

<llo_original>
// kernel: conv_module_forward.1
$region0: #{conv_module_forward.1}
  #allocation0 [shape = 'u32[]', space=smem, size = 0x4, offset = 0x4, fixed_abs, tag = 'smem constant byte address 0x4 - core index']
  #allocation1 [shape = 'u32[144,128]{1,0:T(1,128)}', space=vmem, size = 0x12000, scoped, tag = 'internal scratch']
  %s0 = inlined_call_operand.vmem [shape: f32[2,18,18,4], index: 0, kind: input, shape index: {}]
  %s1 = inlined_call_operand.vmem [shape: f32[9,4,128], index: 1, kind: input, shape index: {}]
  %s2 = inlined_call_operand.vmem [shape: f32[1,128], index: 2, kind: input, shape index: {}]
  %s3 = inlined_call_operand.vmem [shape: f32[1,128], index: 3, kind: input, shape index: {}]
  %s4 = inlined_call_operand.vmem [shape: f32[2,16,16,128], index: 4, kind: output, shape index: {}]
  %s5 = sld [smem:[#allocation0]]
  $region49: #{conv_module_forward.1} parent=0
    _
  %s7 = ssub.s32 1, %s5
  %s8 = scalar_select 0, %s7, %s5
  loop: start=0, step=1, limit=4
  $region2: #{conv_module_forward.1} parent=0 // loop_pre_header
    _
  $region3: #{conv_module_forward.1} parent=0 // loop_header
    %s10 = sphi 0, %s14
    %p11 = scmp.ge.s32.totalorder %s10, 4
    %s20 = sphi 0, %s22
    %s23 = sphi 0, %s20
    %s24 = sphi 0, %s23
    %s40 = sphi 0, %s24
    %s44 = sphi 0, %s44
    %s46 = sphi 0, %s44
    %s47 = sphi 0, %s46
    %s61 = sphi 0, %s47
    %s65 = sphi 0, %s65
    %s67 = sphi 0, %s65
    %s68 = sphi 0, %s67
    %s82 = sphi 0, %s68
    %s86 = sphi 0, %s86
    %s88 = sphi 0, %s86
    %s89 = sphi 0, %s88
    %s103 = sphi 0, %s89
    %s109 = sphi 0, %s111
    %s112 = sphi 0, %s109
    %s113 = sphi 0, %s112
    %s129 = sphi 0, %s113
  $region4: #{conv_module_forward.1} parent=0 // loop_header_branch
    %13 = sbr.rel (%p11) target = $region8
  $region5: #{conv_module_forward.1} parent=0 // loop_body
    %s15 = ssub.s32 %s10, 1
    %s16 = ssub.s32 %s10, 2
    %s17 = sadd.s32 %s10, 1
    %s18 = ssub.s32 %s10, %s17
    %p19 = scmp.eq.s32.totalorder %s18, 0
    %s21 = sadd.s32 %s20, 1
    %s22 = scalar_select %p19, %s20, %s21
    %p25 = pneg %p19
    %p26 = scmp.eq.s32.totalorder %s10, 1
    %p27 = por %p25, %p26
    %p28 = scmp.ne.s32.totalorder %s20, %s23
    %p29 = scmp.eq.s32.totalorder %s10, 0
    %p30 = por %p28, %p29
    %p31 = scmp.ne.s32.totalorder %s20, %s23
    %p32 = scmp.eq.s32.totalorder %s15, 1
    %p33 = por %p31, %p32
    %p34 = scmp.ne.s32.totalorder %s23, %s24
    %p35 = scmp.eq.s32.totalorder %s15, 0
    %p36 = por %p34, %p35
    %p37 = scmp.ne.s32.totalorder %s23, %s24
    %p38 = scmp.eq.s32.totalorder %s16, 1
    %p39 = por %p37, %p38
    %p41 = scmp.ne.s32.totalorder %s24, %s40
    %p42 = scmp.eq.s32.totalorder %s16, 0
    %p43 = por %p41, %p42
    %s45 = sadd.s32 %s44, 1
    %p48 = scmp.eq.s32.totalorder %s10, 1
    %p49 = scmp.ne.s32.totalorder %s44, %s46
    %p50 = scmp.eq.s32.totalorder %s10, 0
    %p51 = por %p49, %p50
    %p52 = scmp.ne.s32.totalorder %s44, %s46
    %p53 = scmp.eq.s32.totalorder %s15, 1
    %p54 = por %p52, %p53
    %p55 = scmp.ne.s32.totalorder %s46, %s47
    %p56 = scmp.eq.s32.totalorder %s15, 0
    %p57 = por %p55, %p56
    %p58 = scmp.ne.s32.totalorder %s46, %s47
    %p59 = scmp.eq.s32.totalorder %s16, 1
    %p60 = por %p58, %p59
    %p62 = scmp.ne.s32.totalorder %s47, %s61
    %p63 = scmp.eq.s32.totalorder %s16, 0
    %p64 = por %p62, %p63
    %s66 = sadd.s32 %s65, 1
    %p69 = scmp.eq.s32.totalorder %s10, 1
    %p70 = scmp.ne.s32.totalorder %s65, %s67
    %p71 = scmp.eq.s32.totalorder %s10, 0
    %p72 = por %p70, %p71
    %p73 = scmp.ne.s32.totalorder %s65, %s67
    %p74 = scmp.eq.s32.totalorder %s15, 1
    %p75 = por %p73, %p74
    %p76 = scmp.ne.s32.totalorder %s67, %s68
    %p77 = scmp.eq.s32.totalorder %s15, 0
    %p78 = por %p76, %p77
    %p79 = scmp.ne.s32.totalorder %s67, %s68
    %p80 = scmp.eq.s32.totalorder %s16, 1
    %p81 = por %p79, %p80
    %p83 = scmp.ne.s32.totalorder %s68, %s82
    %p84 = scmp.eq.s32.totalorder %s16, 0
    %p85 = por %p83, %p84
    %s87 = sadd.s32 %s86, 1
    %p90 = scmp.eq.s32.totalorder %s10, 1
    %p91 = scmp.ne.s32.totalorder %s86, %s88
    %p92 = scmp.eq.s32.totalorder %s10, 0
    %p93 = por %p91, %p92
    %p94 = scmp.ne.s32.totalorder %s86, %s88
    %p95 = scmp.eq.s32.totalorder %s15, 1
    %p96 = por %p94, %p95
    %p97 = scmp.ne.s32.totalorder %s88, %s89
    %p98 = scmp.eq.s32.totalorder %s15, 0
    %p99 = por %p97, %p98
    %p100 = scmp.ne.s32.totalorder %s88, %s89
    %p101 = scmp.eq.s32.totalorder %s16, 1
    %p102 = por %p100, %p101
    %p104 = scmp.ne.s32.totalorder %s89, %s103
    %p105 = scmp.eq.s32.totalorder %s16, 0
    %p106 = por %p104, %p105
    %s107 = ssub.s32 %s10, %s17
    %p108 = scmp.eq.s32.totalorder %s107, 0
    %s110 = sadd.s32 %s109, 1
    %s111 = scalar_select %p108, %s109, %s110
    %p114 = pneg %p108
    %p115 = scmp.eq.s32.totalorder %s10, 1
    %p116 = por %p114, %p115
    %p117 = scmp.ne.s32.totalorder %s109, %s112
    %p118 = scmp.eq.s32.totalorder %s10, 0
    %p119 = por %p117, %p118
    %p120 = scmp.ne.s32.totalorder %s109, %s112
    %p121 = scmp.eq.s32.totalorder %s15, 1
    %p122 = por %p120, %p121
    %p123 = scmp.ne.s32.totalorder %s112, %s113
    %p124 = scmp.eq.s32.totalorder %s15, 0
    %p125 = por %p123, %p124
    %p126 = scmp.ne.s32.totalorder %s112, %s113
    %p127 = scmp.eq.s32.totalorder %s16, 1
    %p128 = por %p126, %p127
    %p130 = scmp.ne.s32.totalorder %s113, %s129
    %p131 = scmp.eq.s32.totalorder %s16, 0
    %p132 = por %p130, %p131
    %p133 = scmp.le.s32.totalorder 1, %s10
    %p134 = scmp.lt.s32.totalorder %s10, 3
    %p135 = pnand %p133, %p134
    %p136 = pneg %p135
    // Predicated region
    $region9: #{conv_module_forward.1} parent=5 // pred_check
      _
    $region10: #{conv_module_forward.1} parent=5 // pred_check_branch
      %138 = sbr.rel (%p135) target = $region12
    $region11: #{conv_module_forward.1} parent=5 // pred_region
      %s139 = ssub.s32 %s10, 1
      // Predicated region
      $region13: #{conv_module_forward.1} parent=11 // pred_check
        %p140 = pneg %p57
      $region14: #{conv_module_forward.1} parent=11 // pred_check_branch
        %142 = sbr.rel (%p140) target = $region16
      $region15: #{conv_module_forward.1} parent=11 // pred_region
        _
      $region16: #{conv_module_forward.1} parent=11 // pred_fallthru
        _
      // Predicated region
      $region17: #{conv_module_forward.1} parent=11 // pred_check
        %p143 = pneg %p78
      $region18: #{conv_module_forward.1} parent=11 // pred_check_branch
        %145 = sbr.rel (%p143) target = $region20
      $region19: #{conv_module_forward.1} parent=11 // pred_region
        _
      $region20: #{conv_module_forward.1} parent=11 // pred_fallthru
        _
      // Predicated region
      $region21: #{conv_module_forward.1} parent=11 // pred_check
        %p146 = pneg %p99
      $region22: #{conv_module_forward.1} parent=11 // pred_check_branch
        %148 = sbr.rel (%p146) target = $region24
      $region23: #{conv_module_forward.1} parent=11 // pred_region
        _
      $region24: #{conv_module_forward.1} parent=11 // pred_fallthru
        _
    $region12: #{conv_module_forward.1} parent=5 // pred_fallthru
      _
    %p149 = scmp.lt.s32.totalorder %s10, 2
    // Predicated region
    $region25: #{conv_module_forward.1} parent=5 // pred_check
      %p150 = pneg %p149
    $region26: #{conv_module_forward.1} parent=5 // pred_check_branch
      %152 = sbr.rel (%p150) target = $region28
    $region27: #{conv_module_forward.1} parent=5 // pred_region
      // Predicated region
      $region29: #{conv_module_forward.1} parent=27 // pred_check
        %p153 = pneg %p30
      $region30: #{conv_module_forward.1} parent=27 // pred_check_branch
        %155 = sbr.rel (%p153) target = $region32
      $region31: #{conv_module_forward.1} parent=27 // pred_region
        %p156 = scmp.lt.s32.totalorder %s10, 1
        %s157 = scalar_select %p156, %s10, 1
        %s158 = smul.addr %s157, 54
        %s159 = smul.addr %s158, 8
        %s160 = scalar_lea.vmem %s0, %s159
      $region32: #{conv_module_forward.1} parent=27 // pred_fallthru
        _
    $region28: #{conv_module_forward.1} parent=5 // pred_fallthru
      _
    %p161 = scmp.le.s32.totalorder 1, %s10
    %p162 = scmp.lt.s32.totalorder %s10, 3
    %p163 = pnand %p161, %p162
    %p164 = pneg %p163
    // Predicated region
    $region33: #{conv_module_forward.1} parent=5 // pred_check
      _
    $region34: #{conv_module_forward.1} parent=5 // pred_check_branch
      %166 = sbr.rel (%p163) target = $region36
    $region35: #{conv_module_forward.1} parent=5 // pred_region
      %s167 = ssub.s32 %s10, 1
      %p168 = scmp.lt.s32.totalorder %s15, 1
      %s169 = scalar_select %p168, %s15, 1
      %s170 = smul.addr %s169, 54
      %s171 = smul.addr %s170, 8
      %s172 = scalar_lea.vmem %s0, %s171
      %p173 = pneg %p36
      %p174 = pneg %p33
      %p175 = pneg %p57
      %p176 = pneg %p54
      %p177 = pneg %p78
      %p178 = pneg %p75
      %p179 = pneg %p99
      %p180 = pneg %p96
      %p181 = pneg %p125
      %p182 = pneg %p122
      %p183 = scmp.lt.s32.totalorder %s15, 1
      %s184 = scalar_select %p183, %s15, 1
      %s185 = smul.addr %s184, 32
      %s186 = smul.addr %s185, 8
      %s187 = scalar_lea.vmem %s4, %s186
      %p188 = scmp.lt.s32.totalorder %s15, 1
      %s189 = scalar_select %p188, %s15, 1
      %s190 = smul.addr %s189, 54
      %s191 = smul.addr %s190, 8
      %s192 = scalar_lea.vmem %s0, %s191
      %p193 = scmp.lt.s32.totalorder %s15, 1
      %s194 = scalar_select %p193, %s15, 1
      %s195 = smul.addr %s194, 32
      %s196 = smul.addr %s195, 8
      %s197 = scalar_lea.vmem %s4, %s196
      %v198 = vld [vmem:[%s192] sm:$0xff]
      %v199 = vld [vmem:[%s192 + $0x8] sm:$0xff]
      %v200 = vld [vmem:[%s192 + $0x18] sm:$0xff]
      %v201 = vld [vmem:[%s192 + $0x20] sm:$0xff]
      %v202 = vld [vmem:[%s192 + $0x30] sm:$0xff]
      %v203 = vld [vmem:[%s192 + $0x38] sm:$0xff]
      %v204 = vld [vmem:[%s192 + $0x48] sm:$0xff]
      %v205 = vld [vmem:[%s192 + $0x50] sm:$0xff]
      %v206 = vld [vmem:[%s192 + $0x60] sm:$0xff]
      %v207 = vld [vmem:[%s192 + $0x68] sm:$0xff]
      %v208 = vld [vmem:[%s192 + $0x78] sm:$0xff]
      %v209 = vld [vmem:[%s192 + $0x80] sm:$0xff]
      %v210 = vld [vmem:[%s192 + $0x90] sm:$0xff]
      %v211 = vld [vmem:[%s192 + $0x98] sm:$0xff]
      %v212 = vld [vmem:[%s192 + $0xa8] sm:$0xff]
      %v213 = vld [vmem:[%s192 + $0xb0] sm:$0xff]
      %v214 = vld [vmem:[%s192 + $0xc0] sm:$0xff]
      %v215 = vld [vmem:[%s192 + $0xc8] sm:$0xff]
      %v216 = vld [vmem:[%s192 + $0xd8] sm:$0xff]
      %v217 = vld [vmem:[%s192 + $0xe0] sm:$0xff]
      %v218 = vld [vmem:[%s192 + $0xf0] sm:$0xff]
      %v219 = vld [vmem:[%s192 + $0xf8] sm:$0xff]
      %v220 = vld [vmem:[%s192 + $0x108] sm:$0xff]
      %v221 = vld [vmem:[%s192 + $0x110] sm:$0xff]
      %v222 = vld [vmem:[%s192 + $0x120] sm:$0xff]
      %v223 = vld [vmem:[%s192 + $0x128] sm:$0xff]
      %v224 = vld [vmem:[%s192 + $0x138] sm:$0xff]
      %v225 = vld [vmem:[%s192 + $0x140] sm:$0xff]
      %v226 = vld [vmem:[%s192 + $0x150] sm:$0xff]
      %v227 = vld [vmem:[%s192 + $0x158] sm:$0xff]
      %v228 = vld [vmem:[%s192 + $0x168] sm:$0xff]
      %v229 = vld [vmem:[%s192 + $0x170] sm:$0xff]
      %v230 = vld [vmem:[%s1] sm:$0xf]
      %v231 = vld [vmem:[%s192 + $0x1] sm:$0xff]
      %v232 = vld [vmem:[%s192 + $0x9] sm:$0xff]
      %v233 = vld [vmem:[%s192 + $0x19] sm:$0xff]
      %v234 = vld [vmem:[%s192 + $0x21] sm:$0xff]
      %v235 = vld [vmem:[%s192 + $0x31] sm:$0xff]
      %v236 = vld [vmem:[%s192 + $0x39] sm:$0xff]
      %v237 = vld [vmem:[%s192 + $0x49] sm:$0xff]
      %v238 = vld [vmem:[%s192 + $0x51] sm:$0xff]
      %v239 = vld [vmem:[%s192 + $0x61] sm:$0xff]
      %v240 = vld [vmem:[%s192 + $0x69] sm:$0xff]
      %v241 = vld [vmem:[%s192 + $0x79] sm:$0xff]
      %v242 = vld [vmem:[%s192 + $0x81] sm:$0xff]
      %v243 = vld [vmem:[%s192 + $0x91] sm:$0xff]
      %v244 = vld [vmem:[%s192 + $0x99] sm:$0xff]
      %v245 = vld [vmem:[%s192 + $0xa9] sm:$0xff]
      %v246 = vld [vmem:[%s192 + $0xb1] sm:$0xff]
      %v247 = vld [vmem:[%s192 + $0xc1] sm:$0xff]
      %v248 = vld [vmem:[%s192 + $0xc9] sm:$0xff]
      %v249 = vld [vmem:[%s192 + $0xd9] sm:$0xff]
      %v250 = vld [vmem:[%s192 + $0xe1] sm:$0xff]
      %v251 = vld [vmem:[%s192 + $0xf1] sm:$0xff]
      %v252 = vld [vmem:[%s192 + $0xf9] sm:$0xff]
      %v253 = vld [vmem:[%s192 + $0x109] sm:$0xff]
      %v254 = vld [vmem:[%s192 + $0x111] sm:$0xff]
      %v255 = vld [vmem:[%s192 + $0x121] sm:$0xff]
      %v256 = vld [vmem:[%s192 + $0x129] sm:$0xff]
      %v257 = vld [vmem:[%s192 + $0x139] sm:$0xff]
      %v258 = vld [vmem:[%s192 + $0x141] sm:$0xff]
      %v259 = vld [vmem:[%s192 + $0x151] sm:$0xff]
      %v260 = vld [vmem:[%s192 + $0x159] sm:$0xff]
      %v261 = vld [vmem:[%s192 + $0x169] sm:$0xff]
      %v262 = vld [vmem:[%s192 + $0x171] sm:$0xff]
      %s263 = scalar_lea.vmem %s1, 4
      %v264 = vld [vmem:[%s263] sm:$0xf]
      %vm265 = vcmask 31744
      %v267 = vsel %vm265, %v231, 0
      %v270 = vsel %vm265, %v232, 0
      %v273 = vsel %vm265, %v233, 0
      %v276 = vsel %vm265, %v234, 0
      %v279 = vsel %vm265, %v235, 0
      %v282 = vsel %vm265, %v236, 0
      %v285 = vsel %vm265, %v237, 0
      %v288 = vsel %vm265, %v238, 0
      %v291 = vsel %vm265, %v239, 0
      %v294 = vsel %vm265, %v240, 0
      %v297 = vsel %vm265, %v241, 0
      %v300 = vsel %vm265, %v242, 0
      %v303 = vsel %vm265, %v243, 0
      %v306 = vsel %vm265, %v244, 0
      %v309 = vsel %vm265, %v245, 0
      %v312 = vsel %vm265, %v246, 0
      %v315 = vsel %vm265, %v247, 0
      %v318 = vsel %vm265, %v248, 0
      %v321 = vsel %vm265, %v249, 0
      %v324 = vsel %vm265, %v250, 0
      %v327 = vsel %vm265, %v251, 0
      %v330 = vsel %vm265, %v252, 0
      %v333 = vsel %vm265, %v253, 0
      %v336 = vsel %vm265, %v254, 0
      %v339 = vsel %vm265, %v255, 0
      %v342 = vsel %vm265, %v256, 0
      %v345 = vsel %vm265, %v257, 0
      %v348 = vsel %vm265, %v258, 0
      %v351 = vsel %vm265, %v259, 0
      %v354 = vsel %vm265, %v260, 0
      %v357 = vsel %vm265, %v261, 0
      %v360 = vsel %vm265, %v262, 0
      %vm362 = vcmask 1043456
      %v364 = vsel %vm362, %v264, 0
      %366 = vmatprep.subr.mxu0 0.0
      %367 = vmatpush1.msra.mxu0 %v364
      %368 = vmatprep.subr.mxu0 0.0
      %369 = vmatpush1.msra.mxu0 0.0
      %370 = vmatprep.subr.mxu0 0.0
      %371 = vmatpush1.msra.mxu0 0.0
      %372 = vmatprep.subr.mxu0 0.0
      %373 = vmatpush1.msra.mxu0 0.0
      %374 = vmatprep.subr.mxu0 0.0
      %375 = vmatpush1.msra.mxu0 0.0
      %376 = vmatprep.subr.mxu0 0.0
      %377 = vmatpush1.msra.mxu0 0.0
      %378 = vmatprep.subr.mxu0 0.0
      %379 = vmatpush1.msra.mxu0 0.0
      %380 = vmatprep.subr.mxu0 0.0
      %381 = vmatpush1.msra.mxu0 0.0
      %382 = vmatprep.subr.mxu0 0.0
      %383 = vmatpush1.msra.mxu0 0.0
      %384 = vmatprep.subr.mxu0 0.0
      %385 = vmatpush1.msra.mxu0 0.0
      %386 = vmatprep.subr.mxu0 0.0
      %387 = vmatpush1.msra.mxu0 0.0
      %388 = vmatprep.subr.mxu0 0.0
      %389 = vmatpush1.msra.mxu0 0.0
      %390 = vmatprep.subr.mxu0 0.0
      %391 = vmatpush1.msra.mxu0 0.0
      %392 = vmatprep.subr.mxu0 0.0
      %393 = vmatpush1.msra.mxu0 0.0
      %394 = vmatprep.subr.mxu0 0.0
      %395 = vmatpush1.msra.mxu0 0.0
      %396 = vmatprep.subr.mxu0 0.0
      %397 = vmatpush1.msra.mxu0 0.0
      %398 = vmatprep.subr.mxu0 0.0
      %399 = vmatpush1.msra.mxu0 0.0
      %400 = vmatprep.subr.mxu0 0.0
      %401 = vmatpush1.msra.mxu0 0.0
      %402 = vmatprep.subr.mxu0 0.0
      %403 = vmatpush1.msra.mxu0 0.0
      %404 = vmatprep.subr.mxu0 0.0
      %405 = vmatpush1.msra.mxu0 0.0
      %406 = vmatprep.subr.mxu0 0.0
      %407 = vmatpush1.msra.mxu0 0.0
      %408 = vmatprep.subr.mxu0 0.0
      %409 = vmatpush1.msra.mxu0 0.0
      %410 = vmatprep.subr.mxu0 0.0
      %411 = vmatpush1.msra.mxu0 0.0
      %412 = vmatprep.subr.mxu0 0.0
      %413 = vmatpush1.msra.mxu0 0.0
      %414 = vmatprep.subr.mxu0 0.0
      %415 = vmatpush1.msra.mxu0 0.0
      %416 = vmatprep.subr.mxu0 0.0
      %417 = vmatpush1.msra.mxu0 0.0
      %418 = vmatprep.subr.mxu0 0.0
      %419 = vmatpush1.msra.mxu0 0.0
      %420 = vmatprep.subr.mxu0 0.0
      %421 = vmatpush1.msra.mxu0 0.0
      %422 = vmatprep.subr.mxu0 0.0
      %423 = vmatpush1.msra.mxu0 0.0
      %424 = vmatprep.subr.mxu0 0.0
      %425 = vmatpush1.msra.mxu0 0.0
      %426 = vmatprep.subr.mxu0 0.0
      %427 = vmatpush1.msra.mxu0 0.0
      %428 = vmatprep.subr.mxu0 0.0
      %429 = vmatpush1.msra.mxu0 0.0
      %430 = vmatprep.mubr.f32.mxu0 0.0
      %431 = vmatmul.mubr.f32.gmra.mrb[0].mxu0 %v267
      %v432 = vpop.f32.mrb[0].mxu0
      %v433 = vadd.f32 0.0, %v432
      %v434 = vpop.f32.mrb[0].mxu0
      %435 = vmatprep.mubr.f32.mxu0 0.0
      %436 = vmatmul.mubr.f32.gmra.mrb[0].mxu0 %v270
      %v437 = vpop.f32.mrb[0].mxu0
      %v438 = vadd.f32 0.0, %v437
      %v439 = vpop.f32.mrb[0].mxu0
      %440 = vmatprep.mubr.f32.mxu0 0.0
      %441 = vmatmul.mubr.f32.gmra.mrb[0].mxu0 %v273
      %v442 = vpop.f32.mrb[0].mxu0
      %v443 = vadd.f32 0.0, %v442
      %v444 = vpop.f32.mrb[0].mxu0
      %445 = vmatprep.mubr.f32.mxu0 0.0
      %446 = vmatmul.mubr.f32.gmra.mrb[0].mxu0 %v276
      %v447 = vpop.f32.mrb[0].mxu0
      %v448 = vadd.f32 0.0, %v447
      %v449 = vpop.f32.mrb[0].mxu0
      %450 = vmatprep.mubr.f32.mxu0 0.0
      %451 = vmatmul.mubr.f32.gmra.mrb[0].mxu0 %v279
      %v452 = vpop.f32.mrb[0].mxu0
      %v453 = vadd.f32 0.0, %v452
      %v454 = vpop.f32.mrb[0].mxu0
      %455 = vmatprep.mubr.f32.mxu0 0.0
      %456 = vmatmul.mubr.f32.gmra.mrb[0].mxu0 %v282
      %v457 = vpop.f32.mrb[0].mxu0
      %v458 = vadd.f32 0.0, %v457
      %v459 = vpop.f32.mrb[0].mxu0
      %460 = vmatprep.mubr.f32.mxu0 0.0
      %461 = vmatmul.mubr.f32.gmra.mrb[0].mxu0 %v285
      %v462 = vpop.f32.mrb[0].mxu0
      %v463 = vadd.f32 0.0, %v462
      %v464 = vpop.f32.mrb[0].mxu0
      %465 = vmatprep.mubr.f32.mxu0 0.0
      %466 = vmatmul.mubr.f32.gmra.mrb[0].mxu0 %v288
      %v467 = vpop.f32.mrb[0].mxu0
      %v468 = vadd.f32 0.0, %v467
      %v469 = vpop.f32.mrb[0].mxu0
      %470 = vmatprep.mubr.f32.mxu0 0.0
      %471 = vmatmul.mubr.f32.gmra.mrb[0].mxu0 %v291
      %v472 = vpop.f32.mrb[0].mxu0
      %v473 = vadd.f32 0.0, %v472
      %v474 = vpop.f32.mrb[0].mxu0
      %475 = vmatprep.mubr.f32.mxu0 0.0
      %476 = vmatmul.mubr.f32.gmra.mrb[0].mxu0 %v294
      %v477 = vpop.f32.mrb[0].mxu0
      %v478 = vadd.f32 0.0, %v477
      %v479 = vpop.f32.mrb[0].mxu0
      %480 = vmatprep.mubr.f32.mxu0 0.0
      %481 = vmatmul.mubr.f32.gmra.mrb[0].mxu0 %v297
      %v482 = vpop.f32.mrb[0].mxu0
      %v483 = vadd.f32 0.0, %v482
      %v484 = vpop.f32.mrb[0].mxu0
      %485 = vmatprep.mubr.f32.mxu0 0.0
      %486 = vmatmul.mubr.f32.gmra.mrb[0].mxu0 %v300
      %v487 = vpop.f32.mrb[0].mxu0
      %v488 = vadd.f32 0.0, %v487
      %v489 = vpop.f32.mrb[0].mxu0
      %490 = vmatprep.mubr.f32.mxu0 0.0
      %491 = vmatmul.mubr.f32.gmra.mrb[0].mxu0 %v303
      %v492 = vpop.f32.mrb[0].mxu0
      %v493 = vadd.f32 0.0, %v492
      %v494 = vpop.f32.mrb[0].mxu0
      %495 = vmatprep.mubr.f32.mxu0 0.0
      %496 = vmatmul.mubr.f32.gmra.mrb[0].mxu0 %v306
      %v497 = vpop.f32.mrb[0].mxu0
      %v498 = vadd.f32 0.0, %v497
      %v499 = vpop.f32.mrb[0].mxu0
      %500 = vmatprep.mubr.f32.mxu0 0.0
      %501 = vmatmul.mubr.f32.gmra.mrb[0].mxu0 %v309
      %v502 = vpop.f32.mrb[0].mxu0
      %v503 = vadd.f32 0.0, %v502
      %v504 = vpop.f32.mrb[0].mxu0
      %505 = vmatprep.mubr.f32.mxu0 0.0
      %506 = vmatmul.mubr.f32.gmra.mrb[0].mxu0 %v312
      %v507 = vpop.f32.mrb[0].mxu0
      %v508 = vadd.f32 0.0, %v507
      %v509 = vpop.f32.mrb[0].mxu0
      %510 = vmatprep.mubr.f32.mxu0 0.0
      %511 = vmatmul.mubr.f32.gmra.mrb[0].mxu0 %v315
      %v512 = vpop.f32.mrb[0].mxu0
      %v513 = vadd.f32 0.0, %v512
      %v514 = vpop.f32.mrb[0].mxu0
      %515 = vmatprep.mubr.f32.mxu0 0.0
      %516 = vmatmul.mubr.f32.gmra.mrb[0].mxu0 %v318
      %v517 = vpop.f32.mrb[0].mxu0
      %v518 = vadd.f32 0.0, %v517
      %v519 = vpop.f32.mrb[0].mxu0
      %520 = vmatprep.mubr.f32.mxu0 0.0
      %521 = vmatmul.mubr.f32.gmra.mrb[0].mxu0 %v321
      %v522 = vpop.f32.mrb[0].mxu0
      %v523 = vadd.f32 0.0, %v522
      %v524 = vpop.f32.mrb[0].mxu0
      %525 = vmatprep.mubr.f32.mxu0 0.0
      %526 = vmatmul.mubr.f32.gmra.mrb[0].mxu0 %v324
      %v527 = vpop.f32.mrb[0].mxu0
      %v528 = vadd.f32 0.0, %v527
      %v529 = vpop.f32.mrb[0].mxu0
      %530 = vmatprep.mubr.f32.mxu0 0.0
      %531 = vmatmul.mubr.f32.gmra.mrb[0].mxu0 %v327
      %v532 = vpop.f32.mrb[0].mxu0
      %v533 = vadd.f32 0.0, %v532
      %v534 = vpop.f32.mrb[0].mxu0
      %535 = vmatprep.mubr.f32.mxu0 0.0
      %536 = vmatmul.mubr.f32.gmra.mrb[0].mxu0 %v330
      %v537 = vpop.f32.mrb[0].mxu0
      %v538 = vadd.f32 0.0, %v537
      %v539 = vpop.f32.mrb[0].mxu0
      %540 = vmatprep.mubr.f32.mxu0 0.0
      %541 = vmatmul.mubr.f32.gmra.mrb[0].mxu0 %v333
      %v542 = vpop.f32.mrb[0].mxu0
      %v543 = vadd.f32 0.0, %v542
      %v544 = vpop.f32.mrb[0].mxu0
      %545 = vmatprep.mubr.f32.mxu0 0.0
      %546 = vmatmul.mubr.f32.gmra.mrb[0].mxu0 %v336
      %v547 = vpop.f32.mrb[0].mxu0
      %v548 = vadd.f32 0.0, %v547
      %v549 = vpop.f32.mrb[0].mxu0
      %550 = vmatprep.mubr.f32.mxu0 0.0
      %551 = vmatmul.mubr.f32.gmra.mrb[0].mxu0 %v339
      %v552 = vpop.f32.mrb[0].mxu0
      %v553 = vadd.f32 0.0, %v552
      %v554 = vpop.f32.mrb[0].mxu0
      %555 = vmatprep.mubr.f32.mxu0 0.0
      %556 = vmatmul.mubr.f32.gmra.mrb[0].mxu0 %v342
      %v557 = vpop.f32.mrb[0].mxu0
      %v558 = vadd.f32 0.0, %v557
      %v559 = vpop.f32.mrb[0].mxu0
      %560 = vmatprep.mubr.f32.mxu0 0.0
      %561 = vmatmul.mubr.f32.gmra.mrb[0].mxu0 %v345
      %v562 = vpop.f32.mrb[0].mxu0
      %v563 = vadd.f32 0.0, %v562
      %v564 = vpop.f32.mrb[0].mxu0
      %565 = vmatprep.mubr.f32.mxu0 0.0
      %566 = vmatmul.mubr.f32.gmra.mrb[0].mxu0 %v348
      %v567 = vpop.f32.mrb[0].mxu0
      %v568 = vadd.f32 0.0, %v567
      %v569 = vpop.f32.mrb[0].mxu0
      %570 = vmatprep.mubr.f32.mxu0 0.0
      %571 = vmatmul.mubr.f32.gmra.mrb[0].mxu0 %v351
      %v572 = vpop.f32.mrb[0].mxu0
      %v573 = vadd.f32 0.0, %v572
      %v574 = vpop.f32.mrb[0].mxu0
      %575 = vmatprep.mubr.f32.mxu0 0.0
      %576 = vmatmul.mubr.f32.gmra.mrb[0].mxu0 %v354
      %v577 = vpop.f32.mrb[0].mxu0
      %v578 = vadd.f32 0.0, %v577
      %v579 = vpop.f32.mrb[0].mxu0
      %580 = vmatprep.mubr.f32.mxu0 0.0
      %581 = vmatmul.mubr.f32.gmra.mrb[0].mxu0 %v357
      %v582 = vpop.f32.mrb[0].mxu0
      %v583 = vadd.f32 0.0, %v582
      %v584 = vpop.f32.mrb[0].mxu0
      %585 = vmatprep.mubr.f32.mxu0 0.0
      %586 = vmatmul.mubr.f32.gmra.mrb[0].mxu0 %v360
      %v587 = vpop.f32.mrb[0].mxu0
      %v588 = vadd.f32 0.0, %v587
      %v589 = vpop.f32.mrb[0].mxu0
      %590 = vdwg.mxu0
      %v592 = vsel %vm265, %v198, 0
      %v595 = vsel %vm265, %v199, 0
      %v598 = vsel %vm265, %v200, 0
      %v601 = vsel %vm265, %v201, 0
      %v604 = vsel %vm265, %v202, 0
      %v607 = vsel %vm265, %v203, 0
      %v610 = vsel %vm265, %v204, 0
      %v613 = vsel %vm265, %v205, 0
      %v616 = vsel %vm265, %v206, 0
      %v619 = vsel %vm265, %v207, 0
      %v622 = vsel %vm265, %v208, 0
      %v625 = vsel %vm265, %v209, 0
      %v628 = vsel %vm265, %v210, 0
      %v631 = vsel %vm265, %v211, 0
      %v634 = vsel %vm265, %v212, 0
      %v637 = vsel %vm265, %v213, 0
      %v640 = vsel %vm265, %v214, 0
      %v643 = vsel %vm265, %v215, 0
      %v646 = vsel %vm265, %v216, 0
      %v649 = vsel %vm265, %v217, 0
      %v652 = vsel %vm265, %v218, 0
      %v655 = vsel %vm265, %v219, 0
      %v658 = vsel %vm265, %v220, 0
      %v661 = vsel %vm265, %v221, 0
      %v664 = vsel %vm265, %v222, 0
      %v667 = vsel %vm265, %v223, 0
      %v670 = vsel %vm265, %v224, 0
      %v673 = vsel %vm265, %v225, 0
      %v676 = vsel %vm265, %v226, 0
      %v679 = vsel %vm265, %v227, 0
      %v682 = vsel %vm265, %v228, 0
      %v685 = vsel %vm265, %v229, 0
      %v688 = vsel %vm362, %v230, 0
      %690 = vmatprep.subr.mxu0 0.0
      %691 = vmatpush1.msra.mxu0 %v688
      %692 = vmatprep.subr.mxu0 0.0
      %693 = vmatpush1.msra.mxu0 0.0
      %694 = vmatprep.subr.mxu0 0.0
      %695 = vmatpush1.msra.mxu0 0.0
      %696 = vmatprep.subr.mxu0 0.0
      %697 = vmatpush1.msra.mxu0 0.0
      %698 = vmatprep.subr.mxu0 0.0
      %699 = vmatpush1.msra.mxu0 0.0
      %700 = vmatprep.subr.mxu0 0.0
      %701 = vmatpush1.msra.mxu0 0.0
      %702 = vmatprep.subr.mxu0 0.0
      %703 = vmatpush1.msra.mxu0 0.0
      %704 = vmatprep.subr.mxu0 0.0
      %705 = vmatpush1.msra.mxu0 0.0
      %706 = vmatprep.subr.mxu0 0.0
      %707 = vmatpush1.msra.mxu0 0.0
      %708 = vmatprep.subr.mxu0 0.0
      %709 = vmatpush1.msra.mxu0 0.0
      %710 = vmatprep.subr.mxu0 0.0
      %711 = vmatpush1.msra.mxu0 0.0
      %712 = vmatprep.subr.mxu0 0.0
      %713 = vmatpush1.msra.mxu0 0.0
      %714 = vmatprep.subr.mxu0 0.0
      %715 = vmatpush1.msra.mxu0 0.0
      %716 = vmatprep.subr.mxu0 0.0
      %717 = vmatpush1.msra.mxu0 0.0
      %718 = vmatprep.subr.mxu0 0.0
      %719 = vmatpush1.msra.mxu0 0.0
      %720 = vmatprep.subr.mxu0 0.0
      %721 = vmatpush1.msra.mxu0 0.0
      %722 = vmatprep.subr.mxu0 0.0
      %723 = vmatpush1.msra.mxu0 0.0
      %724 = vmatprep.subr.mxu0 0.0
      %725 = vmatpush1.msra.mxu0 0.0
      %726 = vmatprep.subr.mxu0 0.0
      %727 = vmatpush1.msra.mxu0 0.0
      %728 = vmatprep.subr.mxu0 0.0
      %729 = vmatpush1.msra.mxu0 0.0
      %730 = vmatprep.subr.mxu0 0.0
      %731 = vmatpush1.msra.mxu0 0.0
      %732 = vmatprep.subr.mxu0 0.0
      %733 = vmatpush1.msra.mxu0 0.0
      %734 = vmatprep.subr.mxu0 0.0
      %735 = vmatpush1.msra.mxu0 0.0
      %736 = vmatprep.subr.mxu0 0.0
      %737 = vmatpush1.msra.mxu0 0.0
      %738 = vmatprep.subr.mxu0 0.0
      %739 = vmatpush1.msra.mxu0 0.0
      %740 = vmatprep.subr.mxu0 0.0
      %741 = vmatpush1.msra.mxu0 0.0
      %742 = vmatprep.subr.mxu0 0.0
      %743 = vmatpush1.msra.mxu0 0.0
      %744 = vmatprep.subr.mxu0 0.0
      %745 = vmatpush1.msra.mxu0 0.0
      %746 = vmatprep.subr.mxu0 0.0
      %747 = vmatpush1.msra.mxu0 0.0
      %748 = vmatprep.subr.mxu0 0.0
      %749 = vmatpush1.msra.mxu0 0.0
      %750 = vmatprep.subr.mxu0 0.0
      %751 = vmatpush1.msra.mxu0 0.0
      %752 = vmatprep.subr.mxu0 0.0
      %753 = vmatpush1.msra.mxu0 0.0
      %754 = vmatprep.mubr.f32.mxu0 0.0
      %755 = vmatmul.mubr.f32.gmra.mrb[0].mxu0 %v592
      %v756 = vpop.f32.mrb[0].mxu0
      %v757 = vadd.f32 %v433, %v756
      %v758 = vpop.f32.mrb[0].mxu0
      %759 = vmatprep.mubr.f32.mxu0 0.0
      %760 = vmatmul.mubr.f32.gmra.mrb[0].mxu0 %v595
      %v761 = vpop.f32.mrb[0].mxu0
      %v762 = vadd.f32 %v438, %v761
      %v763 = vpop.f32.mrb[0].mxu0
      %764 = vmatprep.mubr.f32.mxu0 0.0
      %765 = vmatmul.mubr.f32.gmra.mrb[0].mxu0 %v598
      %v766 = vpop.f32.mrb[0].mxu0
      %v767 = vadd.f32 %v443, %v766
      %v768 = vpop.f32.mrb[0].mxu0
      %769 = vmatprep.mubr.f32.mxu0 0.0
      %770 = vmatmul.mubr.f32.gmra.mrb[0].mxu0 %v601
      %v771 = vpop.f32.mrb[0].mxu0
      %v772 = vadd.f32 %v448, %v771
      %v773 = vpop.f32.mrb[0].mxu0
      %774 = vmatprep.mubr.f32.mxu0 0.0
      %775 = vmatmul.mubr.f32.gmra.mrb[0].mxu0 %v604
      %v776 = vpop.f32.mrb[0].mxu0
      %v777 = vadd.f32 %v453, %v776
      %v778 = vpop.f32.mrb[0].mxu0
      %779 = vmatprep.mubr.f32.mxu0 0.0
      %780 = vmatmul.mubr.f32.gmra.mrb[0].mxu0 %v607
      %v781 = vpop.f32.mrb[0].mxu0
      %v782 = vadd.f32 %v458, %v781
      %v783 = vpop.f32.mrb[0].mxu0
      %784 = vmatprep.mubr.f32.mxu0 0.0
      %785 = vmatmul.mubr.f32.gmra.mrb[0].mxu0 %v610
      %v786 = vpop.f32.mrb[0].mxu0
      %v787 = vadd.f32 %v463, %v786
      %v788 = vpop.f32.mrb[0].mxu0
      %789 = vmatprep.mubr.f32.mxu0 0.0
      %790 = vmatmul.mubr.f32.gmra.mrb[0].mxu0 %v613
      %v791 = vpop.f32.mrb[0].mxu0
      %v792 = vadd.f32 %v468, %v791
      %v793 = vpop.f32.mrb[0].mxu0
      %794 = vmatprep.mubr.f32.mxu0 0.0
      %795 = vmatmul.mubr.f32.gmra.mrb[0].mxu0 %v616
      %v796 = vpop.f32.mrb[0].mxu0
      %v797 = vadd.f32 %v473, %v796
      %v798 = vpop.f32.mrb[0].mxu0
      %799 = vmatprep.mubr.f32.mxu0 0.0
      %800 = vmatmul.mubr.f32.gmra.mrb[0].mxu0 %v619
      %v801 = vpop.f32.mrb[0].mxu0
      %v802 = vadd.f32 %v478, %v801
      %v803 = vpop.f32.mrb[0].mxu0
      %804 = vmatprep.mubr.f32.mxu0 0.0
      %805 = vmatmul.mubr.f32.gmra.mrb[0].mxu0 %v622
      %v806 = vpop.f32.mrb[0].mxu0
      %v807 = vadd.f32 %v483, %v806
      %v808 = vpop.f32.mrb[0].mxu0
      %809 = vmatprep.mubr.f32.mxu0 0.0
      %810 = vmatmul.mubr.f32.gmra.mrb[0].mxu0 %v625
      %v811 = vpop.f32.mrb[0].mxu0
      %v812 = vadd.f32 %v488, %v811
      %v813 = vpop.f32.mrb[0].mxu0
      %814 = vmatprep.mubr.f32.mxu0 0.0
      %815 = vmatmul.mubr.f32.gmra.mrb[0].mxu0 %v628
      %v816 = vpop.f32.mrb[0].mxu0
      %v817 = vadd.f32 %v493, %v816
      %v818 = vpop.f32.mrb[0].mxu0
      %819 = vmatprep.mubr.f32.mxu0 0.0
      %820 = vmatmul.mubr.f32.gmra.mrb[0].mxu0 %v631
      %v821 = vpop.f32.mrb[0].mxu0
      %v822 = vadd.f32 %v498, %v821
      %v823 = vpop.f32.mrb[0].mxu0
      %824 = vmatprep.mubr.f32.mxu0 0.0
      %825 = vmatmul.mubr.f32.gmra.mrb[0].mxu0 %v634
      %v826 = vpop.f32.mrb[0].mxu0
      %v827 = vadd.f32 %v503, %v826
      %v828 = vpop.f32.mrb[0].mxu0
      %829 = vmatprep.mubr.f32.mxu0 0.0
      %830 = vmatmul.mubr.f32.gmra.mrb[0].mxu0 %v637
      %v831 = vpop.f32.mrb[0].mxu0
      %v832 = vadd.f32 %v508, %v831
      %v833 = vpop.f32.mrb[0].mxu0
      %834 = vmatprep.mubr.f32.mxu0 0.0
      %835 = vmatmul.mubr.f32.gmra.mrb[0].mxu0 %v640
      %v836 = vpop.f32.mrb[0].mxu0
      %v837 = vadd.f32 %v513, %v836
      %v838 = vpop.f32.mrb[0].mxu0
      %839 = vmatprep.mubr.f32.mxu0 0.0
      %840 = vmatmul.mubr.f32.gmra.mrb[0].mxu0 %v643
      %v841 = vpop.f32.mrb[0].mxu0
      %v842 = vadd.f32 %v518, %v841
      %v843 = vpop.f32.mrb[0].mxu0
      %844 = vmatprep.mubr.f32.mxu0 0.0
      %845 = vmatmul.mubr.f32.gmra.mrb[0].mxu0 %v646
      %v846 = vpop.f32.mrb[0].mxu0
      %v847 = vadd.f32 %v523, %v846
      %v848 = vpop.f32.mrb[0].mxu0
      %849 = vmatprep.mubr.f32.mxu0 0.0
      %850 = vmatmul.mubr.f32.gmra.mrb[0].mxu0 %v649
      %v851 = vpop.f32.mrb[0].mxu0
      %v852 = vadd.f32 %v528, %v851
      %v853 = vpop.f32.mrb[0].mxu0
      %854 = vmatprep.mubr.f32.mxu0 0.0
      %855 = vmatmul.mubr.f32.gmra.mrb[0].mxu0 %v652
      %v856 = vpop.f32.mrb[0].mxu0
      %v857 = vadd.f32 %v533, %v856
      %v858 = vpop.f32.mrb[0].mxu0
      %859 = vmatprep.mubr.f32.mxu0 0.0
      %860 = vmatmul.mubr.f32.gmra.mrb[0].mxu0 %v655
      %v861 = vpop.f32.mrb[0].mxu0
      %v862 = vadd.f32 %v538, %v861
      %v863 = vpop.f32.mrb[0].mxu0
      %864 = vmatprep.mubr.f32.mxu0 0.0
      %865 = vmatmul.mubr.f32.gmra.mrb[0].mxu0 %v658
      %v866 = vpop.f32.mrb[0].mxu0
      %v867 = vadd.f32 %v543, %v866
      %v868 = vpop.f32.mrb[0].mxu0
      %869 = vmatprep.mubr.f32.mxu0 0.0
      %870 = vmatmul.mubr.f32.gmra.mrb[0].mxu0 %v661
      %v871 = vpop.f32.mrb[0].mxu0
      %v872 = vadd.f32 %v548, %v871
      %v873 = vpop.f32.mrb[0].mxu0
      %874 = vmatprep.mubr.f32.mxu0 0.0
      %875 = vmatmul.mubr.f32.gmra.mrb[0].mxu0 %v664
      %v876 = vpop.f32.mrb[0].mxu0
      %v877 = vadd.f32 %v553, %v876
      %v878 = vpop.f32.mrb[0].mxu0
      %879 = vmatprep.mubr.f32.mxu0 0.0
      %880 = vmatmul.mubr.f32.gmra.mrb[0].mxu0 %v667
      %v881 = vpop.f32.mrb[0].mxu0
      %v882 = vadd.f32 %v558, %v881
      %v883 = vpop.f32.mrb[0].mxu0
      %884 = vmatprep.mubr.f32.mxu0 0.0
      %885 = vmatmul.mubr.f32.gmra.mrb[0].mxu0 %v670
      %v886 = vpop.f32.mrb[0].mxu0
      %v887 = vadd.f32 %v563, %v886
      %v888 = vpop.f32.mrb[0].mxu0
      %889 = vmatprep.mubr.f32.mxu0 0.0
      %890 = vmatmul.mubr.f32.gmra.mrb[0].mxu0 %v673
      %v891 = vpop.f32.mrb[0].mxu0
      %v892 = vadd.f32 %v568, %v891
      %v893 = vpop.f32.mrb[0].mxu0
      %894 = vmatprep.mubr.f32.mxu0 0.0
      %895 = vmatmul.mubr.f32.gmra.mrb[0].mxu0 %v676
      %v896 = vpop.f32.mrb[0].mxu0
      %v897 = vadd.f32 %v573, %v896
      %v898 = vpop.f32.mrb[0].mxu0
      %899 = vmatprep.mubr.f32.mxu0 0.0
      %900 = vmatmul.mubr.f32.gmra.mrb[0].mxu0 %v679
      %v901 = vpop.f32.mrb[0].mxu0
      %v902 = vadd.f32 %v578, %v901
      %v903 = vpop.f32.mrb[0].mxu0
      %904 = vmatprep.mubr.f32.mxu0 0.0
      %905 = vmatmul.mubr.f32.gmra.mrb[0].mxu0 %v682
      %v906 = vpop.f32.mrb[0].mxu0
      %v907 = vadd.f32 %v583, %v906
      %v908 = vpop.f32.mrb[0].mxu0
      %909 = vmatprep.mubr.f32.mxu0 0.0
      %910 = vmatmul.mubr.f32.gmra.mrb[0].mxu0 %v685
      %v911 = vpop.f32.mrb[0].mxu0
      %v912 = vadd.f32 %v588, %v911
      %v913 = vpop.f32.mrb[0].mxu0
      %914 = vdwg.mxu0
      %v915 = vld [vmem:[%s192 + $0x2] sm:$0xff]
      %v916 = vld [vmem:[%s192 + $0xa] sm:$0xff]
      %v917 = vld [vmem:[%s192 + $0x1a] sm:$0xff]
      %v918 = vld [vmem:[%s192 + $0x22] sm:$0xff]
      %v919 = vld [vmem:[%s192 + $0x32] sm:$0xff]
      %v920 = vld [vmem:[%s192 + $0x3a] sm:$0xff]
      %v921 = vld [vmem:[%s192 + $0x4a] sm:$0xff]
      %v922 = vld [vmem:[%s192 + $0x52] sm:$0xff]
      %v923 = vld [vmem:[%s192 + $0x62] sm:$0xff]
      %v924 = vld [vmem:[%s192 + $0x6a] sm:$0xff]
      %v925 = vld [vmem:[%s192 + $0x7a] sm:$0xff]
      %v926 = vld [vmem:[%s192 + $0x82] sm:$0xff]
      %v927 = vld [vmem:[%s192 + $0x92] sm:$0xff]
      %v928 = vld [vmem:[%s192 + $0x9a] sm:$0xff]
      %v929 = vld [vmem:[%s192 + $0xaa] sm:$0xff]
      %v930 = vld [vmem:[%s192 + $0xb2] sm:$0xff]
      %v931 = vld [vmem:[%s192 + $0xc2] sm:$0xff]
      %v932 = vld [vmem:[%s192 + $0xca] sm:$0xff]
      %v933 = vld [vmem:[%s192 + $0xda] sm:$0xff]
      %v934 = vld [vmem:[%s192 + $0xe2] sm:$0xff]
      %v935 = vld [vmem:[%s192 + $0xf2] sm:$0xff]
      %v936 = vld [vmem:[%s192 + $0xfa] sm:$0xff]
      %v937 = vld [vmem:[%s192 + $0x10a] sm:$0xff]
      %v938 = vld [vmem:[%s192 + $0x112] sm:$0xff]
      %v939 = vld [vmem:[%s192 + $0x122] sm:$0xff]
      %v940 = vld [vmem:[%s192 + $0x12a] sm:$0xff]
      %v941 = vld [vmem:[%s192 + $0x13a] sm:$0xff]
      %v942 = vld [vmem:[%s192 + $0x142] sm:$0xff]
      %v943 = vld [vmem:[%s192 + $0x152] sm:$0xff]
      %v944 = vld [vmem:[%s192 + $0x15a] sm:$0xff]
      %v945 = vld [vmem:[%s192 + $0x16a] sm:$0xff]
      %v946 = vld [vmem:[%s192 + $0x172] sm:$0xff]
      %s947 = scalar_lea.vmem %s1, 8
      %v948 = vld [vmem:[%s947] sm:$0xf]
      %v950 = vsel %vm265, %v915, 0
      %v953 = vsel %vm265, %v916, 0
      %v956 = vsel %vm265, %v917, 0
      %v959 = vsel %vm265, %v918, 0
      %v962 = vsel %vm265, %v919, 0
      %v965 = vsel %vm265, %v920, 0
      %v968 = vsel %vm265, %v921, 0
      %v971 = vsel %vm265, %v922, 0
      %v974 = vsel %vm265, %v923, 0
      %v977 = vsel %vm265, %v924, 0
      %v980 = vsel %vm265, %v925, 0
      %v983 = vsel %vm265, %v926, 0
      %v986 = vsel %vm265, %v927, 0
      %v989 = vsel %vm265, %v928, 0
      %v992 = vsel %vm265, %v929, 0
      %v995 = vsel %vm265, %v930, 0
      %v998 = vsel %vm265, %v931, 0
      %v1001 = vsel %vm265, %v932, 0
      %v1004 = vsel %vm265, %v933, 0
      %v1007 = vsel %vm265, %v934, 0
      %v1010 = vsel %vm265, %v935, 0
      %v1013 = vsel %vm265, %v936, 0
      %v1016 = vsel %vm265, %v937, 0
      %v1019 = vsel %vm265, %v938, 0
      %v1022 = vsel %vm265, %v939, 0
      %v1025 = vsel %vm265, %v940, 0
      %v1028 = vsel %vm265, %v941, 0
      %v1031 = vsel %vm265, %v942, 0
      %v1034 = vsel %vm265, %v943, 0
      %v1037 = vsel %vm265, %v944, 0
      %v1040 = vsel %vm265, %v945, 0
      %v1043 = vsel %vm265, %v946, 0
      %v1046 = vsel %vm362, %v948, 0
      %1048 = vmatprep.subr.mxu0 0.0
      %1049 = vmatpush1.msra.mxu0 %v1046
      %1050 = vmatprep.subr.mxu0 0.0
      %1051 = vmatpush1.msra.mxu0 0.0
      %1052 = vmatprep.subr.mxu0 0.0
      %1053 = vmatpush1.msra.mxu0 0.0
      %1054 = vmatprep.subr.mxu0 0.0
      %1055 = vmatpush1.msra.mxu0 0.0
      %1056 = vmatprep.subr.mxu0 0.0
      %1057 = vmatpush1.msra.mxu0 0.0
      %1058 = vmatprep.subr.mxu0 0.0
      %1059 = vmatpush1.msra.mxu0 0.0
      %1060 = vmatprep.subr.mxu0 0.0
      %1061 = vmatpush1.msra.mxu0 0.0
      %1062 = vmatprep.subr.mxu0 0.0
      %1063 = vmatpush1.msra.mxu0 0.0
      %1064 = vmatprep.subr.mxu0 0.0
      %1065 = vmatpush1.msra.mxu0 0.0
      %1066 = vmatprep.subr.mxu0 0.0
      %1067 = vmatpush1.msra.mxu0 0.0
      %1068 = vmatprep.subr.mxu0 0.0
      %1069 = vmatpush1.msra.mxu0 0.0
      %1070 = vmatprep.subr.mxu0 0.0
      %1071 = vmatpush1.msra.mxu0 0.0
      %1072 = vmatprep.subr.mxu0 0.0
      %1073 = vmatpush1.msra.mxu0 0.0
      %1074 = vmatprep.subr.mxu0 0.0
      %1075 = vmatpush1.msra.mxu0 0.0
      %1076 = vmatprep.subr.mxu0 0.0
      %1077 = vmatpush1.msra.mxu0 0.0
      %1078 = vmatprep.subr.mxu0 0.0
      %1079 = vmatpush1.msra.mxu0 0.0
      %1080 = vmatprep.subr.mxu0 0.0
      %1081 = vmatpush1.msra.mxu0 0.0
      %1082 = vmatprep.subr.mxu0 0.0
      %1083 = vmatpush1.msra.mxu0 0.0
      %1084 = vmatprep.subr.mxu0 0.0
      %1085 = vmatpush1.msra.mxu0 0.0
      %1086 = vmatprep.subr.mxu0 0.0
      %1087 = vmatpush1.msra.mxu0 0.0
      %1088 = vmatprep.subr.mxu0 0.0
      %1089 = vmatpush1.msra.mxu0 0.0
      %1090 = vmatprep.subr.mxu0 0.0
      %1091 = vmatpush1.msra.mxu0 0.0
      %1092 = vmatprep.subr.mxu0 0.0
      %1093 = vmatpush1.msra.mxu0 0.0
      %1094 = vmatprep.subr.mxu0 0.0
      %1095 = vmatpush1.msra.mxu0 0.0
      %1096 = vmatprep.subr.mxu0 0.0
      %1097 = vmatpush1.msra.mxu0 0.0
      %1098 = vmatprep.subr.mxu0 0.0
      %1099 = vmatpush1.msra.mxu0 0.0
      %1100 = vmatprep.subr.mxu0 0.0
      %1101 = vmatpush1.msra.mxu0 0.0
      %1102 = vmatprep.subr.mxu0 0.0
      %1103 = vmatpush1.msra.mxu0 0.0
      %1104 = vmatprep.subr.mxu0 0.0
      %1105 = vmatpush1.msra.mxu0 0.0
      %1106 = vmatprep.subr.mxu0 0.0
      %1107 = vmatpush1.msra.mxu0 0.0
      %1108 = vmatprep.subr.mxu0 0.0
      %1109 = vmatpush1.msra.mxu0 0.0
      %1110 = vmatprep.subr.mxu0 0.0
      %1111 = vmatpush1.msra.mxu0 0.0
      %1112 = vmatprep.mubr.f32.mxu0 0.0
      %1113 = vmatmul.mubr.f32.gmra.mrb[0].mxu0 %v950
      %v1114 = vpop.f32.mrb[0].mxu0
      %v1115 = vadd.f32 0.0, %v1114
      %v1116 = vpop.f32.mrb[0].mxu0
      %1117 = vmatprep.mubr.f32.mxu0 0.0
      %1118 = vmatmul.mubr.f32.gmra.mrb[0].mxu0 %v953
      %v1119 = vpop.f32.mrb[0].mxu0
      %v1120 = vadd.f32 0.0, %v1119
      %v1121 = vpop.f32.mrb[0].mxu0
      %1122 = vmatprep.mubr.f32.mxu0 0.0
      %1123 = vmatmul.mubr.f32.gmra.mrb[0].mxu0 %v956
      %v1124 = vpop.f32.mrb[0].mxu0
      %v1125 = vadd.f32 0.0, %v1124
      %v1126 = vpop.f32.mrb[0].mxu0
      %1127 = vmatprep.mubr.f32.mxu0 0.0
      %1128 = vmatmul.mubr.f32.gmra.mrb[0].mxu0 %v959
      %v1129 = vpop.f32.mrb[0].mxu0
      %v1130 = vadd.f32 0.0, %v1129
      %v1131 = vpop.f32.mrb[0].mxu0
      %1132 = vmatprep.mubr.f32.mxu0 0.0
      %1133 = vmatmul.mubr.f32.gmra.mrb[0].mxu0 %v962
      %v1134 = vpop.f32.mrb[0].mxu0
      %v1135 = vadd.f32 0.0, %v1134
      %v1136 = vpop.f32.mrb[0].mxu0
      %1137 = vmatprep.mubr.f32.mxu0 0.0
      %1138 = vmatmul.mubr.f32.gmra.mrb[0].mxu0 %v965
      %v1139 = vpop.f32.mrb[0].mxu0
      %v1140 = vadd.f32 0.0, %v1139
      %v1141 = vpop.f32.mrb[0].mxu0
      %1142 = vmatprep.mubr.f32.mxu0 0.0
      %1143 = vmatmul.mubr.f32.gmra.mrb[0].mxu0 %v968
      %v1144 = vpop.f32.mrb[0].mxu0
      %v1145 = vadd.f32 0.0, %v1144
      %v1146 = vpop.f32.mrb[0].mxu0
      %1147 = vmatprep.mubr.f32.mxu0 0.0
      %1148 = vmatmul.mubr.f32.gmra.mrb[0].mxu0 %v971
      %v1149 = vpop.f32.mrb[0].mxu0
      %v1150 = vadd.f32 0.0, %v1149
      %v1151 = vpop.f32.mrb[0].mxu0
      %1152 = vmatprep.mubr.f32.mxu0 0.0
      %1153 = vmatmul.mubr.f32.gmra.mrb[0].mxu0 %v974
      %v1154 = vpop.f32.mrb[0].mxu0
      %v1155 = vadd.f32 0.0, %v1154
      %v1156 = vpop.f32.mrb[0].mxu0
      %1157 = vmatprep.mubr.f32.mxu0 0.0
      %1158 = vmatmul.mubr.f32.gmra.mrb[0].mxu0 %v977
      %v1159 = vpop.f32.mrb[0].mxu0
      %v1160 = vadd.f32 0.0, %v1159
      %v1161 = vpop.f32.mrb[0].mxu0
      %1162 = vmatprep.mubr.f32.mxu0 0.0
      %1163 = vmatmul.mubr.f32.gmra.mrb[0].mxu0 %v980
      %v1164 = vpop.f32.mrb[0].mxu0
      %v1165 = vadd.f32 0.0, %v1164
      %v1166 = vpop.f32.mrb[0].mxu0
      %1167 = vmatprep.mubr.f32.mxu0 0.0
      %1168 = vmatmul.mubr.f32.gmra.mrb[0].mxu0 %v983
      %v1169 = vpop.f32.mrb[0].mxu0
      %v1170 = vadd.f32 0.0, %v1169
      %v1171 = vpop.f32.mrb[0].mxu0
      %1172 = vmatprep.mubr.f32.mxu0 0.0
      %1173 = vmatmul.mubr.f32.gmra.mrb[0].mxu0 %v986
      %v1174 = vpop.f32.mrb[0].mxu0
      %v1175 = vadd.f32 0.0, %v1174
      %v1176 = vpop.f32.mrb[0].mxu0
      %1177 = vmatprep.mubr.f32.mxu0 0.0
      %1178 = vmatmul.mubr.f32.gmra.mrb[0].mxu0 %v989
      %v1179 = vpop.f32.mrb[0].mxu0
      %v1180 = vadd.f32 0.0, %v1179
      %v1181 = vpop.f32.mrb[0].mxu0
      %1182 = vmatprep.mubr.f32.mxu0 0.0
      %1183 = vmatmul.mubr.f32.gmra.mrb[0].mxu0 %v992
      %v1184 = vpop.f32.mrb[0].mxu0
      %v1185 = vadd.f32 0.0, %v1184
      %v1186 = vpop.f32.mrb[0].mxu0
      %1187 = vmatprep.mubr.f32.mxu0 0.0
      %1188 = vmatmul.mubr.f32.gmra.mrb[0].mxu0 %v995
      %v1189 = vpop.f32.mrb[0].mxu0
      %v1190 = vadd.f32 0.0, %v1189
      %v1191 = vpop.f32.mrb[0].mxu0
      %1192 = vmatprep.mubr.f32.mxu0 0.0
      %1193 = vmatmul.mubr.f32.gmra.mrb[0].mxu0 %v998
      %v1194 = vpop.f32.mrb[0].mxu0
      %v1195 = vadd.f32 0.0, %v1194
      %v1196 = vpop.f32.mrb[0].mxu0
      %1197 = vmatprep.mubr.f32.mxu0 0.0
      %1198 = vmatmul.mubr.f32.gmra.mrb[0].mxu0 %v1001
      %v1199 = vpop.f32.mrb[0].mxu0
      %v1200 = vadd.f32 0.0, %v1199
      %v1201 = vpop.f32.mrb[0].mxu0
      %1202 = vmatprep.mubr.f32.mxu0 0.0
      %1203 = vmatmul.mubr.f32.gmra.mrb[0].mxu0 %v1004
      %v1204 = vpop.f32.mrb[0].mxu0
      %v1205 = vadd.f32 0.0, %v1204
      %v1206 = vpop.f32.mrb[0].mxu0
      %1207 = vmatprep.mubr.f32.mxu0 0.0
      %1208 = vmatmul.mubr.f32.gmra.mrb[0].mxu0 %v1007
      %v1209 = vpop.f32.mrb[0].mxu0
      %v1210 = vadd.f32 0.0, %v1209
      %v1211 = vpop.f32.mrb[0].mxu0
      %1212 = vmatprep.mubr.f32.mxu0 0.0
      %1213 = vmatmul.mubr.f32.gmra.mrb[0].mxu0 %v1010
      %v1214 = vpop.f32.mrb[0].mxu0
      %v1215 = vadd.f32 0.0, %v1214
      %v1216 = vpop.f32.mrb[0].mxu0
      %1217 = vmatprep.mubr.f32.mxu0 0.0
      %1218 = vmatmul.mubr.f32.gmra.mrb[0].mxu0 %v1013
      %v1219 = vpop.f32.mrb[0].mxu0
      %v1220 = vadd.f32 0.0, %v1219
      %v1221 = vpop.f32.mrb[0].mxu0
      %1222 = vmatprep.mubr.f32.mxu0 0.0
      %1223 = vmatmul.mubr.f32.gmra.mrb[0].mxu0 %v1016
      %v1224 = vpop.f32.mrb[0].mxu0
      %v1225 = vadd.f32 0.0, %v1224
      %v1226 = vpop.f32.mrb[0].mxu0
      %1227 = vmatprep.mubr.f32.mxu0 0.0
      %1228 = vmatmul.mubr.f32.gmra.mrb[0].mxu0 %v1019
      %v1229 = vpop.f32.mrb[0].mxu0
      %v1230 = vadd.f32 0.0, %v1229
      %v1231 = vpop.f32.mrb[0].mxu0
      %1232 = vmatprep.mubr.f32.mxu0 0.0
      %1233 = vmatmul.mubr.f32.gmra.mrb[0].mxu0 %v1022
      %v1234 = vpop.f32.mrb[0].mxu0
      %v1235 = vadd.f32 0.0, %v1234
      %v1236 = vpop.f32.mrb[0].mxu0
      %1237 = vmatprep.mubr.f32.mxu0 0.0
      %1238 = vmatmul.mubr.f32.gmra.mrb[0].mxu0 %v1025
      %v1239 = vpop.f32.mrb[0].mxu0
      %v1240 = vadd.f32 0.0, %v1239
      %v1241 = vpop.f32.mrb[0].mxu0
      %1242 = vmatprep.mubr.f32.mxu0 0.0
      %1243 = vmatmul.mubr.f32.gmra.mrb[0].mxu0 %v1028
      %v1244 = vpop.f32.mrb[0].mxu0
      %v1245 = vadd.f32 0.0, %v1244
      %v1246 = vpop.f32.mrb[0].mxu0
      %1247 = vmatprep.mubr.f32.mxu0 0.0
      %1248 = vmatmul.mubr.f32.gmra.mrb[0].mxu0 %v1031
      %v1249 = vpop.f32.mrb[0].mxu0
      %v1250 = vadd.f32 0.0, %v1249
      %v1251 = vpop.f32.mrb[0].mxu0
      %1252 = vmatprep.mubr.f32.mxu0 0.0
      %1253 = vmatmul.mubr.f32.gmra.mrb[0].mxu0 %v1034
      %v1254 = vpop.f32.mrb[0].mxu0
      %v1255 = vadd.f32 0.0, %v1254
      %v1256 = vpop.f32.mrb[0].mxu0
      %1257 = vmatprep.mubr.f32.mxu0 0.0
      %1258 = vmatmul.mubr.f32.gmra.mrb[0].mxu0 %v1037
      %v1259 = vpop.f32.mrb[0].mxu0
      %v1260 = vadd.f32 0.0, %v1259
      %v1261 = vpop.f32.mrb[0].mxu0
      %1262 = vmatprep.mubr.f32.mxu0 0.0
      %1263 = vmatmul.mubr.f32.gmra.mrb[0].mxu0 %v1040
      %v1264 = vpop.f32.mrb[0].mxu0
      %v1265 = vadd.f32 0.0, %v1264
      %v1266 = vpop.f32.mrb[0].mxu0
      %1267 = vmatprep.mubr.f32.mxu0 0.0
      %1268 = vmatmul.mubr.f32.gmra.mrb[0].mxu0 %v1043
      %v1269 = vpop.f32.mrb[0].mxu0
      %v1270 = vadd.f32 0.0, %v1269
      %v1271 = vpop.f32.mrb[0].mxu0
      %1272 = vdwg.mxu0
      %v1273 = vadd.f32 %v757, %v1115
      %v1274 = vadd.f32 %v762, %v1120
      %v1275 = vadd.f32 %v767, %v1125
      %v1276 = vadd.f32 %v772, %v1130
      %v1277 = vadd.f32 %v777, %v1135
      %v1278 = vadd.f32 %v782, %v1140
      %v1279 = vadd.f32 %v787, %v1145
      %v1280 = vadd.f32 %v792, %v1150
      %v1281 = vadd.f32 %v797, %v1155
      %v1282 = vadd.f32 %v802, %v1160
      %v1283 = vadd.f32 %v807, %v1165
      %v1284 = vadd.f32 %v812, %v1170
      %v1285 = vadd.f32 %v817, %v1175
      %v1286 = vadd.f32 %v822, %v1180
      %v1287 = vadd.f32 %v827, %v1185
      %v1288 = vadd.f32 %v832, %v1190
      %v1289 = vadd.f32 %v837, %v1195
      %v1290 = vadd.f32 %v842, %v1200
      %v1291 = vadd.f32 %v847, %v1205
      %v1292 = vadd.f32 %v852, %v1210
      %v1293 = vadd.f32 %v857, %v1215
      %v1294 = vadd.f32 %v862, %v1220
      %v1295 = vadd.f32 %v867, %v1225
      %v1296 = vadd.f32 %v872, %v1230
      %v1297 = vadd.f32 %v877, %v1235
      %v1298 = vadd.f32 %v882, %v1240
      %v1299 = vadd.f32 %v887, %v1245
      %v1300 = vadd.f32 %v892, %v1250
      %v1301 = vadd.f32 %v897, %v1255
      %v1302 = vadd.f32 %v902, %v1260
      %v1303 = vadd.f32 %v907, %v1265
      %v1304 = vadd.f32 %v912, %v1270
      %s1305 = scalar_lea.vmem %s192, 24
      %v1306 = vld [vmem:[%s1305] sm:$0xff]
      %v1307 = vld [vmem:[%s1305 + $0x8] sm:$0xff]
      %v1308 = vld [vmem:[%s1305 + $0x18] sm:$0xff]
      %v1309 = vld [vmem:[%s1305 + $0x20] sm:$0xff]
      %v1310 = vld [vmem:[%s1305 + $0x30] sm:$0xff]
      %v1311 = vld [vmem:[%s1305 + $0x38] sm:$0xff]
      %v1312 = vld [vmem:[%s1305 + $0x48] sm:$0xff]
      %v1313 = vld [vmem:[%s1305 + $0x50] sm:$0xff]
      %v1314 = vld [vmem:[%s1305 + $0x60] sm:$0xff]
      %v1315 = vld [vmem:[%s1305 + $0x68] sm:$0xff]
      %v1316 = vld [vmem:[%s1305 + $0x78] sm:$0xff]
      %v1317 = vld [vmem:[%s1305 + $0x80] sm:$0xff]
      %v1318 = vld [vmem:[%s1305 + $0x90] sm:$0xff]
      %v1319 = vld [vmem:[%s1305 + $0x98] sm:$0xff]
      %v1320 = vld [vmem:[%s1305 + $0xa8] sm:$0xff]
      %v1321 = vld [vmem:[%s1305 + $0xb0] sm:$0xff]
      %v1322 = vld [vmem:[%s1305 + $0xc0] sm:$0xff]
      %v1323 = vld [vmem:[%s1305 + $0xc8] sm:$0xff]
      %v1324 = vld [vmem:[%s1305 + $0xd8] sm:$0xff]
      %v1325 = vld [vmem:[%s1305 + $0xe0] sm:$0xff]
      %v1326 = vld [vmem:[%s1305 + $0xf0] sm:$0xff]
      %v1327 = vld [vmem:[%s1305 + $0xf8] sm:$0xff]
      %v1328 = vld [vmem:[%s1305 + $0x108] sm:$0xff]
      %v1329 = vld [vmem:[%s1305 + $0x110] sm:$0xff]
      %v1330 = vld [vmem:[%s1305 + $0x120] sm:$0xff]
      %v1331 = vld [vmem:[%s1305 + $0x128] sm:$0xff]
      %v1332 = vld [vmem:[%s1305 + $0x138] sm:$0xff]
      %v1333 = vld [vmem:[%s1305 + $0x140] sm:$0xff]
      %v1334 = vld [vmem:[%s1305 + $0x150] sm:$0xff]
      %v1335 = vld [vmem:[%s1305 + $0x158] sm:$0xff]
      %v1336 = vld [vmem:[%s1305 + $0x168] sm:$0xff]
      %v1337 = vld [vmem:[%s1305 + $0x170] sm:$0xff]
      %s1338 = scalar_lea.vmem %s1, 12
      %v1339 = vld [vmem:[%s1338] sm:$0xf]
      %v1341 = vsel %vm265, %v1306, 0
      %v1344 = vsel %vm265, %v1307, 0
      %v1347 = vsel %vm265, %v1308, 0
      %v1350 = vsel %vm265, %v1309, 0
      %v1353 = vsel %vm265, %v1310, 0
      %v1356 = vsel %vm265, %v1311, 0
      %v1359 = vsel %vm265, %v1312, 0
      %v1362 = vsel %vm265, %v1313, 0
      %v1365 = vsel %vm265, %v1314, 0
      %v1368 = vsel %vm265, %v1315, 0
      %v1371 = vsel %vm265, %v1316, 0
      %v1374 = vsel %vm265, %v1317, 0
      %v1377 = vsel %vm265, %v1318, 0
      %v1380 = vsel %vm265, %v1319, 0
      %v1383 = vsel %vm265, %v1320, 0
      %v1386 = vsel %vm265, %v1321, 0
      %v1389 = vsel %vm265, %v1322, 0
      %v1392 = vsel %vm265, %v1323, 0
      %v1395 = vsel %vm265, %v1324, 0
      %v1398 = vsel %vm265, %v1325, 0
      %v1401 = vsel %vm265, %v1326, 0
      %v1404 = vsel %vm265, %v1327, 0
      %v1407 = vsel %vm265, %v1328, 0
      %v1410 = vsel %vm265, %v1329, 0
      %v1413 = vsel %vm265, %v1330, 0
      %v1416 = vsel %vm265, %v1331, 0
      %v1419 = vsel %vm265, %v1332, 0
      %v1422 = vsel %vm265, %v1333, 0
      %v1425 = vsel %vm265, %v1334, 0
      %v1428 = vsel %vm265, %v1335, 0
      %v1431 = vsel %vm265, %v1336, 0
      %v1434 = vsel %vm265, %v1337, 0
      %v1437 = vsel %vm362, %v1339, 0
      %1439 = vmatprep.subr.mxu0 0.0
      %1440 = vmatpush1.msra.mxu0 %v1437
      %1441 = vmatprep.subr.mxu0 0.0
      %1442 = vmatpush1.msra.mxu0 0.0
      %1443 = vmatprep.subr.mxu0 0.0
      %1444 = vmatpush1.msra.mxu0 0.0
      %1445 = vmatprep.subr.mxu0 0.0
      %1446 = vmatpush1.msra.mxu0 0.0
      %1447 = vmatprep.subr.mxu0 0.0
      %1448 = vmatpush1.msra.mxu0 0.0
      %1449 = vmatprep.subr.mxu0 0.0
      %1450 = vmatpush1.msra.mxu0 0.0
      %1451 = vmatprep.subr.mxu0 0.0
      %1452 = vmatpush1.msra.mxu0 0.0
      %1453 = vmatprep.subr.mxu0 0.0
      %1454 = vmatpush1.msra.mxu0 0.0
      %1455 = vmatprep.subr.mxu0 0.0
      %1456 = vmatpush1.msra.mxu0 0.0
      %1457 = vmatprep.subr.mxu0 0.0
      %1458 = vmatpush1.msra.mxu0 0.0
      %1459 = vmatprep.subr.mxu0 0.0
      %1460 = vmatpush1.msra.mxu0 0.0
      %1461 = vmatprep.subr.mxu0 0.0
      %1462 = vmatpush1.msra.mxu0 0.0
      %1463 = vmatprep.subr.mxu0 0.0
      %1464 = vmatpush1.msra.mxu0 0.0
      %1465 = vmatprep.subr.mxu0 0.0
      %1466 = vmatpush1.msra.mxu0 0.0
      %1467 = vmatprep.subr.mxu0 0.0
      %1468 = vmatpush1.msra.mxu0 0.0
      %1469 = vmatprep.subr.mxu0 0.0
      %1470 = vmatpush1.msra.mxu0 0.0
      %1471 = vmatprep.subr.mxu0 0.0
      %1472 = vmatpush1.msra.mxu0 0.0
      %1473 = vmatprep.subr.mxu0 0.0
      %1474 = vmatpush1.msra.mxu0 0.0
      %1475 = vmatprep.subr.mxu0 0.0
      %1476 = vmatpush1.msra.mxu0 0.0
      %1477 = vmatprep.subr.mxu0 0.0
      %1478 = vmatpush1.msra.mxu0 0.0
      %1479 = vmatprep.subr.mxu0 0.0
      %1480 = vmatpush1.msra.mxu0 0.0
      %1481 = vmatprep.subr.mxu0 0.0
      %1482 = vmatpush1.msra.mxu0 0.0
      %1483 = vmatprep.subr.mxu0 0.0
      %1484 = vmatpush1.msra.mxu0 0.0
      %1485 = vmatprep.subr.mxu0 0.0
      %1486 = vmatpush1.msra.mxu0 0.0
      %1487 = vmatprep.subr.mxu0 0.0
      %1488 = vmatpush1.msra.mxu0 0.0
      %1489 = vmatprep.subr.mxu0 0.0
      %1490 = vmatpush1.msra.mxu0 0.0
      %1491 = vmatprep.subr.mxu0 0.0
      %1492 = vmatpush1.msra.mxu0 0.0
      %1493 = vmatprep.subr.mxu0 0.0
      %1494 = vmatpush1.msra.mxu0 0.0
      %1495 = vmatprep.subr.mxu0 0.0
      %1496 = vmatpush1.msra.mxu0 0.0
      %1497 = vmatprep.subr.mxu0 0.0
      %1498 = vmatpush1.msra.mxu0 0.0
      %1499 = vmatprep.subr.mxu0 0.0
      %1500 = vmatpush1.msra.mxu0 0.0
      %1501 = vmatprep.subr.mxu0 0.0
      %1502 = vmatpush1.msra.mxu0 0.0
      %1503 = vmatprep.mubr.f32.mxu0 0.0
      %1504 = vmatmul.mubr.f32.gmra.mrb[0].mxu0 %v1341
      %v1505 = vpop.f32.mrb[0].mxu0
      %v1506 = vadd.f32 0.0, %v1505
      %v1507 = vpop.f32.mrb[0].mxu0
      %1508 = vmatprep.mubr.f32.mxu0 0.0
      %1509 = vmatmul.mubr.f32.gmra.mrb[0].mxu0 %v1344
      %v1510 = vpop.f32.mrb[0].mxu0
      %v1511 = vadd.f32 0.0, %v1510
      %v1512 = vpop.f32.mrb[0].mxu0
      %1513 = vmatprep.mubr.f32.mxu0 0.0
      %1514 = vmatmul.mubr.f32.gmra.mrb[0].mxu0 %v1347
      %v1515 = vpop.f32.mrb[0].mxu0
      %v1516 = vadd.f32 0.0, %v1515
      %v1517 = vpop.f32.mrb[0].mxu0
      %1518 = vmatprep.mubr.f32.mxu0 0.0
      %1519 = vmatmul.mubr.f32.gmra.mrb[0].mxu0 %v1350
      %v1520 = vpop.f32.mrb[0].mxu0
      %v1521 = vadd.f32 0.0, %v1520
      %v1522 = vpop.f32.mrb[0].mxu0
      %1523 = vmatprep.mubr.f32.mxu0 0.0
      %1524 = vmatmul.mubr.f32.gmra.mrb[0].mxu0 %v1353
      %v1525 = vpop.f32.mrb[0].mxu0
      %v1526 = vadd.f32 0.0, %v1525
      %v1527 = vpop.f32.mrb[0].mxu0
      %1528 = vmatprep.mubr.f32.mxu0 0.0
      %1529 = vmatmul.mubr.f32.gmra.mrb[0].mxu0 %v1356
      %v1530 = vpop.f32.mrb[0].mxu0
      %v1531 = vadd.f32 0.0, %v1530
      %v1532 = vpop.f32.mrb[0].mxu0
      %1533 = vmatprep.mubr.f32.mxu0 0.0
      %1534 = vmatmul.mubr.f32.gmra.mrb[0].mxu0 %v1359
      %v1535 = vpop.f32.mrb[0].mxu0
      %v1536 = vadd.f32 0.0, %v1535
      %v1537 = vpop.f32.mrb[0].mxu0
      %1538 = vmatprep.mubr.f32.mxu0 0.0
      %1539 = vmatmul.mubr.f32.gmra.mrb[0].mxu0 %v1362
      %v1540 = vpop.f32.mrb[0].mxu0
      %v1541 = vadd.f32 0.0, %v1540
      %v1542 = vpop.f32.mrb[0].mxu0
      %1543 = vmatprep.mubr.f32.mxu0 0.0
      %1544 = vmatmul.mubr.f32.gmra.mrb[0].mxu0 %v1365
      %v1545 = vpop.f32.mrb[0].mxu0
      %v1546 = vadd.f32 0.0, %v1545
      %v1547 = vpop.f32.mrb[0].mxu0
      %1548 = vmatprep.mubr.f32.mxu0 0.0
      %1549 = vmatmul.mubr.f32.gmra.mrb[0].mxu0 %v1368
      %v1550 = vpop.f32.mrb[0].mxu0
      %v1551 = vadd.f32 0.0, %v1550
      %v1552 = vpop.f32.mrb[0].mxu0
      %1553 = vmatprep.mubr.f32.mxu0 0.0
      %1554 = vmatmul.mubr.f32.gmra.mrb[0].mxu0 %v1371
      %v1555 = vpop.f32.mrb[0].mxu0
      %v1556 = vadd.f32 0.0, %v1555
      %v1557 = vpop.f32.mrb[0].mxu0
      %1558 = vmatprep.mubr.f32.mxu0 0.0
      %1559 = vmatmul.mubr.f32.gmra.mrb[0].mxu0 %v1374
      %v1560 = vpop.f32.mrb[0].mxu0
      %v1561 = vadd.f32 0.0, %v1560
      %v1562 = vpop.f32.mrb[0].mxu0
      %1563 = vmatprep.mubr.f32.mxu0 0.0
      %1564 = vmatmul.mubr.f32.gmra.mrb[0].mxu0 %v1377
      %v1565 = vpop.f32.mrb[0].mxu0
      %v1566 = vadd.f32 0.0, %v1565
      %v1567 = vpop.f32.mrb[0].mxu0
      %1568 = vmatprep.mubr.f32.mxu0 0.0
      %1569 = vmatmul.mubr.f32.gmra.mrb[0].mxu0 %v1380
      %v1570 = vpop.f32.mrb[0].mxu0
      %v1571 = vadd.f32 0.0, %v1570
      %v1572 = vpop.f32.mrb[0].mxu0
      %1573 = vmatprep.mubr.f32.mxu0 0.0
      %1574 = vmatmul.mubr.f32.gmra.mrb[0].mxu0 %v1383
      %v1575 = vpop.f32.mrb[0].mxu0
      %v1576 = vadd.f32 0.0, %v1575
      %v1577 = vpop.f32.mrb[0].mxu0
      %1578 = vmatprep.mubr.f32.mxu0 0.0
      %1579 = vmatmul.mubr.f32.gmra.mrb[0].mxu0 %v1386
      %v1580 = vpop.f32.mrb[0].mxu0
      %v1581 = vadd.f32 0.0, %v1580
      %v1582 = vpop.f32.mrb[0].mxu0
      %1583 = vmatprep.mubr.f32.mxu0 0.0
      %1584 = vmatmul.mubr.f32.gmra.mrb[0].mxu0 %v1389
      %v1585 = vpop.f32.mrb[0].mxu0
      %v1586 = vadd.f32 0.0, %v1585
      %v1587 = vpop.f32.mrb[0].mxu0
      %1588 = vmatprep.mubr.f32.mxu0 0.0
      %1589 = vmatmul.mubr.f32.gmra.mrb[0].mxu0 %v1392
      %v1590 = vpop.f32.mrb[0].mxu0
      %v1591 = vadd.f32 0.0, %v1590
      %v1592 = vpop.f32.mrb[0].mxu0
      %1593 = vmatprep.mubr.f32.mxu0 0.0
      %1594 = vmatmul.mubr.f32.gmra.mrb[0].mxu0 %v1395
      %v1595 = vpop.f32.mrb[0].mxu0
      %v1596 = vadd.f32 0.0, %v1595
      %v1597 = vpop.f32.mrb[0].mxu0
      %1598 = vmatprep.mubr.f32.mxu0 0.0
      %1599 = vmatmul.mubr.f32.gmra.mrb[0].mxu0 %v1398
      %v1600 = vpop.f32.mrb[0].mxu0
      %v1601 = vadd.f32 0.0, %v1600
      %v1602 = vpop.f32.mrb[0].mxu0
      %1603 = vmatprep.mubr.f32.mxu0 0.0
      %1604 = vmatmul.mubr.f32.gmra.mrb[0].mxu0 %v1401
      %v1605 = vpop.f32.mrb[0].mxu0
      %v1606 = vadd.f32 0.0, %v1605
      %v1607 = vpop.f32.mrb[0].mxu0
      %1608 = vmatprep.mubr.f32.mxu0 0.0
      %1609 = vmatmul.mubr.f32.gmra.mrb[0].mxu0 %v1404
      %v1610 = vpop.f32.mrb[0].mxu0
      %v1611 = vadd.f32 0.0, %v1610
      %v1612 = vpop.f32.mrb[0].mxu0
      %1613 = vmatprep.mubr.f32.mxu0 0.0
      %1614 = vmatmul.mubr.f32.gmra.mrb[0].mxu0 %v1407
      %v1615 = vpop.f32.mrb[0].mxu0
      %v1616 = vadd.f32 0.0, %v1615
      %v1617 = vpop.f32.mrb[0].mxu0
      %1618 = vmatprep.mubr.f32.mxu0 0.0
      %1619 = vmatmul.mubr.f32.gmra.mrb[0].mxu0 %v1410
      %v1620 = vpop.f32.mrb[0].mxu0
      %v1621 = vadd.f32 0.0, %v1620
      %v1622 = vpop.f32.mrb[0].mxu0
      %1623 = vmatprep.mubr.f32.mxu0 0.0
      %1624 = vmatmul.mubr.f32.gmra.mrb[0].mxu0 %v1413
      %v1625 = vpop.f32.mrb[0].mxu0
      %v1626 = vadd.f32 0.0, %v1625
      %v1627 = vpop.f32.mrb[0].mxu0
      %1628 = vmatprep.mubr.f32.mxu0 0.0
      %1629 = vmatmul.mubr.f32.gmra.mrb[0].mxu0 %v1416
      %v1630 = vpop.f32.mrb[0].mxu0
      %v1631 = vadd.f32 0.0, %v1630
      %v1632 = vpop.f32.mrb[0].mxu0
      %1633 = vmatprep.mubr.f32.mxu0 0.0
      %1634 = vmatmul.mubr.f32.gmra.mrb[0].mxu0 %v1419
      %v1635 = vpop.f32.mrb[0].mxu0
      %v1636 = vadd.f32 0.0, %v1635
      %v1637 = vpop.f32.mrb[0].mxu0
      %1638 = vmatprep.mubr.f32.mxu0 0.0
      %1639 = vmatmul.mubr.f32.gmra.mrb[0].mxu0 %v1422
      %v1640 = vpop.f32.mrb[0].mxu0
      %v1641 = vadd.f32 0.0, %v1640
      %v1642 = vpop.f32.mrb[0].mxu0
      %1643 = vmatprep.mubr.f32.mxu0 0.0
      %1644 = vmatmul.mubr.f32.gmra.mrb[0].mxu0 %v1425
      %v1645 = vpop.f32.mrb[0].mxu0
      %v1646 = vadd.f32 0.0, %v1645
      %v1647 = vpop.f32.mrb[0].mxu0
      %1648 = vmatprep.mubr.f32.mxu0 0.0
      %1649 = vmatmul.mubr.f32.gmra.mrb[0].mxu0 %v1428
      %v1650 = vpop.f32.mrb[0].mxu0
      %v1651 = vadd.f32 0.0, %v1650
      %v1652 = vpop.f32.mrb[0].mxu0
      %1653 = vmatprep.mubr.f32.mxu0 0.0
      %1654 = vmatmul.mubr.f32.gmra.mrb[0].mxu0 %v1431
      %v1655 = vpop.f32.mrb[0].mxu0
      %v1656 = vadd.f32 0.0, %v1655
      %v1657 = vpop.f32.mrb[0].mxu0
      %1658 = vmatprep.mubr.f32.mxu0 0.0
      %1659 = vmatmul.mubr.f32.gmra.mrb[0].mxu0 %v1434
      %v1660 = vpop.f32.mrb[0].mxu0
      %v1661 = vadd.f32 0.0, %v1660
      %v1662 = vpop.f32.mrb[0].mxu0
      %1663 = vdwg.mxu0
      %v1664 = vadd.f32 %v1273, %v1506
      %v1665 = vadd.f32 %v1274, %v1511
      %v1666 = vadd.f32 %v1275, %v1516
      %v1667 = vadd.f32 %v1276, %v1521
      %v1668 = vadd.f32 %v1277, %v1526
      %v1669 = vadd.f32 %v1278, %v1531
      %v1670 = vadd.f32 %v1279, %v1536
      %v1671 = vadd.f32 %v1280, %v1541
      %v1672 = vadd.f32 %v1281, %v1546
      %v1673 = vadd.f32 %v1282, %v1551
      %v1674 = vadd.f32 %v1283, %v1556
      %v1675 = vadd.f32 %v1284, %v1561
      %v1676 = vadd.f32 %v1285, %v1566
      %v1677 = vadd.f32 %v1286, %v1571
      %v1678 = vadd.f32 %v1287, %v1576
      %v1679 = vadd.f32 %v1288, %v1581
      %v1680 = vadd.f32 %v1289, %v1586
      %v1681 = vadd.f32 %v1290, %v1591
      %v1682 = vadd.f32 %v1291, %v1596
      %v1683 = vadd.f32 %v1292, %v1601
      %v1684 = vadd.f32 %v1293, %v1606
      %v1685 = vadd.f32 %v1294, %v1611
      %v1686 = vadd.f32 %v1295, %v1616
      %v1687 = vadd.f32 %v1296, %v1621
      %v1688 = vadd.f32 %v1297, %v1626
      %v1689 = vadd.f32 %v1298, %v1631
      %v1690 = vadd.f32 %v1299, %v1636
      %v1691 = vadd.f32 %v1300, %v1641
      %v1692 = vadd.f32 %v1301, %v1646
      %v1693 = vadd.f32 %v1302, %v1651
      %v1694 = vadd.f32 %v1303, %v1656
      %v1695 = vadd.f32 %v1304, %v1661
      %v1696 = vld [vmem:[%s1305 + $0x1] sm:$0xff]
      %v1697 = vld [vmem:[%s1305 + $0x9] sm:$0xff]
      %v1698 = vld [vmem:[%s1305 + $0x19] sm:$0xff]
      %v1699 = vld [vmem:[%s1305 + $0x21] sm:$0xff]
      %v1700 = vld [vmem:[%s1305 + $0x31] sm:$0xff]
      %v1701 = vld [vmem:[%s1305 + $0x39] sm:$0xff]
      %v1702 = vld [vmem:[%s1305 + $0x49] sm:$0xff]
      %v1703 = vld [vmem:[%s1305 + $0x51] sm:$0xff]
      %v1704 = vld [vmem:[%s1305 + $0x61] sm:$0xff]
      %v1705 = vld [vmem:[%s1305 + $0x69] sm:$0xff]
      %v1706 = vld [vmem:[%s1305 + $0x79] sm:$0xff]
      %v1707 = vld [vmem:[%s1305 + $0x81] sm:$0xff]
      %v1708 = vld [vmem:[%s1305 + $0x91] sm:$0xff]
      %v1709 = vld [vmem:[%s1305 + $0x99] sm:$0xff]
      %v1710 = vld [vmem:[%s1305 + $0xa9] sm:$0xff]
      %v1711 = vld [vmem:[%s1305 + $0xb1] sm:$0xff]
      %v1712 = vld [vmem:[%s1305 + $0xc1] sm:$0xff]
      %v1713 = vld [vmem:[%s1305 + $0xc9] sm:$0xff]
      %v1714 = vld [vmem:[%s1305 + $0xd9] sm:$0xff]
      %v1715 = vld [vmem:[%s1305 + $0xe1] sm:$0xff]
      %v1716 = vld [vmem:[%s1305 + $0xf1] sm:$0xff]
      %v1717 = vld [vmem:[%s1305 + $0xf9] sm:$0xff]
      %v1718 = vld [vmem:[%s1305 + $0x109] sm:$0xff]
      %v1719 = vld [vmem:[%s1305 + $0x111] sm:$0xff]
      %v1720 = vld [vmem:[%s1305 + $0x121] sm:$0xff]
      %v1721 = vld [vmem:[%s1305 + $0x129] sm:$0xff]
      %v1722 = vld [vmem:[%s1305 + $0x139] sm:$0xff]
      %v1723 = vld [vmem:[%s1305 + $0x141] sm:$0xff]
      %v1724 = vld [vmem:[%s1305 + $0x151] sm:$0xff]
      %v1725 = vld [vmem:[%s1305 + $0x159] sm:$0xff]
      %v1726 = vld [vmem:[%s1305 + $0x169] sm:$0xff]
      %v1727 = vld [vmem:[%s1305 + $0x171] sm:$0xff]
      %s1728 = scalar_lea.vmem %s1, 16
      %v1729 = vld [vmem:[%s1728] sm:$0xf]
      %v1731 = vsel %vm265, %v1696, 0
      %v1734 = vsel %vm265, %v1697, 0
      %v1737 = vsel %vm265, %v1698, 0
      %v1740 = vsel %vm265, %v1699, 0
      %v1743 = vsel %vm265, %v1700, 0
      %v1746 = vsel %vm265, %v1701, 0
      %v1749 = vsel %vm265, %v1702, 0
      %v1752 = vsel %vm265, %v1703, 0
      %v1755 = vsel %vm265, %v1704, 0
      %v1758 = vsel %vm265, %v1705, 0
      %v1761 = vsel %vm265, %v1706, 0
      %v1764 = vsel %vm265, %v1707, 0
      %v1767 = vsel %vm265, %v1708, 0
      %v1770 = vsel %vm265, %v1709, 0
      %v1773 = vsel %vm265, %v1710, 0
      %v1776 = vsel %vm265, %v1711, 0
      %v1779 = vsel %vm265, %v1712, 0
      %v1782 = vsel %vm265, %v1713, 0
      %v1785 = vsel %vm265, %v1714, 0
      %v1788 = vsel %vm265, %v1715, 0
      %v1791 = vsel %vm265, %v1716, 0
      %v1794 = vsel %vm265, %v1717, 0
      %v1797 = vsel %vm265, %v1718, 0
      %v1800 = vsel %vm265, %v1719, 0
      %v1803 = vsel %vm265, %v1720, 0
      %v1806 = vsel %vm265, %v1721, 0
      %v1809 = vsel %vm265, %v1722, 0
      %v1812 = vsel %vm265, %v1723, 0
      %v1815 = vsel %vm265, %v1724, 0
      %v1818 = vsel %vm265, %v1725, 0
      %v1821 = vsel %vm265, %v1726, 0
      %v1824 = vsel %vm265, %v1727, 0
      %v1827 = vsel %vm362, %v1729, 0
      %1829 = vmatprep.subr.mxu0 0.0
      %1830 = vmatpush1.msra.mxu0 %v1827
      %1831 = vmatprep.subr.mxu0 0.0
      %1832 = vmatpush1.msra.mxu0 0.0
      %1833 = vmatprep.subr.mxu0 0.0
      %1834 = vmatpush1.msra.mxu0 0.0
      %1835 = vmatprep.subr.mxu0 0.0
      %1836 = vmatpush1.msra.mxu0 0.0
      %1837 = vmatprep.subr.mxu0 0.0
      %1838 = vmatpush1.msra.mxu0 0.0
      %1839 = vmatprep.subr.mxu0 0.0
      %1840 = vmatpush1.msra.mxu0 0.0
      %1841 = vmatprep.subr.mxu0 0.0
      %1842 = vmatpush1.msra.mxu0 0.0
      %1843 = vmatprep.subr.mxu0 0.0
      %1844 = vmatpush1.msra.mxu0 0.0
      %1845 = vmatprep.subr.mxu0 0.0
      %1846 = vmatpush1.msra.mxu0 0.0
      %1847 = vmatprep.subr.mxu0 0.0
      %1848 = vmatpush1.msra.mxu0 0.0
      %1849 = vmatprep.subr.mxu0 0.0
      %1850 = vmatpush1.msra.mxu0 0.0
      %1851 = vmatprep.subr.mxu0 0.0
      %1852 = vmatpush1.msra.mxu0 0.0
      %1853 = vmatprep.subr.mxu0 0.0
      %1854 = vmatpush1.msra.mxu0 0.0
      %1855 = vmatprep.subr.mxu0 0.0
      %1856 = vmatpush1.msra.mxu0 0.0
      %1857 = vmatprep.subr.mxu0 0.0
      %1858 = vmatpush1.msra.mxu0 0.0
      %1859 = vmatprep.subr.mxu0 0.0
      %1860 = vmatpush1.msra.mxu0 0.0
      %1861 = vmatprep.subr.mxu0 0.0
      %1862 = vmatpush1.msra.mxu0 0.0
      %1863 = vmatprep.subr.mxu0 0.0
      %1864 = vmatpush1.msra.mxu0 0.0
      %1865 = vmatprep.subr.mxu0 0.0
      %1866 = vmatpush1.msra.mxu0 0.0
      %1867 = vmatprep.subr.mxu0 0.0
      %1868 = vmatpush1.msra.mxu0 0.0
      %1869 = vmatprep.subr.mxu0 0.0
      %1870 = vmatpush1.msra.mxu0 0.0
      %1871 = vmatprep.subr.mxu0 0.0
      %1872 = vmatpush1.msra.mxu0 0.0
      %1873 = vmatprep.subr.mxu0 0.0
      %1874 = vmatpush1.msra.mxu0 0.0
      %1875 = vmatprep.subr.mxu0 0.0
      %1876 = vmatpush1.msra.mxu0 0.0
      %1877 = vmatprep.subr.mxu0 0.0
      %1878 = vmatpush1.msra.mxu0 0.0
      %1879 = vmatprep.subr.mxu0 0.0
      %1880 = vmatpush1.msra.mxu0 0.0
      %1881 = vmatprep.subr.mxu0 0.0
      %1882 = vmatpush1.msra.mxu0 0.0
      %1883 = vmatprep.subr.mxu0 0.0
      %1884 = vmatpush1.msra.mxu0 0.0
      %1885 = vmatprep.subr.mxu0 0.0
      %1886 = vmatpush1.msra.mxu0 0.0
      %1887 = vmatprep.subr.mxu0 0.0
      %1888 = vmatpush1.msra.mxu0 0.0
      %1889 = vmatprep.subr.mxu0 0.0
      %1890 = vmatpush1.msra.mxu0 0.0
      %1891 = vmatprep.subr.mxu0 0.0
      %1892 = vmatpush1.msra.mxu0 0.0
      %1893 = vmatprep.mubr.f32.mxu0 0.0
      %1894 = vmatmul.mubr.f32.gmra.mrb[0].mxu0 %v1731
      %v1895 = vpop.f32.mrb[0].mxu0
      %v1896 = vadd.f32 0.0, %v1895
      %v1897 = vpop.f32.mrb[0].mxu0
      %1898 = vmatprep.mubr.f32.mxu0 0.0
      %1899 = vmatmul.mubr.f32.gmra.mrb[0].mxu0 %v1734
      %v1900 = vpop.f32.mrb[0].mxu0
      %v1901 = vadd.f32 0.0, %v1900
      %v1902 = vpop.f32.mrb[0].mxu0
      %1903 = vmatprep.mubr.f32.mxu0 0.0
      %1904 = vmatmul.mubr.f32.gmra.mrb[0].mxu0 %v1737
      %v1905 = vpop.f32.mrb[0].mxu0
      %v1906 = vadd.f32 0.0, %v1905
      %v1907 = vpop.f32.mrb[0].mxu0
      %1908 = vmatprep.mubr.f32.mxu0 0.0
      %1909 = vmatmul.mubr.f32.gmra.mrb[0].mxu0 %v1740
      %v1910 = vpop.f32.mrb[0].mxu0
      %v1911 = vadd.f32 0.0, %v1910
      %v1912 = vpop.f32.mrb[0].mxu0
      %1913 = vmatprep.mubr.f32.mxu0 0.0
      %1914 = vmatmul.mubr.f32.gmra.mrb[0].mxu0 %v1743
      %v1915 = vpop.f32.mrb[0].mxu0
      %v1916 = vadd.f32 0.0, %v1915
      %v1917 = vpop.f32.mrb[0].mxu0
      %1918 = vmatprep.mubr.f32.mxu0 0.0
      %1919 = vmatmul.mubr.f32.gmra.mrb[0].mxu0 %v1746
      %v1920 = vpop.f32.mrb[0].mxu0
      %v1921 = vadd.f32 0.0, %v1920
      %v1922 = vpop.f32.mrb[0].mxu0
      %1923 = vmatprep.mubr.f32.mxu0 0.0
      %1924 = vmatmul.mubr.f32.gmra.mrb[0].mxu0 %v1749
      %v1925 = vpop.f32.mrb[0].mxu0
      %v1926 = vadd.f32 0.0, %v1925
      %v1927 = vpop.f32.mrb[0].mxu0
      %1928 = vmatprep.mubr.f32.mxu0 0.0
      %1929 = vmatmul.mubr.f32.gmra.mrb[0].mxu0 %v1752
      %v1930 = vpop.f32.mrb[0].mxu0
      %v1931 = vadd.f32 0.0, %v1930
      %v1932 = vpop.f32.mrb[0].mxu0
      %1933 = vmatprep.mubr.f32.mxu0 0.0
      %1934 = vmatmul.mubr.f32.gmra.mrb[0].mxu0 %v1755
      %v1935 = vpop.f32.mrb[0].mxu0
      %v1936 = vadd.f32 0.0, %v1935
      %v1937 = vpop.f32.mrb[0].mxu0
      %1938 = vmatprep.mubr.f32.mxu0 0.0
      %1939 = vmatmul.mubr.f32.gmra.mrb[0].mxu0 %v1758
      %v1940 = vpop.f32.mrb[0].mxu0
      %v1941 = vadd.f32 0.0, %v1940
      %v1942 = vpop.f32.mrb[0].mxu0
      %1943 = vmatprep.mubr.f32.mxu0 0.0
      %1944 = vmatmul.mubr.f32.gmra.mrb[0].mxu0 %v1761
      %v1945 = vpop.f32.mrb[0].mxu0
      %v1946 = vadd.f32 0.0, %v1945
      %v1947 = vpop.f32.mrb[0].mxu0
      %1948 = vmatprep.mubr.f32.mxu0 0.0
      %1949 = vmatmul.mubr.f32.gmra.mrb[0].mxu0 %v1764
      %v1950 = vpop.f32.mrb[0].mxu0
      %v1951 = vadd.f32 0.0, %v1950
      %v1952 = vpop.f32.mrb[0].mxu0
      %1953 = vmatprep.mubr.f32.mxu0 0.0
      %1954 = vmatmul.mubr.f32.gmra.mrb[0].mxu0 %v1767
      %v1955 = vpop.f32.mrb[0].mxu0
      %v1956 = vadd.f32 0.0, %v1955
      %v1957 = vpop.f32.mrb[0].mxu0
      %1958 = vmatprep.mubr.f32.mxu0 0.0
      %1959 = vmatmul.mubr.f32.gmra.mrb[0].mxu0 %v1770
      %v1960 = vpop.f32.mrb[0].mxu0
      %v1961 = vadd.f32 0.0, %v1960
      %v1962 = vpop.f32.mrb[0].mxu0
      %1963 = vmatprep.mubr.f32.mxu0 0.0
      %1964 = vmatmul.mubr.f32.gmra.mrb[0].mxu0 %v1773
      %v1965 = vpop.f32.mrb[0].mxu0
      %v1966 = vadd.f32 0.0, %v1965
      %v1967 = vpop.f32.mrb[0].mxu0
      %1968 = vmatprep.mubr.f32.mxu0 0.0
      %1969 = vmatmul.mubr.f32.gmra.mrb[0].mxu0 %v1776
      %v1970 = vpop.f32.mrb[0].mxu0
      %v1971 = vadd.f32 0.0, %v1970
      %v1972 = vpop.f32.mrb[0].mxu0
      %1973 = vmatprep.mubr.f32.mxu0 0.0
      %1974 = vmatmul.mubr.f32.gmra.mrb[0].mxu0 %v1779
      %v1975 = vpop.f32.mrb[0].mxu0
      %v1976 = vadd.f32 0.0, %v1975
      %v1977 = vpop.f32.mrb[0].mxu0
      %1978 = vmatprep.mubr.f32.mxu0 0.0
      %1979 = vmatmul.mubr.f32.gmra.mrb[0].mxu0 %v1782
      %v1980 = vpop.f32.mrb[0].mxu0
      %v1981 = vadd.f32 0.0, %v1980
      %v1982 = vpop.f32.mrb[0].mxu0
      %1983 = vmatprep.mubr.f32.mxu0 0.0
      %1984 = vmatmul.mubr.f32.gmra.mrb[0].mxu0 %v1785
      %v1985 = vpop.f32.mrb[0].mxu0
      %v1986 = vadd.f32 0.0, %v1985
      %v1987 = vpop.f32.mrb[0].mxu0
      %1988 = vmatprep.mubr.f32.mxu0 0.0
      %1989 = vmatmul.mubr.f32.gmra.mrb[0].mxu0 %v1788
      %v1990 = vpop.f32.mrb[0].mxu0
      %v1991 = vadd.f32 0.0, %v1990
      %v1992 = vpop.f32.mrb[0].mxu0
      %1993 = vmatprep.mubr.f32.mxu0 0.0
      %1994 = vmatmul.mubr.f32.gmra.mrb[0].mxu0 %v1791
      %v1995 = vpop.f32.mrb[0].mxu0
      %v1996 = vadd.f32 0.0, %v1995
      %v1997 = vpop.f32.mrb[0].mxu0
      %1998 = vmatprep.mubr.f32.mxu0 0.0
      %1999 = vmatmul.mubr.f32.gmra.mrb[0].mxu0 %v1794
      %v2000 = vpop.f32.mrb[0].mxu0
      %v2001 = vadd.f32 0.0, %v2000
      %v2002 = vpop.f32.mrb[0].mxu0
      %2003 = vmatprep.mubr.f32.mxu0 0.0
      %2004 = vmatmul.mubr.f32.gmra.mrb[0].mxu0 %v1797
      %v2005 = vpop.f32.mrb[0].mxu0
      %v2006 = vadd.f32 0.0, %v2005
      %v2007 = vpop.f32.mrb[0].mxu0
      %2008 = vmatprep.mubr.f32.mxu0 0.0
      %2009 = vmatmul.mubr.f32.gmra.mrb[0].mxu0 %v1800
      %v2010 = vpop.f32.mrb[0].mxu0
      %v2011 = vadd.f32 0.0, %v2010
      %v2012 = vpop.f32.mrb[0].mxu0
      %2013 = vmatprep.mubr.f32.mxu0 0.0
      %2014 = vmatmul.mubr.f32.gmra.mrb[0].mxu0 %v1803
      %v2015 = vpop.f32.mrb[0].mxu0
      %v2016 = vadd.f32 0.0, %v2015
      %v2017 = vpop.f32.mrb[0].mxu0
      %2018 = vmatprep.mubr.f32.mxu0 0.0
      %2019 = vmatmul.mubr.f32.gmra.mrb[0].mxu0 %v1806
      %v2020 = vpop.f32.mrb[0].mxu0
      %v2021 = vadd.f32 0.0, %v2020
      %v2022 = vpop.f32.mrb[0].mxu0
      %2023 = vmatprep.mubr.f32.mxu0 0.0
      %2024 = vmatmul.mubr.f32.gmra.mrb[0].mxu0 %v1809
      %v2025 = vpop.f32.mrb[0].mxu0
      %v2026 = vadd.f32 0.0, %v2025
      %v2027 = vpop.f32.mrb[0].mxu0
      %2028 = vmatprep.mubr.f32.mxu0 0.0
      %2029 = vmatmul.mubr.f32.gmra.mrb[0].mxu0 %v1812
      %v2030 = vpop.f32.mrb[0].mxu0
      %v2031 = vadd.f32 0.0, %v2030
      %v2032 = vpop.f32.mrb[0].mxu0
      %2033 = vmatprep.mubr.f32.mxu0 0.0
      %2034 = vmatmul.mubr.f32.gmra.mrb[0].mxu0 %v1815
      %v2035 = vpop.f32.mrb[0].mxu0
      %v2036 = vadd.f32 0.0, %v2035
      %v2037 = vpop.f32.mrb[0].mxu0
      %2038 = vmatprep.mubr.f32.mxu0 0.0
      %2039 = vmatmul.mubr.f32.gmra.mrb[0].mxu0 %v1818
      %v2040 = vpop.f32.mrb[0].mxu0
      %v2041 = vadd.f32 0.0, %v2040
      %v2042 = vpop.f32.mrb[0].mxu0
      %2043 = vmatprep.mubr.f32.mxu0 0.0
      %2044 = vmatmul.mubr.f32.gmra.mrb[0].mxu0 %v1821
      %v2045 = vpop.f32.mrb[0].mxu0
      %v2046 = vadd.f32 0.0, %v2045
      %v2047 = vpop.f32.mrb[0].mxu0
      %2048 = vmatprep.mubr.f32.mxu0 0.0
      %2049 = vmatmul.mubr.f32.gmra.mrb[0].mxu0 %v1824
      %v2050 = vpop.f32.mrb[0].mxu0
      %v2051 = vadd.f32 0.0, %v2050
      %v2052 = vpop.f32.mrb[0].mxu0
      %2053 = vdwg.mxu0
      %v2054 = vadd.f32 %v1664, %v1896
      %v2055 = vadd.f32 %v1665, %v1901
      %v2056 = vadd.f32 %v1666, %v1906
      %v2057 = vadd.f32 %v1667, %v1911
      %v2058 = vadd.f32 %v1668, %v1916
      %v2059 = vadd.f32 %v1669, %v1921
      %v2060 = vadd.f32 %v1670, %v1926
      %v2061 = vadd.f32 %v1671, %v1931
      %v2062 = vadd.f32 %v1672, %v1936
      %v2063 = vadd.f32 %v1673, %v1941
      %v2064 = vadd.f32 %v1674, %v1946
      %v2065 = vadd.f32 %v1675, %v1951
      %v2066 = vadd.f32 %v1676, %v1956
      %v2067 = vadd.f32 %v1677, %v1961
      %v2068 = vadd.f32 %v1678, %v1966
      %v2069 = vadd.f32 %v1679, %v1971
      %v2070 = vadd.f32 %v1680, %v1976
      %v2071 = vadd.f32 %v1681, %v1981
      %v2072 = vadd.f32 %v1682, %v1986
      %v2073 = vadd.f32 %v1683, %v1991
      %v2074 = vadd.f32 %v1684, %v1996
      %v2075 = vadd.f32 %v1685, %v2001
      %v2076 = vadd.f32 %v1686, %v2006
      %v2077 = vadd.f32 %v1687, %v2011
      %v2078 = vadd.f32 %v1688, %v2016
      %v2079 = vadd.f32 %v1689, %v2021
      %v2080 = vadd.f32 %v1690, %v2026
      %v2081 = vadd.f32 %v1691, %v2031
      %v2082 = vadd.f32 %v1692, %v2036
      %v2083 = vadd.f32 %v1693, %v2041
      %v2084 = vadd.f32 %v1694, %v2046
      %v2085 = vadd.f32 %v1695, %v2051
      %v2086 = vld [vmem:[%s1305 + $0x2] sm:$0xff]
      %v2087 = vld [vmem:[%s1305 + $0xa] sm:$0xff]
      %v2088 = vld [vmem:[%s1305 + $0x1a] sm:$0xff]
      %v2089 = vld [vmem:[%s1305 + $0x22] sm:$0xff]
      %v2090 = vld [vmem:[%s1305 + $0x32] sm:$0xff]
      %v2091 = vld [vmem:[%s1305 + $0x3a] sm:$0xff]
      %v2092 = vld [vmem:[%s1305 + $0x4a] sm:$0xff]
      %v2093 = vld [vmem:[%s1305 + $0x52] sm:$0xff]
      %v2094 = vld [vmem:[%s1305 + $0x62] sm:$0xff]
      %v2095 = vld [vmem:[%s1305 + $0x6a] sm:$0xff]
      %v2096 = vld [vmem:[%s1305 + $0x7a] sm:$0xff]
      %v2097 = vld [vmem:[%s1305 + $0x82] sm:$0xff]
      %v2098 = vld [vmem:[%s1305 + $0x92] sm:$0xff]
      %v2099 = vld [vmem:[%s1305 + $0x9a] sm:$0xff]
      %v2100 = vld [vmem:[%s1305 + $0xaa] sm:$0xff]
      %v2101 = vld [vmem:[%s1305 + $0xb2] sm:$0xff]
      %v2102 = vld [vmem:[%s1305 + $0xc2] sm:$0xff]
      %v2103 = vld [vmem:[%s1305 + $0xca] sm:$0xff]
      %v2104 = vld [vmem:[%s1305 + $0xda] sm:$0xff]
      %v2105 = vld [vmem:[%s1305 + $0xe2] sm:$0xff]
      %v2106 = vld [vmem:[%s1305 + $0xf2] sm:$0xff]
      %v2107 = vld [vmem:[%s1305 + $0xfa] sm:$0xff]
      %v2108 = vld [vmem:[%s1305 + $0x10a] sm:$0xff]
      %v2109 = vld [vmem:[%s1305 + $0x112] sm:$0xff]
      %v2110 = vld [vmem:[%s1305 + $0x122] sm:$0xff]
      %v2111 = vld [vmem:[%s1305 + $0x12a] sm:$0xff]
      %v2112 = vld [vmem:[%s1305 + $0x13a] sm:$0xff]
      %v2113 = vld [vmem:[%s1305 + $0x142] sm:$0xff]
      %v2114 = vld [vmem:[%s1305 + $0x152] sm:$0xff]
      %v2115 = vld [vmem:[%s1305 + $0x15a] sm:$0xff]
      %v2116 = vld [vmem:[%s1305 + $0x16a] sm:$0xff]
      %v2117 = vld [vmem:[%s1305 + $0x172] sm:$0xff]
      %s2118 = scalar_lea.vmem %s1, 20
      %v2119 = vld [vmem:[%s2118] sm:$0xf]
      %v2121 = vsel %vm265, %v2086, 0
      %v2124 = vsel %vm265, %v2087, 0
      %v2127 = vsel %vm265, %v2088, 0
      %v2130 = vsel %vm265, %v2089, 0
      %v2133 = vsel %vm265, %v2090, 0
      %v2136 = vsel %vm265, %v2091, 0
      %v2139 = vsel %vm265, %v2092, 0
      %v2142 = vsel %vm265, %v2093, 0
      %v2145 = vsel %vm265, %v2094, 0
      %v2148 = vsel %vm265, %v2095, 0
      %v2151 = vsel %vm265, %v2096, 0
      %v2154 = vsel %vm265, %v2097, 0
      %v2157 = vsel %vm265, %v2098, 0
      %v2160 = vsel %vm265, %v2099, 0
      %v2163 = vsel %vm265, %v2100, 0
      %v2166 = vsel %vm265, %v2101, 0
      %v2169 = vsel %vm265, %v2102, 0
      %v2172 = vsel %vm265, %v2103, 0
      %v2175 = vsel %vm265, %v2104, 0
      %v2178 = vsel %vm265, %v2105, 0
      %v2181 = vsel %vm265, %v2106, 0
      %v2184 = vsel %vm265, %v2107, 0
      %v2187 = vsel %vm265, %v2108, 0
      %v2190 = vsel %vm265, %v2109, 0
      %v2193 = vsel %vm265, %v2110, 0
      %v2196 = vsel %vm265, %v2111, 0
      %v2199 = vsel %vm265, %v2112, 0
      %v2202 = vsel %vm265, %v2113, 0
      %v2205 = vsel %vm265, %v2114, 0
      %v2208 = vsel %vm265, %v2115, 0
      %v2211 = vsel %vm265, %v2116, 0
      %v2214 = vsel %vm265, %v2117, 0
      %v2217 = vsel %vm362, %v2119, 0
      %2219 = vmatprep.subr.mxu0 0.0
      %2220 = vmatpush1.msra.mxu0 %v2217
      %2221 = vmatprep.subr.mxu0 0.0
      %2222 = vmatpush1.msra.mxu0 0.0
      %2223 = vmatprep.subr.mxu0 0.0
      %2224 = vmatpush1.msra.mxu0 0.0
      %2225 = vmatprep.subr.mxu0 0.0
      %2226 = vmatpush1.msra.mxu0 0.0
      %2227 = vmatprep.subr.mxu0 0.0
      %2228 = vmatpush1.msra.mxu0 0.0
      %2229 = vmatprep.subr.mxu0 0.0
      %2230 = vmatpush1.msra.mxu0 0.0
      %2231 = vmatprep.subr.mxu0 0.0
      %2232 = vmatpush1.msra.mxu0 0.0
      %2233 = vmatprep.subr.mxu0 0.0
      %2234 = vmatpush1.msra.mxu0 0.0
      %2235 = vmatprep.subr.mxu0 0.0
      %2236 = vmatpush1.msra.mxu0 0.0
      %2237 = vmatprep.subr.mxu0 0.0
      %2238 = vmatpush1.msra.mxu0 0.0
      %2239 = vmatprep.subr.mxu0 0.0
      %2240 = vmatpush1.msra.mxu0 0.0
      %2241 = vmatprep.subr.mxu0 0.0
      %2242 = vmatpush1.msra.mxu0 0.0
      %2243 = vmatprep.subr.mxu0 0.0
      %2244 = vmatpush1.msra.mxu0 0.0
      %2245 = vmatprep.subr.mxu0 0.0
      %2246 = vmatpush1.msra.mxu0 0.0
      %2247 = vmatprep.subr.mxu0 0.0
      %2248 = vmatpush1.msra.mxu0 0.0
      %2249 = vmatprep.subr.mxu0 0.0
      %2250 = vmatpush1.msra.mxu0 0.0
      %2251 = vmatprep.subr.mxu0 0.0
      %2252 = vmatpush1.msra.mxu0 0.0
      %2253 = vmatprep.subr.mxu0 0.0
      %2254 = vmatpush1.msra.mxu0 0.0
      %2255 = vmatprep.subr.mxu0 0.0
      %2256 = vmatpush1.msra.mxu0 0.0
      %2257 = vmatprep.subr.mxu0 0.0
      %2258 = vmatpush1.msra.mxu0 0.0
      %2259 = vmatprep.subr.mxu0 0.0
      %2260 = vmatpush1.msra.mxu0 0.0
      %2261 = vmatprep.subr.mxu0 0.0
      %2262 = vmatpush1.msra.mxu0 0.0
      %2263 = vmatprep.subr.mxu0 0.0
      %2264 = vmatpush1.msra.mxu0 0.0
      %2265 = vmatprep.subr.mxu0 0.0
      %2266 = vmatpush1.msra.mxu0 0.0
      %2267 = vmatprep.subr.mxu0 0.0
      %2268 = vmatpush1.msra.mxu0 0.0
      %2269 = vmatprep.subr.mxu0 0.0
      %2270 = vmatpush1.msra.mxu0 0.0
      %2271 = vmatprep.subr.mxu0 0.0
      %2272 = vmatpush1.msra.mxu0 0.0
      %2273 = vmatprep.subr.mxu0 0.0
      %2274 = vmatpush1.msra.mxu0 0.0
      %2275 = vmatprep.subr.mxu0 0.0
      %2276 = vmatpush1.msra.mxu0 0.0
      %2277 = vmatprep.subr.mxu0 0.0
      %2278 = vmatpush1.msra.mxu0 0.0
      %2279 = vmatprep.subr.mxu0 0.0
      %2280 = vmatpush1.msra.mxu0 0.0
      %2281 = vmatprep.subr.mxu0 0.0
      %2282 = vmatpush1.msra.mxu0 0.0
      %2283 = vmatprep.mubr.f32.mxu0 0.0
      %2284 = vmatmul.mubr.f32.gmra.mrb[0].mxu0 %v2121
      %v2285 = vpop.f32.mrb[0].mxu0
      %v2286 = vadd.f32 0.0, %v2285
      %v2287 = vpop.f32.mrb[0].mxu0
      %2288 = vmatprep.mubr.f32.mxu0 0.0
      %2289 = vmatmul.mubr.f32.gmra.mrb[0].mxu0 %v2124
      %v2290 = vpop.f32.mrb[0].mxu0
      %v2291 = vadd.f32 0.0, %v2290
      %v2292 = vpop.f32.mrb[0].mxu0
      %2293 = vmatprep.mubr.f32.mxu0 0.0
      %2294 = vmatmul.mubr.f32.gmra.mrb[0].mxu0 %v2127
      %v2295 = vpop.f32.mrb[0].mxu0
      %v2296 = vadd.f32 0.0, %v2295
      %v2297 = vpop.f32.mrb[0].mxu0
      %2298 = vmatprep.mubr.f32.mxu0 0.0
      %2299 = vmatmul.mubr.f32.gmra.mrb[0].mxu0 %v2130
      %v2300 = vpop.f32.mrb[0].mxu0
      %v2301 = vadd.f32 0.0, %v2300
      %v2302 = vpop.f32.mrb[0].mxu0
      %2303 = vmatprep.mubr.f32.mxu0 0.0
      %2304 = vmatmul.mubr.f32.gmra.mrb[0].mxu0 %v2133
      %v2305 = vpop.f32.mrb[0].mxu0
      %v2306 = vadd.f32 0.0, %v2305
      %v2307 = vpop.f32.mrb[0].mxu0
      %2308 = vmatprep.mubr.f32.mxu0 0.0
      %2309 = vmatmul.mubr.f32.gmra.mrb[0].mxu0 %v2136
      %v2310 = vpop.f32.mrb[0].mxu0
      %v2311 = vadd.f32 0.0, %v2310
      %v2312 = vpop.f32.mrb[0].mxu0
      %2313 = vmatprep.mubr.f32.mxu0 0.0
      %2314 = vmatmul.mubr.f32.gmra.mrb[0].mxu0 %v2139
      %v2315 = vpop.f32.mrb[0].mxu0
      %v2316 = vadd.f32 0.0, %v2315
      %v2317 = vpop.f32.mrb[0].mxu0
      %2318 = vmatprep.mubr.f32.mxu0 0.0
      %2319 = vmatmul.mubr.f32.gmra.mrb[0].mxu0 %v2142
      %v2320 = vpop.f32.mrb[0].mxu0
      %v2321 = vadd.f32 0.0, %v2320
      %v2322 = vpop.f32.mrb[0].mxu0
      %2323 = vmatprep.mubr.f32.mxu0 0.0
      %2324 = vmatmul.mubr.f32.gmra.mrb[0].mxu0 %v2145
      %v2325 = vpop.f32.mrb[0].mxu0
      %v2326 = vadd.f32 0.0, %v2325
      %v2327 = vpop.f32.mrb[0].mxu0
      %2328 = vmatprep.mubr.f32.mxu0 0.0
      %2329 = vmatmul.mubr.f32.gmra.mrb[0].mxu0 %v2148
      %v2330 = vpop.f32.mrb[0].mxu0
      %v2331 = vadd.f32 0.0, %v2330
      %v2332 = vpop.f32.mrb[0].mxu0
      %2333 = vmatprep.mubr.f32.mxu0 0.0
      %2334 = vmatmul.mubr.f32.gmra.mrb[0].mxu0 %v2151
      %v2335 = vpop.f32.mrb[0].mxu0
      %v2336 = vadd.f32 0.0, %v2335
      %v2337 = vpop.f32.mrb[0].mxu0
      %2338 = vmatprep.mubr.f32.mxu0 0.0
      %2339 = vmatmul.mubr.f32.gmra.mrb[0].mxu0 %v2154
      %v2340 = vpop.f32.mrb[0].mxu0
      %v2341 = vadd.f32 0.0, %v2340
      %v2342 = vpop.f32.mrb[0].mxu0
      %2343 = vmatprep.mubr.f32.mxu0 0.0
      %2344 = vmatmul.mubr.f32.gmra.mrb[0].mxu0 %v2157
      %v2345 = vpop.f32.mrb[0].mxu0
      %v2346 = vadd.f32 0.0, %v2345
      %v2347 = vpop.f32.mrb[0].mxu0
      %2348 = vmatprep.mubr.f32.mxu0 0.0
      %2349 = vmatmul.mubr.f32.gmra.mrb[0].mxu0 %v2160
      %v2350 = vpop.f32.mrb[0].mxu0
      %v2351 = vadd.f32 0.0, %v2350
      %v2352 = vpop.f32.mrb[0].mxu0
      %2353 = vmatprep.mubr.f32.mxu0 0.0
      %2354 = vmatmul.mubr.f32.gmra.mrb[0].mxu0 %v2163
      %v2355 = vpop.f32.mrb[0].mxu0
      %v2356 = vadd.f32 0.0, %v2355
      %v2357 = vpop.f32.mrb[0].mxu0
      %2358 = vmatprep.mubr.f32.mxu0 0.0
      %2359 = vmatmul.mubr.f32.gmra.mrb[0].mxu0 %v2166
      %v2360 = vpop.f32.mrb[0].mxu0
      %v2361 = vadd.f32 0.0, %v2360
      %v2362 = vpop.f32.mrb[0].mxu0
      %2363 = vmatprep.mubr.f32.mxu0 0.0
      %2364 = vmatmul.mubr.f32.gmra.mrb[0].mxu0 %v2169
      %v2365 = vpop.f32.mrb[0].mxu0
      %v2366 = vadd.f32 0.0, %v2365
      %v2367 = vpop.f32.mrb[0].mxu0
      %2368 = vmatprep.mubr.f32.mxu0 0.0
      %2369 = vmatmul.mubr.f32.gmra.mrb[0].mxu0 %v2172
      %v2370 = vpop.f32.mrb[0].mxu0
      %v2371 = vadd.f32 0.0, %v2370
      %v2372 = vpop.f32.mrb[0].mxu0
      %2373 = vmatprep.mubr.f32.mxu0 0.0
      %2374 = vmatmul.mubr.f32.gmra.mrb[0].mxu0 %v2175
      %v2375 = vpop.f32.mrb[0].mxu0
      %v2376 = vadd.f32 0.0, %v2375
      %v2377 = vpop.f32.mrb[0].mxu0
      %2378 = vmatprep.mubr.f32.mxu0 0.0
      %2379 = vmatmul.mubr.f32.gmra.mrb[0].mxu0 %v2178
      %v2380 = vpop.f32.mrb[0].mxu0
      %v2381 = vadd.f32 0.0, %v2380
      %v2382 = vpop.f32.mrb[0].mxu0
      %2383 = vmatprep.mubr.f32.mxu0 0.0
      %2384 = vmatmul.mubr.f32.gmra.mrb[0].mxu0 %v2181
      %v2385 = vpop.f32.mrb[0].mxu0
      %v2386 = vadd.f32 0.0, %v2385
      %v2387 = vpop.f32.mrb[0].mxu0
      %2388 = vmatprep.mubr.f32.mxu0 0.0
      %2389 = vmatmul.mubr.f32.gmra.mrb[0].mxu0 %v2184
      %v2390 = vpop.f32.mrb[0].mxu0
      %v2391 = vadd.f32 0.0, %v2390
      %v2392 = vpop.f32.mrb[0].mxu0
      %2393 = vmatprep.mubr.f32.mxu0 0.0
      %2394 = vmatmul.mubr.f32.gmra.mrb[0].mxu0 %v2187
      %v2395 = vpop.f32.mrb[0].mxu0
      %v2396 = vadd.f32 0.0, %v2395
      %v2397 = vpop.f32.mrb[0].mxu0
      %2398 = vmatprep.mubr.f32.mxu0 0.0
      %2399 = vmatmul.mubr.f32.gmra.mrb[0].mxu0 %v2190
      %v2400 = vpop.f32.mrb[0].mxu0
      %v2401 = vadd.f32 0.0, %v2400
      %v2402 = vpop.f32.mrb[0].mxu0
      %2403 = vmatprep.mubr.f32.mxu0 0.0
      %2404 = vmatmul.mubr.f32.gmra.mrb[0].mxu0 %v2193
      %v2405 = vpop.f32.mrb[0].mxu0
      %v2406 = vadd.f32 0.0, %v2405
      %v2407 = vpop.f32.mrb[0].mxu0
      %2408 = vmatprep.mubr.f32.mxu0 0.0
      %2409 = vmatmul.mubr.f32.gmra.mrb[0].mxu0 %v2196
      %v2410 = vpop.f32.mrb[0].mxu0
      %v2411 = vadd.f32 0.0, %v2410
      %v2412 = vpop.f32.mrb[0].mxu0
      %2413 = vmatprep.mubr.f32.mxu0 0.0
      %2414 = vmatmul.mubr.f32.gmra.mrb[0].mxu0 %v2199
      %v2415 = vpop.f32.mrb[0].mxu0
      %v2416 = vadd.f32 0.0, %v2415
      %v2417 = vpop.f32.mrb[0].mxu0
      %2418 = vmatprep.mubr.f32.mxu0 0.0
      %2419 = vmatmul.mubr.f32.gmra.mrb[0].mxu0 %v2202
      %v2420 = vpop.f32.mrb[0].mxu0
      %v2421 = vadd.f32 0.0, %v2420
      %v2422 = vpop.f32.mrb[0].mxu0
      %2423 = vmatprep.mubr.f32.mxu0 0.0
      %2424 = vmatmul.mubr.f32.gmra.mrb[0].mxu0 %v2205
      %v2425 = vpop.f32.mrb[0].mxu0
      %v2426 = vadd.f32 0.0, %v2425
      %v2427 = vpop.f32.mrb[0].mxu0
      %2428 = vmatprep.mubr.f32.mxu0 0.0
      %2429 = vmatmul.mubr.f32.gmra.mrb[0].mxu0 %v2208
      %v2430 = vpop.f32.mrb[0].mxu0
      %v2431 = vadd.f32 0.0, %v2430
      %v2432 = vpop.f32.mrb[0].mxu0
      %2433 = vmatprep.mubr.f32.mxu0 0.0
      %2434 = vmatmul.mubr.f32.gmra.mrb[0].mxu0 %v2211
      %v2435 = vpop.f32.mrb[0].mxu0
      %v2436 = vadd.f32 0.0, %v2435
      %v2437 = vpop.f32.mrb[0].mxu0
      %2438 = vmatprep.mubr.f32.mxu0 0.0
      %2439 = vmatmul.mubr.f32.gmra.mrb[0].mxu0 %v2214
      %v2440 = vpop.f32.mrb[0].mxu0
      %v2441 = vadd.f32 0.0, %v2440
      %v2442 = vpop.f32.mrb[0].mxu0
      %2443 = vdwg.mxu0
      %v2444 = vadd.f32 %v2054, %v2286
      %v2445 = vadd.f32 %v2055, %v2291
      %v2446 = vadd.f32 %v2056, %v2296
      %v2447 = vadd.f32 %v2057, %v2301
      %v2448 = vadd.f32 %v2058, %v2306
      %v2449 = vadd.f32 %v2059, %v2311
      %v2450 = vadd.f32 %v2060, %v2316
      %v2451 = vadd.f32 %v2061, %v2321
      %v2452 = vadd.f32 %v2062, %v2326
      %v2453 = vadd.f32 %v2063, %v2331
      %v2454 = vadd.f32 %v2064, %v2336
      %v2455 = vadd.f32 %v2065, %v2341
      %v2456 = vadd.f32 %v2066, %v2346
      %v2457 = vadd.f32 %v2067, %v2351
      %v2458 = vadd.f32 %v2068, %v2356
      %v2459 = vadd.f32 %v2069, %v2361
      %v2460 = vadd.f32 %v2070, %v2366
      %v2461 = vadd.f32 %v2071, %v2371
      %v2462 = vadd.f32 %v2072, %v2376
      %v2463 = vadd.f32 %v2073, %v2381
      %v2464 = vadd.f32 %v2074, %v2386
      %v2465 = vadd.f32 %v2075, %v2391
      %v2466 = vadd.f32 %v2076, %v2396
      %v2467 = vadd.f32 %v2077, %v2401
      %v2468 = vadd.f32 %v2078, %v2406
      %v2469 = vadd.f32 %v2079, %v2411
      %v2470 = vadd.f32 %v2080, %v2416
      %v2471 = vadd.f32 %v2081, %v2421
      %v2472 = vadd.f32 %v2082, %v2426
      %v2473 = vadd.f32 %v2083, %v2431
      %v2474 = vadd.f32 %v2084, %v2436
      %v2475 = vadd.f32 %v2085, %v2441
      %s2476 = scalar_lea.vmem %s192, 48
      %v2477 = vld [vmem:[%s2476] sm:$0xff]
      %v2478 = vld [vmem:[%s2476 + $0x8] sm:$0xff]
      %v2479 = vld [vmem:[%s2476 + $0x18] sm:$0xff]
      %v2480 = vld [vmem:[%s2476 + $0x20] sm:$0xff]
      %v2481 = vld [vmem:[%s2476 + $0x30] sm:$0xff]
      %v2482 = vld [vmem:[%s2476 + $0x38] sm:$0xff]
      %v2483 = vld [vmem:[%s2476 + $0x48] sm:$0xff]
      %v2484 = vld [vmem:[%s2476 + $0x50] sm:$0xff]
      %v2485 = vld [vmem:[%s2476 + $0x60] sm:$0xff]
      %v2486 = vld [vmem:[%s2476 + $0x68] sm:$0xff]
      %v2487 = vld [vmem:[%s2476 + $0x78] sm:$0xff]
      %v2488 = vld [vmem:[%s2476 + $0x80] sm:$0xff]
      %v2489 = vld [vmem:[%s2476 + $0x90] sm:$0xff]
      %v2490 = vld [vmem:[%s2476 + $0x98] sm:$0xff]
      %v2491 = vld [vmem:[%s2476 + $0xa8] sm:$0xff]
      %v2492 = vld [vmem:[%s2476 + $0xb0] sm:$0xff]
      %v2493 = vld [vmem:[%s2476 + $0xc0] sm:$0xff]
      %v2494 = vld [vmem:[%s2476 + $0xc8] sm:$0xff]
      %v2495 = vld [vmem:[%s2476 + $0xd8] sm:$0xff]
      %v2496 = vld [vmem:[%s2476 + $0xe0] sm:$0xff]
      %v2497 = vld [vmem:[%s2476 + $0xf0] sm:$0xff]
      %v2498 = vld [vmem:[%s2476 + $0xf8] sm:$0xff]
      %v2499 = vld [vmem:[%s2476 + $0x108] sm:$0xff]
      %v2500 = vld [vmem:[%s2476 + $0x110] sm:$0xff]
      %v2501 = vld [vmem:[%s2476 + $0x120] sm:$0xff]
      %v2502 = vld [vmem:[%s2476 + $0x128] sm:$0xff]
      %v2503 = vld [vmem:[%s2476 + $0x138] sm:$0xff]
      %v2504 = vld [vmem:[%s2476 + $0x140] sm:$0xff]
      %v2505 = vld [vmem:[%s2476 + $0x150] sm:$0xff]
      %v2506 = vld [vmem:[%s2476 + $0x158] sm:$0xff]
      %v2507 = vld [vmem:[%s2476 + $0x168] sm:$0xff]
      %v2508 = vld [vmem:[%s2476 + $0x170] sm:$0xff]
      %s2509 = scalar_lea.vmem %s1, 24
      %v2510 = vld [vmem:[%s2509] sm:$0xf]
      %v2512 = vsel %vm265, %v2477, 0
      %v2515 = vsel %vm265, %v2478, 0
      %v2518 = vsel %vm265, %v2479, 0
      %v2521 = vsel %vm265, %v2480, 0
      %v2524 = vsel %vm265, %v2481, 0
      %v2527 = vsel %vm265, %v2482, 0
      %v2530 = vsel %vm265, %v2483, 0
      %v2533 = vsel %vm265, %v2484, 0
      %v2536 = vsel %vm265, %v2485, 0
      %v2539 = vsel %vm265, %v2486, 0
      %v2542 = vsel %vm265, %v2487, 0
      %v2545 = vsel %vm265, %v2488, 0
      %v2548 = vsel %vm265, %v2489, 0
      %v2551 = vsel %vm265, %v2490, 0
      %v2554 = vsel %vm265, %v2491, 0
      %v2557 = vsel %vm265, %v2492, 0
      %v2560 = vsel %vm265, %v2493, 0
      %v2563 = vsel %vm265, %v2494, 0
      %v2566 = vsel %vm265, %v2495, 0
      %v2569 = vsel %vm265, %v2496, 0
      %v2572 = vsel %vm265, %v2497, 0
      %v2575 = vsel %vm265, %v2498, 0
      %v2578 = vsel %vm265, %v2499, 0
      %v2581 = vsel %vm265, %v2500, 0
      %v2584 = vsel %vm265, %v2501, 0
      %v2587 = vsel %vm265, %v2502, 0
      %v2590 = vsel %vm265, %v2503, 0
      %v2593 = vsel %vm265, %v2504, 0
      %v2596 = vsel %vm265, %v2505, 0
      %v2599 = vsel %vm265, %v2506, 0
      %v2602 = vsel %vm265, %v2507, 0
      %v2605 = vsel %vm265, %v2508, 0
      %v2608 = vsel %vm362, %v2510, 0
      %2610 = vmatprep.subr.mxu0 0.0
      %2611 = vmatpush1.msra.mxu0 %v2608
      %2612 = vmatprep.subr.mxu0 0.0
      %2613 = vmatpush1.msra.mxu0 0.0
      %2614 = vmatprep.subr.mxu0 0.0
      %2615 = vmatpush1.msra.mxu0 0.0
      %2616 = vmatprep.subr.mxu0 0.0
      %2617 = vmatpush1.msra.mxu0 0.0
      %2618 = vmatprep.subr.mxu0 0.0
      %2619 = vmatpush1.msra.mxu0 0.0
      %2620 = vmatprep.subr.mxu0 0.0
      %2621 = vmatpush1.msra.mxu0 0.0
      %2622 = vmatprep.subr.mxu0 0.0
      %2623 = vmatpush1.msra.mxu0 0.0
      %2624 = vmatprep.subr.mxu0 0.0
      %2625 = vmatpush1.msra.mxu0 0.0
      %2626 = vmatprep.subr.mxu0 0.0
      %2627 = vmatpush1.msra.mxu0 0.0
      %2628 = vmatprep.subr.mxu0 0.0
      %2629 = vmatpush1.msra.mxu0 0.0
      %2630 = vmatprep.subr.mxu0 0.0
      %2631 = vmatpush1.msra.mxu0 0.0
      %2632 = vmatprep.subr.mxu0 0.0
      %2633 = vmatpush1.msra.mxu0 0.0
      %2634 = vmatprep.subr.mxu0 0.0
      %2635 = vmatpush1.msra.mxu0 0.0
      %2636 = vmatprep.subr.mxu0 0.0
      %2637 = vmatpush1.msra.mxu0 0.0
      %2638 = vmatprep.subr.mxu0 0.0
      %2639 = vmatpush1.msra.mxu0 0.0
      %2640 = vmatprep.subr.mxu0 0.0
      %2641 = vmatpush1.msra.mxu0 0.0
      %2642 = vmatprep.subr.mxu0 0.0
      %2643 = vmatpush1.msra.mxu0 0.0
      %2644 = vmatprep.subr.mxu0 0.0
      %2645 = vmatpush1.msra.mxu0 0.0
      %2646 = vmatprep.subr.mxu0 0.0
      %2647 = vmatpush1.msra.mxu0 0.0
      %2648 = vmatprep.subr.mxu0 0.0
      %2649 = vmatpush1.msra.mxu0 0.0
      %2650 = vmatprep.subr.mxu0 0.0
      %2651 = vmatpush1.msra.mxu0 0.0
      %2652 = vmatprep.subr.mxu0 0.0
      %2653 = vmatpush1.msra.mxu0 0.0
      %2654 = vmatprep.subr.mxu0 0.0
      %2655 = vmatpush1.msra.mxu0 0.0
      %2656 = vmatprep.subr.mxu0 0.0
      %2657 = vmatpush1.msra.mxu0 0.0
      %2658 = vmatprep.subr.mxu0 0.0
      %2659 = vmatpush1.msra.mxu0 0.0
      %2660 = vmatprep.subr.mxu0 0.0
      %2661 = vmatpush1.msra.mxu0 0.0
      %2662 = vmatprep.subr.mxu0 0.0
      %2663 = vmatpush1.msra.mxu0 0.0
      %2664 = vmatprep.subr.mxu0 0.0
      %2665 = vmatpush1.msra.mxu0 0.0
      %2666 = vmatprep.subr.mxu0 0.0
      %2667 = vmatpush1.msra.mxu0 0.0
      %2668 = vmatprep.subr.mxu0 0.0
      %2669 = vmatpush1.msra.mxu0 0.0
      %2670 = vmatprep.subr.mxu0 0.0
      %2671 = vmatpush1.msra.mxu0 0.0
      %2672 = vmatprep.subr.mxu0 0.0
      %2673 = vmatpush1.msra.mxu0 0.0
      %2674 = vmatprep.mubr.f32.mxu0 0.0
      %2675 = vmatmul.mubr.f32.gmra.mrb[0].mxu0 %v2512
      %v2676 = vpop.f32.mrb[0].mxu0
      %v2677 = vadd.f32 0.0, %v2676
      %v2678 = vpop.f32.mrb[0].mxu0
      %2679 = vmatprep.mubr.f32.mxu0 0.0
      %2680 = vmatmul.mubr.f32.gmra.mrb[0].mxu0 %v2515
      %v2681 = vpop.f32.mrb[0].mxu0
      %v2682 = vadd.f32 0.0, %v2681
      %v2683 = vpop.f32.mrb[0].mxu0
      %2684 = vmatprep.mubr.f32.mxu0 0.0
      %2685 = vmatmul.mubr.f32.gmra.mrb[0].mxu0 %v2518
      %v2686 = vpop.f32.mrb[0].mxu0
      %v2687 = vadd.f32 0.0, %v2686
      %v2688 = vpop.f32.mrb[0].mxu0
      %2689 = vmatprep.mubr.f32.mxu0 0.0
      %2690 = vmatmul.mubr.f32.gmra.mrb[0].mxu0 %v2521
      %v2691 = vpop.f32.mrb[0].mxu0
      %v2692 = vadd.f32 0.0, %v2691
      %v2693 = vpop.f32.mrb[0].mxu0
      %2694 = vmatprep.mubr.f32.mxu0 0.0
      %2695 = vmatmul.mubr.f32.gmra.mrb[0].mxu0 %v2524
      %v2696 = vpop.f32.mrb[0].mxu0
      %v2697 = vadd.f32 0.0, %v2696
      %v2698 = vpop.f32.mrb[0].mxu0
      %2699 = vmatprep.mubr.f32.mxu0 0.0
      %2700 = vmatmul.mubr.f32.gmra.mrb[0].mxu0 %v2527
      %v2701 = vpop.f32.mrb[0].mxu0
      %v2702 = vadd.f32 0.0, %v2701
      %v2703 = vpop.f32.mrb[0].mxu0
      %2704 = vmatprep.mubr.f32.mxu0 0.0
      %2705 = vmatmul.mubr.f32.gmra.mrb[0].mxu0 %v2530
      %v2706 = vpop.f32.mrb[0].mxu0
      %v2707 = vadd.f32 0.0, %v2706
      %v2708 = vpop.f32.mrb[0].mxu0
      %2709 = vmatprep.mubr.f32.mxu0 0.0
      %2710 = vmatmul.mubr.f32.gmra.mrb[0].mxu0 %v2533
      %v2711 = vpop.f32.mrb[0].mxu0
      %v2712 = vadd.f32 0.0, %v2711
      %v2713 = vpop.f32.mrb[0].mxu0
      %2714 = vmatprep.mubr.f32.mxu0 0.0
      %2715 = vmatmul.mubr.f32.gmra.mrb[0].mxu0 %v2536
      %v2716 = vpop.f32.mrb[0].mxu0
      %v2717 = vadd.f32 0.0, %v2716
      %v2718 = vpop.f32.mrb[0].mxu0
      %2719 = vmatprep.mubr.f32.mxu0 0.0
      %2720 = vmatmul.mubr.f32.gmra.mrb[0].mxu0 %v2539
      %v2721 = vpop.f32.mrb[0].mxu0
      %v2722 = vadd.f32 0.0, %v2721
      %v2723 = vpop.f32.mrb[0].mxu0
      %2724 = vmatprep.mubr.f32.mxu0 0.0
      %2725 = vmatmul.mubr.f32.gmra.mrb[0].mxu0 %v2542
      %v2726 = vpop.f32.mrb[0].mxu0
      %v2727 = vadd.f32 0.0, %v2726
      %v2728 = vpop.f32.mrb[0].mxu0
      %2729 = vmatprep.mubr.f32.mxu0 0.0
      %2730 = vmatmul.mubr.f32.gmra.mrb[0].mxu0 %v2545
      %v2731 = vpop.f32.mrb[0].mxu0
      %v2732 = vadd.f32 0.0, %v2731
      %v2733 = vpop.f32.mrb[0].mxu0
      %2734 = vmatprep.mubr.f32.mxu0 0.0
      %2735 = vmatmul.mubr.f32.gmra.mrb[0].mxu0 %v2548
      %v2736 = vpop.f32.mrb[0].mxu0
      %v2737 = vadd.f32 0.0, %v2736
      %v2738 = vpop.f32.mrb[0].mxu0
      %2739 = vmatprep.mubr.f32.mxu0 0.0
      %2740 = vmatmul.mubr.f32.gmra.mrb[0].mxu0 %v2551
      %v2741 = vpop.f32.mrb[0].mxu0
      %v2742 = vadd.f32 0.0, %v2741
      %v2743 = vpop.f32.mrb[0].mxu0
      %2744 = vmatprep.mubr.f32.mxu0 0.0
      %2745 = vmatmul.mubr.f32.gmra.mrb[0].mxu0 %v2554
      %v2746 = vpop.f32.mrb[0].mxu0
      %v2747 = vadd.f32 0.0, %v2746
      %v2748 = vpop.f32.mrb[0].mxu0
      %2749 = vmatprep.mubr.f32.mxu0 0.0
      %2750 = vmatmul.mubr.f32.gmra.mrb[0].mxu0 %v2557
      %v2751 = vpop.f32.mrb[0].mxu0
      %v2752 = vadd.f32 0.0, %v2751
      %v2753 = vpop.f32.mrb[0].mxu0
      %2754 = vmatprep.mubr.f32.mxu0 0.0
      %2755 = vmatmul.mubr.f32.gmra.mrb[0].mxu0 %v2560
      %v2756 = vpop.f32.mrb[0].mxu0
      %v2757 = vadd.f32 0.0, %v2756
      %v2758 = vpop.f32.mrb[0].mxu0
      %2759 = vmatprep.mubr.f32.mxu0 0.0
      %2760 = vmatmul.mubr.f32.gmra.mrb[0].mxu0 %v2563
      %v2761 = vpop.f32.mrb[0].mxu0
      %v2762 = vadd.f32 0.0, %v2761
      %v2763 = vpop.f32.mrb[0].mxu0
      %2764 = vmatprep.mubr.f32.mxu0 0.0
      %2765 = vmatmul.mubr.f32.gmra.mrb[0].mxu0 %v2566
      %v2766 = vpop.f32.mrb[0].mxu0
      %v2767 = vadd.f32 0.0, %v2766
      %v2768 = vpop.f32.mrb[0].mxu0
      %2769 = vmatprep.mubr.f32.mxu0 0.0
      %2770 = vmatmul.mubr.f32.gmra.mrb[0].mxu0 %v2569
      %v2771 = vpop.f32.mrb[0].mxu0
      %v2772 = vadd.f32 0.0, %v2771
      %v2773 = vpop.f32.mrb[0].mxu0
      %2774 = vmatprep.mubr.f32.mxu0 0.0
      %2775 = vmatmul.mubr.f32.gmra.mrb[0].mxu0 %v2572
      %v2776 = vpop.f32.mrb[0].mxu0
      %v2777 = vadd.f32 0.0, %v2776
      %v2778 = vpop.f32.mrb[0].mxu0
      %2779 = vmatprep.mubr.f32.mxu0 0.0
      %2780 = vmatmul.mubr.f32.gmra.mrb[0].mxu0 %v2575
      %v2781 = vpop.f32.mrb[0].mxu0
      %v2782 = vadd.f32 0.0, %v2781
      %v2783 = vpop.f32.mrb[0].mxu0
      %2784 = vmatprep.mubr.f32.mxu0 0.0
      %2785 = vmatmul.mubr.f32.gmra.mrb[0].mxu0 %v2578
      %v2786 = vpop.f32.mrb[0].mxu0
      %v2787 = vadd.f32 0.0, %v2786
      %v2788 = vpop.f32.mrb[0].mxu0
      %2789 = vmatprep.mubr.f32.mxu0 0.0
      %2790 = vmatmul.mubr.f32.gmra.mrb[0].mxu0 %v2581
      %v2791 = vpop.f32.mrb[0].mxu0
      %v2792 = vadd.f32 0.0, %v2791
      %v2793 = vpop.f32.mrb[0].mxu0
      %2794 = vmatprep.mubr.f32.mxu0 0.0
      %2795 = vmatmul.mubr.f32.gmra.mrb[0].mxu0 %v2584
      %v2796 = vpop.f32.mrb[0].mxu0
      %v2797 = vadd.f32 0.0, %v2796
      %v2798 = vpop.f32.mrb[0].mxu0
      %2799 = vmatprep.mubr.f32.mxu0 0.0
      %2800 = vmatmul.mubr.f32.gmra.mrb[0].mxu0 %v2587
      %v2801 = vpop.f32.mrb[0].mxu0
      %v2802 = vadd.f32 0.0, %v2801
      %v2803 = vpop.f32.mrb[0].mxu0
      %2804 = vmatprep.mubr.f32.mxu0 0.0
      %2805 = vmatmul.mubr.f32.gmra.mrb[0].mxu0 %v2590
      %v2806 = vpop.f32.mrb[0].mxu0
      %v2807 = vadd.f32 0.0, %v2806
      %v2808 = vpop.f32.mrb[0].mxu0
      %2809 = vmatprep.mubr.f32.mxu0 0.0
      %2810 = vmatmul.mubr.f32.gmra.mrb[0].mxu0 %v2593
      %v2811 = vpop.f32.mrb[0].mxu0
      %v2812 = vadd.f32 0.0, %v2811
      %v2813 = vpop.f32.mrb[0].mxu0
      %2814 = vmatprep.mubr.f32.mxu0 0.0
      %2815 = vmatmul.mubr.f32.gmra.mrb[0].mxu0 %v2596
      %v2816 = vpop.f32.mrb[0].mxu0
      %v2817 = vadd.f32 0.0, %v2816
      %v2818 = vpop.f32.mrb[0].mxu0
      %2819 = vmatprep.mubr.f32.mxu0 0.0
      %2820 = vmatmul.mubr.f32.gmra.mrb[0].mxu0 %v2599
      %v2821 = vpop.f32.mrb[0].mxu0
      %v2822 = vadd.f32 0.0, %v2821
      %v2823 = vpop.f32.mrb[0].mxu0
      %2824 = vmatprep.mubr.f32.mxu0 0.0
      %2825 = vmatmul.mubr.f32.gmra.mrb[0].mxu0 %v2602
      %v2826 = vpop.f32.mrb[0].mxu0
      %v2827 = vadd.f32 0.0, %v2826
      %v2828 = vpop.f32.mrb[0].mxu0
      %2829 = vmatprep.mubr.f32.mxu0 0.0
      %2830 = vmatmul.mubr.f32.gmra.mrb[0].mxu0 %v2605
      %v2831 = vpop.f32.mrb[0].mxu0
      %v2832 = vadd.f32 0.0, %v2831
      %v2833 = vpop.f32.mrb[0].mxu0
      %2834 = vdwg.mxu0
      %v2835 = vadd.f32 %v2444, %v2677
      %v2836 = vadd.f32 %v2445, %v2682
      %v2837 = vadd.f32 %v2446, %v2687
      %v2838 = vadd.f32 %v2447, %v2692
      %v2839 = vadd.f32 %v2448, %v2697
      %v2840 = vadd.f32 %v2449, %v2702
      %v2841 = vadd.f32 %v2450, %v2707
      %v2842 = vadd.f32 %v2451, %v2712
      %v2843 = vadd.f32 %v2452, %v2717
      %v2844 = vadd.f32 %v2453, %v2722
      %v2845 = vadd.f32 %v2454, %v2727
      %v2846 = vadd.f32 %v2455, %v2732
      %v2847 = vadd.f32 %v2456, %v2737
      %v2848 = vadd.f32 %v2457, %v2742
      %v2849 = vadd.f32 %v2458, %v2747
      %v2850 = vadd.f32 %v2459, %v2752
      %v2851 = vadd.f32 %v2460, %v2757
      %v2852 = vadd.f32 %v2461, %v2762
      %v2853 = vadd.f32 %v2462, %v2767
      %v2854 = vadd.f32 %v2463, %v2772
      %v2855 = vadd.f32 %v2464, %v2777
      %v2856 = vadd.f32 %v2465, %v2782
      %v2857 = vadd.f32 %v2466, %v2787
      %v2858 = vadd.f32 %v2467, %v2792
      %v2859 = vadd.f32 %v2468, %v2797
      %v2860 = vadd.f32 %v2469, %v2802
      %v2861 = vadd.f32 %v2470, %v2807
      %v2862 = vadd.f32 %v2471, %v2812
      %v2863 = vadd.f32 %v2472, %v2817
      %v2864 = vadd.f32 %v2473, %v2822
      %v2865 = vadd.f32 %v2474, %v2827
      %v2866 = vadd.f32 %v2475, %v2832
      %v2867 = vld [vmem:[%s2476 + $0x1] sm:$0xff]
      %v2868 = vld [vmem:[%s2476 + $0x9] sm:$0xff]
      %v2869 = vld [vmem:[%s2476 + $0x19] sm:$0xff]
      %v2870 = vld [vmem:[%s2476 + $0x21] sm:$0xff]
      %v2871 = vld [vmem:[%s2476 + $0x31] sm:$0xff]
      %v2872 = vld [vmem:[%s2476 + $0x39] sm:$0xff]
      %v2873 = vld [vmem:[%s2476 + $0x49] sm:$0xff]
      %v2874 = vld [vmem:[%s2476 + $0x51] sm:$0xff]
      %v2875 = vld [vmem:[%s2476 + $0x61] sm:$0xff]
      %v2876 = vld [vmem:[%s2476 + $0x69] sm:$0xff]
      %v2877 = vld [vmem:[%s2476 + $0x79] sm:$0xff]
      %v2878 = vld [vmem:[%s2476 + $0x81] sm:$0xff]
      %v2879 = vld [vmem:[%s2476 + $0x91] sm:$0xff]
      %v2880 = vld [vmem:[%s2476 + $0x99] sm:$0xff]
      %v2881 = vld [vmem:[%s2476 + $0xa9] sm:$0xff]
      %v2882 = vld [vmem:[%s2476 + $0xb1] sm:$0xff]
      %v2883 = vld [vmem:[%s2476 + $0xc1] sm:$0xff]
      %v2884 = vld [vmem:[%s2476 + $0xc9] sm:$0xff]
      %v2885 = vld [vmem:[%s2476 + $0xd9] sm:$0xff]
      %v2886 = vld [vmem:[%s2476 + $0xe1] sm:$0xff]
      %v2887 = vld [vmem:[%s2476 + $0xf1] sm:$0xff]
      %v2888 = vld [vmem:[%s2476 + $0xf9] sm:$0xff]
      %v2889 = vld [vmem:[%s2476 + $0x109] sm:$0xff]
      %v2890 = vld [vmem:[%s2476 + $0x111] sm:$0xff]
      %v2891 = vld [vmem:[%s2476 + $0x121] sm:$0xff]
      %v2892 = vld [vmem:[%s2476 + $0x129] sm:$0xff]
      %v2893 = vld [vmem:[%s2476 + $0x139] sm:$0xff]
      %v2894 = vld [vmem:[%s2476 + $0x141] sm:$0xff]
      %v2895 = vld [vmem:[%s2476 + $0x151] sm:$0xff]
      %v2896 = vld [vmem:[%s2476 + $0x159] sm:$0xff]
      %v2897 = vld [vmem:[%s2476 + $0x169] sm:$0xff]
      %v2898 = vld [vmem:[%s2476 + $0x171] sm:$0xff]
      %s2899 = scalar_lea.vmem %s1, 28
      %v2900 = vld [vmem:[%s2899] sm:$0xf]
      %v2902 = vsel %vm265, %v2867, 0
      %v2905 = vsel %vm265, %v2868, 0
      %v2908 = vsel %vm265, %v2869, 0
      %v2911 = vsel %vm265, %v2870, 0
      %v2914 = vsel %vm265, %v2871, 0
      %v2917 = vsel %vm265, %v2872, 0
      %v2920 = vsel %vm265, %v2873, 0
      %v2923 = vsel %vm265, %v2874, 0
      %v2926 = vsel %vm265, %v2875, 0
      %v2929 = vsel %vm265, %v2876, 0
      %v2932 = vsel %vm265, %v2877, 0
      %v2935 = vsel %vm265, %v2878, 0
      %v2938 = vsel %vm265, %v2879, 0
      %v2941 = vsel %vm265, %v2880, 0
      %v2944 = vsel %vm265, %v2881, 0
      %v2947 = vsel %vm265, %v2882, 0
      %v2950 = vsel %vm265, %v2883, 0
      %v2953 = vsel %vm265, %v2884, 0
      %v2956 = vsel %vm265, %v2885, 0
      %v2959 = vsel %vm265, %v2886, 0
      %v2962 = vsel %vm265, %v2887, 0
      %v2965 = vsel %vm265, %v2888, 0
      %v2968 = vsel %vm265, %v2889, 0
      %v2971 = vsel %vm265, %v2890, 0
      %v2974 = vsel %vm265, %v2891, 0
      %v2977 = vsel %vm265, %v2892, 0
      %v2980 = vsel %vm265, %v2893, 0
      %v2983 = vsel %vm265, %v2894, 0
      %v2986 = vsel %vm265, %v2895, 0
      %v2989 = vsel %vm265, %v2896, 0
      %v2992 = vsel %vm265, %v2897, 0
      %v2995 = vsel %vm265, %v2898, 0
      %v2998 = vsel %vm362, %v2900, 0
      %3000 = vmatprep.subr.mxu0 0.0
      %3001 = vmatpush1.msra.mxu0 %v2998
      %3002 = vmatprep.subr.mxu0 0.0
      %3003 = vmatpush1.msra.mxu0 0.0
      %3004 = vmatprep.subr.mxu0 0.0
      %3005 = vmatpush1.msra.mxu0 0.0
      %3006 = vmatprep.subr.mxu0 0.0
      %3007 = vmatpush1.msra.mxu0 0.0
      %3008 = vmatprep.subr.mxu0 0.0
      %3009 = vmatpush1.msra.mxu0 0.0
      %3010 = vmatprep.subr.mxu0 0.0
      %3011 = vmatpush1.msra.mxu0 0.0
      %3012 = vmatprep.subr.mxu0 0.0
      %3013 = vmatpush1.msra.mxu0 0.0
      %3014 = vmatprep.subr.mxu0 0.0
      %3015 = vmatpush1.msra.mxu0 0.0
      %3016 = vmatprep.subr.mxu0 0.0
      %3017 = vmatpush1.msra.mxu0 0.0
      %3018 = vmatprep.subr.mxu0 0.0
      %3019 = vmatpush1.msra.mxu0 0.0
      %3020 = vmatprep.subr.mxu0 0.0
      %3021 = vmatpush1.msra.mxu0 0.0
      %3022 = vmatprep.subr.mxu0 0.0
      %3023 = vmatpush1.msra.mxu0 0.0
      %3024 = vmatprep.subr.mxu0 0.0
      %3025 = vmatpush1.msra.mxu0 0.0
      %3026 = vmatprep.subr.mxu0 0.0
      %3027 = vmatpush1.msra.mxu0 0.0
      %3028 = vmatprep.subr.mxu0 0.0
      %3029 = vmatpush1.msra.mxu0 0.0
      %3030 = vmatprep.subr.mxu0 0.0
      %3031 = vmatpush1.msra.mxu0 0.0
      %3032 = vmatprep.subr.mxu0 0.0
      %3033 = vmatpush1.msra.mxu0 0.0
      %3034 = vmatprep.subr.mxu0 0.0
      %3035 = vmatpush1.msra.mxu0 0.0
      %3036 = vmatprep.subr.mxu0 0.0
      %3037 = vmatpush1.msra.mxu0 0.0
      %3038 = vmatprep.subr.mxu0 0.0
      %3039 = vmatpush1.msra.mxu0 0.0
      %3040 = vmatprep.subr.mxu0 0.0
      %3041 = vmatpush1.msra.mxu0 0.0
      %3042 = vmatprep.subr.mxu0 0.0
      %3043 = vmatpush1.msra.mxu0 0.0
      %3044 = vmatprep.subr.mxu0 0.0
      %3045 = vmatpush1.msra.mxu0 0.0
      %3046 = vmatprep.subr.mxu0 0.0
      %3047 = vmatpush1.msra.mxu0 0.0
      %3048 = vmatprep.subr.mxu0 0.0
      %3049 = vmatpush1.msra.mxu0 0.0
      %3050 = vmatprep.subr.mxu0 0.0
      %3051 = vmatpush1.msra.mxu0 0.0
      %3052 = vmatprep.subr.mxu0 0.0
      %3053 = vmatpush1.msra.mxu0 0.0
      %3054 = vmatprep.subr.mxu0 0.0
      %3055 = vmatpush1.msra.mxu0 0.0
      %3056 = vmatprep.subr.mxu0 0.0
      %3057 = vmatpush1.msra.mxu0 0.0
      %3058 = vmatprep.subr.mxu0 0.0
      %3059 = vmatpush1.msra.mxu0 0.0
      %3060 = vmatprep.subr.mxu0 0.0
      %3061 = vmatpush1.msra.mxu0 0.0
      %3062 = vmatprep.subr.mxu0 0.0
      %3063 = vmatpush1.msra.mxu0 0.0
      %3064 = vmatprep.mubr.f32.mxu0 0.0
      %3065 = vmatmul.mubr.f32.gmra.mrb[0].mxu0 %v2902
      %v3066 = vpop.f32.mrb[0].mxu0
      %v3067 = vadd.f32 0.0, %v3066
      %v3068 = vpop.f32.mrb[0].mxu0
      %3069 = vmatprep.mubr.f32.mxu0 0.0
      %3070 = vmatmul.mubr.f32.gmra.mrb[0].mxu0 %v2905
      %v3071 = vpop.f32.mrb[0].mxu0
      %v3072 = vadd.f32 0.0, %v3071
      %v3073 = vpop.f32.mrb[0].mxu0
      %3074 = vmatprep.mubr.f32.mxu0 0.0
      %3075 = vmatmul.mubr.f32.gmra.mrb[0].mxu0 %v2908
      %v3076 = vpop.f32.mrb[0].mxu0
      %v3077 = vadd.f32 0.0, %v3076
      %v3078 = vpop.f32.mrb[0].mxu0
      %3079 = vmatprep.mubr.f32.mxu0 0.0
      %3080 = vmatmul.mubr.f32.gmra.mrb[0].mxu0 %v2911
      %v3081 = vpop.f32.mrb[0].mxu0
      %v3082 = vadd.f32 0.0, %v3081
      %v3083 = vpop.f32.mrb[0].mxu0
      %3084 = vmatprep.mubr.f32.mxu0 0.0
      %3085 = vmatmul.mubr.f32.gmra.mrb[0].mxu0 %v2914
      %v3086 = vpop.f32.mrb[0].mxu0
      %v3087 = vadd.f32 0.0, %v3086
      %v3088 = vpop.f32.mrb[0].mxu0
      %3089 = vmatprep.mubr.f32.mxu0 0.0
      %3090 = vmatmul.mubr.f32.gmra.mrb[0].mxu0 %v2917
      %v3091 = vpop.f32.mrb[0].mxu0
      %v3092 = vadd.f32 0.0, %v3091
      %v3093 = vpop.f32.mrb[0].mxu0
      %3094 = vmatprep.mubr.f32.mxu0 0.0
      %3095 = vmatmul.mubr.f32.gmra.mrb[0].mxu0 %v2920
      %v3096 = vpop.f32.mrb[0].mxu0
      %v3097 = vadd.f32 0.0, %v3096
      %v3098 = vpop.f32.mrb[0].mxu0
      %3099 = vmatprep.mubr.f32.mxu0 0.0
      %3100 = vmatmul.mubr.f32.gmra.mrb[0].mxu0 %v2923
      %v3101 = vpop.f32.mrb[0].mxu0
      %v3102 = vadd.f32 0.0, %v3101
      %v3103 = vpop.f32.mrb[0].mxu0
      %3104 = vmatprep.mubr.f32.mxu0 0.0
      %3105 = vmatmul.mubr.f32.gmra.mrb[0].mxu0 %v2926
      %v3106 = vpop.f32.mrb[0].mxu0
      %v3107 = vadd.f32 0.0, %v3106
      %v3108 = vpop.f32.mrb[0].mxu0
      %3109 = vmatprep.mubr.f32.mxu0 0.0
      %3110 = vmatmul.mubr.f32.gmra.mrb[0].mxu0 %v2929
      %v3111 = vpop.f32.mrb[0].mxu0
      %v3112 = vadd.f32 0.0, %v3111
      %v3113 = vpop.f32.mrb[0].mxu0
      %3114 = vmatprep.mubr.f32.mxu0 0.0
      %3115 = vmatmul.mubr.f32.gmra.mrb[0].mxu0 %v2932
      %v3116 = vpop.f32.mrb[0].mxu0
      %v3117 = vadd.f32 0.0, %v3116
      %v3118 = vpop.f32.mrb[0].mxu0
      %3119 = vmatprep.mubr.f32.mxu0 0.0
      %3120 = vmatmul.mubr.f32.gmra.mrb[0].mxu0 %v2935
      %v3121 = vpop.f32.mrb[0].mxu0
      %v3122 = vadd.f32 0.0, %v3121
      %v3123 = vpop.f32.mrb[0].mxu0
      %3124 = vmatprep.mubr.f32.mxu0 0.0
      %3125 = vmatmul.mubr.f32.gmra.mrb[0].mxu0 %v2938
      %v3126 = vpop.f32.mrb[0].mxu0
      %v3127 = vadd.f32 0.0, %v3126
      %v3128 = vpop.f32.mrb[0].mxu0
      %3129 = vmatprep.mubr.f32.mxu0 0.0
      %3130 = vmatmul.mubr.f32.gmra.mrb[0].mxu0 %v2941
      %v3131 = vpop.f32.mrb[0].mxu0
      %v3132 = vadd.f32 0.0, %v3131
      %v3133 = vpop.f32.mrb[0].mxu0
      %3134 = vmatprep.mubr.f32.mxu0 0.0
      %3135 = vmatmul.mubr.f32.gmra.mrb[0].mxu0 %v2944
      %v3136 = vpop.f32.mrb[0].mxu0
      %v3137 = vadd.f32 0.0, %v3136
      %v3138 = vpop.f32.mrb[0].mxu0
      %3139 = vmatprep.mubr.f32.mxu0 0.0
      %3140 = vmatmul.mubr.f32.gmra.mrb[0].mxu0 %v2947
      %v3141 = vpop.f32.mrb[0].mxu0
      %v3142 = vadd.f32 0.0, %v3141
      %v3143 = vpop.f32.mrb[0].mxu0
      %3144 = vmatprep.mubr.f32.mxu0 0.0
      %3145 = vmatmul.mubr.f32.gmra.mrb[0].mxu0 %v2950
      %v3146 = vpop.f32.mrb[0].mxu0
      %v3147 = vadd.f32 0.0, %v3146
      %v3148 = vpop.f32.mrb[0].mxu0
      %3149 = vmatprep.mubr.f32.mxu0 0.0
      %3150 = vmatmul.mubr.f32.gmra.mrb[0].mxu0 %v2953
      %v3151 = vpop.f32.mrb[0].mxu0
      %v3152 = vadd.f32 0.0, %v3151
      %v3153 = vpop.f32.mrb[0].mxu0
      %3154 = vmatprep.mubr.f32.mxu0 0.0
      %3155 = vmatmul.mubr.f32.gmra.mrb[0].mxu0 %v2956
      %v3156 = vpop.f32.mrb[0].mxu0
      %v3157 = vadd.f32 0.0, %v3156
      %v3158 = vpop.f32.mrb[0].mxu0
      %3159 = vmatprep.mubr.f32.mxu0 0.0
      %3160 = vmatmul.mubr.f32.gmra.mrb[0].mxu0 %v2959
      %v3161 = vpop.f32.mrb[0].mxu0
      %v3162 = vadd.f32 0.0, %v3161
      %v3163 = vpop.f32.mrb[0].mxu0
      %3164 = vmatprep.mubr.f32.mxu0 0.0
      %3165 = vmatmul.mubr.f32.gmra.mrb[0].mxu0 %v2962
      %v3166 = vpop.f32.mrb[0].mxu0
      %v3167 = vadd.f32 0.0, %v3166
      %v3168 = vpop.f32.mrb[0].mxu0
      %3169 = vmatprep.mubr.f32.mxu0 0.0
      %3170 = vmatmul.mubr.f32.gmra.mrb[0].mxu0 %v2965
      %v3171 = vpop.f32.mrb[0].mxu0
      %v3172 = vadd.f32 0.0, %v3171
      %v3173 = vpop.f32.mrb[0].mxu0
      %3174 = vmatprep.mubr.f32.mxu0 0.0
      %3175 = vmatmul.mubr.f32.gmra.mrb[0].mxu0 %v2968
      %v3176 = vpop.f32.mrb[0].mxu0
      %v3177 = vadd.f32 0.0, %v3176
      %v3178 = vpop.f32.mrb[0].mxu0
      %3179 = vmatprep.mubr.f32.mxu0 0.0
      %3180 = vmatmul.mubr.f32.gmra.mrb[0].mxu0 %v2971
      %v3181 = vpop.f32.mrb[0].mxu0
      %v3182 = vadd.f32 0.0, %v3181
      %v3183 = vpop.f32.mrb[0].mxu0
      %3184 = vmatprep.mubr.f32.mxu0 0.0
      %3185 = vmatmul.mubr.f32.gmra.mrb[0].mxu0 %v2974
      %v3186 = vpop.f32.mrb[0].mxu0
      %v3187 = vadd.f32 0.0, %v3186
      %v3188 = vpop.f32.mrb[0].mxu0
      %3189 = vmatprep.mubr.f32.mxu0 0.0
      %3190 = vmatmul.mubr.f32.gmra.mrb[0].mxu0 %v2977
      %v3191 = vpop.f32.mrb[0].mxu0
      %v3192 = vadd.f32 0.0, %v3191
      %v3193 = vpop.f32.mrb[0].mxu0
      %3194 = vmatprep.mubr.f32.mxu0 0.0
      %3195 = vmatmul.mubr.f32.gmra.mrb[0].mxu0 %v2980
      %v3196 = vpop.f32.mrb[0].mxu0
      %v3197 = vadd.f32 0.0, %v3196
      %v3198 = vpop.f32.mrb[0].mxu0
      %3199 = vmatprep.mubr.f32.mxu0 0.0
      %3200 = vmatmul.mubr.f32.gmra.mrb[0].mxu0 %v2983
      %v3201 = vpop.f32.mrb[0].mxu0
      %v3202 = vadd.f32 0.0, %v3201
      %v3203 = vpop.f32.mrb[0].mxu0
      %3204 = vmatprep.mubr.f32.mxu0 0.0
      %3205 = vmatmul.mubr.f32.gmra.mrb[0].mxu0 %v2986
      %v3206 = vpop.f32.mrb[0].mxu0
      %v3207 = vadd.f32 0.0, %v3206
      %v3208 = vpop.f32.mrb[0].mxu0
      %3209 = vmatprep.mubr.f32.mxu0 0.0
      %3210 = vmatmul.mubr.f32.gmra.mrb[0].mxu0 %v2989
      %v3211 = vpop.f32.mrb[0].mxu0
      %v3212 = vadd.f32 0.0, %v3211
      %v3213 = vpop.f32.mrb[0].mxu0
      %3214 = vmatprep.mubr.f32.mxu0 0.0
      %3215 = vmatmul.mubr.f32.gmra.mrb[0].mxu0 %v2992
      %v3216 = vpop.f32.mrb[0].mxu0
      %v3217 = vadd.f32 0.0, %v3216
      %v3218 = vpop.f32.mrb[0].mxu0
      %3219 = vmatprep.mubr.f32.mxu0 0.0
      %3220 = vmatmul.mubr.f32.gmra.mrb[0].mxu0 %v2995
      %v3221 = vpop.f32.mrb[0].mxu0
      %v3222 = vadd.f32 0.0, %v3221
      %v3223 = vpop.f32.mrb[0].mxu0
      %3224 = vdwg.mxu0
      %v3225 = vadd.f32 %v2835, %v3067
      %v3226 = vadd.f32 %v2836, %v3072
      %v3227 = vadd.f32 %v2837, %v3077
      %v3228 = vadd.f32 %v2838, %v3082
      %v3229 = vadd.f32 %v2839, %v3087
      %v3230 = vadd.f32 %v2840, %v3092
      %v3231 = vadd.f32 %v2841, %v3097
      %v3232 = vadd.f32 %v2842, %v3102
      %v3233 = vadd.f32 %v2843, %v3107
      %v3234 = vadd.f32 %v2844, %v3112
      %v3235 = vadd.f32 %v2845, %v3117
      %v3236 = vadd.f32 %v2846, %v3122
      %v3237 = vadd.f32 %v2847, %v3127
      %v3238 = vadd.f32 %v2848, %v3132
      %v3239 = vadd.f32 %v2849, %v3137
      %v3240 = vadd.f32 %v2850, %v3142
      %v3241 = vadd.f32 %v2851, %v3147
      %v3242 = vadd.f32 %v2852, %v3152
      %v3243 = vadd.f32 %v2853, %v3157
      %v3244 = vadd.f32 %v2854, %v3162
      %v3245 = vadd.f32 %v2855, %v3167
      %v3246 = vadd.f32 %v2856, %v3172
      %v3247 = vadd.f32 %v2857, %v3177
      %v3248 = vadd.f32 %v2858, %v3182
      %v3249 = vadd.f32 %v2859, %v3187
      %v3250 = vadd.f32 %v2860, %v3192
      %v3251 = vadd.f32 %v2861, %v3197
      %v3252 = vadd.f32 %v2862, %v3202
      %v3253 = vadd.f32 %v2863, %v3207
      %v3254 = vadd.f32 %v2864, %v3212
      %v3255 = vadd.f32 %v2865, %v3217
      %v3256 = vadd.f32 %v2866, %v3222
      %v3257 = vld [vmem:[%s2476 + $0x2] sm:$0xff]
      %v3258 = vld [vmem:[%s2476 + $0xa] sm:$0xff]
      %v3259 = vld [vmem:[%s2476 + $0x1a] sm:$0xff]
      %v3260 = vld [vmem:[%s2476 + $0x22] sm:$0xff]
      %v3261 = vld [vmem:[%s2476 + $0x32] sm:$0xff]
      %v3262 = vld [vmem:[%s2476 + $0x3a] sm:$0xff]
      %v3263 = vld [vmem:[%s2476 + $0x4a] sm:$0xff]
      %v3264 = vld [vmem:[%s2476 + $0x52] sm:$0xff]
      %v3265 = vld [vmem:[%s2476 + $0x62] sm:$0xff]
      %v3266 = vld [vmem:[%s2476 + $0x6a] sm:$0xff]
      %v3267 = vld [vmem:[%s2476 + $0x7a] sm:$0xff]
      %v3268 = vld [vmem:[%s2476 + $0x82] sm:$0xff]
      %v3269 = vld [vmem:[%s2476 + $0x92] sm:$0xff]
      %v3270 = vld [vmem:[%s2476 + $0x9a] sm:$0xff]
      %v3271 = vld [vmem:[%s2476 + $0xaa] sm:$0xff]
      %v3272 = vld [vmem:[%s2476 + $0xb2] sm:$0xff]
      %v3273 = vld [vmem:[%s2476 + $0xc2] sm:$0xff]
      %v3274 = vld [vmem:[%s2476 + $0xca] sm:$0xff]
      %v3275 = vld [vmem:[%s2476 + $0xda] sm:$0xff]
      %v3276 = vld [vmem:[%s2476 + $0xe2] sm:$0xff]
      %v3277 = vld [vmem:[%s2476 + $0xf2] sm:$0xff]
      %v3278 = vld [vmem:[%s2476 + $0xfa] sm:$0xff]
      %v3279 = vld [vmem:[%s2476 + $0x10a] sm:$0xff]
      %v3280 = vld [vmem:[%s2476 + $0x112] sm:$0xff]
      %v3281 = vld [vmem:[%s2476 + $0x122] sm:$0xff]
      %v3282 = vld [vmem:[%s2476 + $0x12a] sm:$0xff]
      %v3283 = vld [vmem:[%s2476 + $0x13a] sm:$0xff]
      %v3284 = vld [vmem:[%s2476 + $0x142] sm:$0xff]
      %v3285 = vld [vmem:[%s2476 + $0x152] sm:$0xff]
      %v3286 = vld [vmem:[%s2476 + $0x15a] sm:$0xff]
      %v3287 = vld [vmem:[%s2476 + $0x16a] sm:$0xff]
      %v3288 = vld [vmem:[%s2476 + $0x172] sm:$0xff]
      %s3289 = scalar_lea.vmem %s1, 32
      %v3290 = vld [vmem:[%s3289] sm:$0xf]
      %v3292 = vsel %vm265, %v3257, 0
      %v3295 = vsel %vm265, %v3258, 0
      %v3298 = vsel %vm265, %v3259, 0
      %v3301 = vsel %vm265, %v3260, 0
      %v3304 = vsel %vm265, %v3261, 0
      %v3307 = vsel %vm265, %v3262, 0
      %v3310 = vsel %vm265, %v3263, 0
      %v3313 = vsel %vm265, %v3264, 0
      %v3316 = vsel %vm265, %v3265, 0
      %v3319 = vsel %vm265, %v3266, 0
      %v3322 = vsel %vm265, %v3267, 0
      %v3325 = vsel %vm265, %v3268, 0
      %v3328 = vsel %vm265, %v3269, 0
      %v3331 = vsel %vm265, %v3270, 0
      %v3334 = vsel %vm265, %v3271, 0
      %v3337 = vsel %vm265, %v3272, 0
      %v3340 = vsel %vm265, %v3273, 0
      %v3343 = vsel %vm265, %v3274, 0
      %v3346 = vsel %vm265, %v3275, 0
      %v3349 = vsel %vm265, %v3276, 0
      %v3352 = vsel %vm265, %v3277, 0
      %v3355 = vsel %vm265, %v3278, 0
      %v3358 = vsel %vm265, %v3279, 0
      %v3361 = vsel %vm265, %v3280, 0
      %v3364 = vsel %vm265, %v3281, 0
      %v3367 = vsel %vm265, %v3282, 0
      %v3370 = vsel %vm265, %v3283, 0
      %v3373 = vsel %vm265, %v3284, 0
      %v3376 = vsel %vm265, %v3285, 0
      %v3379 = vsel %vm265, %v3286, 0
      %v3382 = vsel %vm265, %v3287, 0
      %v3385 = vsel %vm265, %v3288, 0
      %v3388 = vsel %vm362, %v3290, 0
      %3390 = vmatprep.subr.mxu0 0.0
      %3391 = vmatpush1.msra.mxu0 %v3388
      %3392 = vmatprep.subr.mxu0 0.0
      %3393 = vmatpush1.msra.mxu0 0.0
      %3394 = vmatprep.subr.mxu0 0.0
      %3395 = vmatpush1.msra.mxu0 0.0
      %3396 = vmatprep.subr.mxu0 0.0
      %3397 = vmatpush1.msra.mxu0 0.0
      %3398 = vmatprep.subr.mxu0 0.0
      %3399 = vmatpush1.msra.mxu0 0.0
      %3400 = vmatprep.subr.mxu0 0.0
      %3401 = vmatpush1.msra.mxu0 0.0
      %3402 = vmatprep.subr.mxu0 0.0
      %3403 = vmatpush1.msra.mxu0 0.0
      %3404 = vmatprep.subr.mxu0 0.0
      %3405 = vmatpush1.msra.mxu0 0.0
      %3406 = vmatprep.subr.mxu0 0.0
      %3407 = vmatpush1.msra.mxu0 0.0
      %3408 = vmatprep.subr.mxu0 0.0
      %3409 = vmatpush1.msra.mxu0 0.0
      %3410 = vmatprep.subr.mxu0 0.0
      %3411 = vmatpush1.msra.mxu0 0.0
      %3412 = vmatprep.subr.mxu0 0.0
      %3413 = vmatpush1.msra.mxu0 0.0
      %3414 = vmatprep.subr.mxu0 0.0
      %3415 = vmatpush1.msra.mxu0 0.0
      %3416 = vmatprep.subr.mxu0 0.0
      %3417 = vmatpush1.msra.mxu0 0.0
      %3418 = vmatprep.subr.mxu0 0.0
      %3419 = vmatpush1.msra.mxu0 0.0
      %3420 = vmatprep.subr.mxu0 0.0
      %3421 = vmatpush1.msra.mxu0 0.0
      %3422 = vmatprep.subr.mxu0 0.0
      %3423 = vmatpush1.msra.mxu0 0.0
      %3424 = vmatprep.subr.mxu0 0.0
      %3425 = vmatpush1.msra.mxu0 0.0
      %3426 = vmatprep.subr.mxu0 0.0
      %3427 = vmatpush1.msra.mxu0 0.0
      %3428 = vmatprep.subr.mxu0 0.0
      %3429 = vmatpush1.msra.mxu0 0.0
      %3430 = vmatprep.subr.mxu0 0.0
      %3431 = vmatpush1.msra.mxu0 0.0
      %3432 = vmatprep.subr.mxu0 0.0
      %3433 = vmatpush1.msra.mxu0 0.0
      %3434 = vmatprep.subr.mxu0 0.0
      %3435 = vmatpush1.msra.mxu0 0.0
      %3436 = vmatprep.subr.mxu0 0.0
      %3437 = vmatpush1.msra.mxu0 0.0
      %3438 = vmatprep.subr.mxu0 0.0
      %3439 = vmatpush1.msra.mxu0 0.0
      %3440 = vmatprep.subr.mxu0 0.0
      %3441 = vmatpush1.msra.mxu0 0.0
      %3442 = vmatprep.subr.mxu0 0.0
      %3443 = vmatpush1.msra.mxu0 0.0
      %3444 = vmatprep.subr.mxu0 0.0
      %3445 = vmatpush1.msra.mxu0 0.0
      %3446 = vmatprep.subr.mxu0 0.0
      %3447 = vmatpush1.msra.mxu0 0.0
      %3448 = vmatprep.subr.mxu0 0.0
      %3449 = vmatpush1.msra.mxu0 0.0
      %3450 = vmatprep.subr.mxu0 0.0
      %3451 = vmatpush1.msra.mxu0 0.0
      %3452 = vmatprep.subr.mxu0 0.0
      %3453 = vmatpush1.msra.mxu0 0.0
      %3454 = vmatprep.mubr.f32.mxu0 0.0
      %3455 = vmatmul.mubr.f32.gmra.mrb[0].mxu0 %v3292
      %v3456 = vpop.f32.mrb[0].mxu0
      %v3457 = vadd.f32 0.0, %v3456
      %v3458 = vpop.f32.mrb[0].mxu0
      %3459 = vmatprep.mubr.f32.mxu0 0.0
      %3460 = vmatmul.mubr.f32.gmra.mrb[0].mxu0 %v3295
      %v3461 = vpop.f32.mrb[0].mxu0
      %v3462 = vadd.f32 0.0, %v3461
      %v3463 = vpop.f32.mrb[0].mxu0
      %3464 = vmatprep.mubr.f32.mxu0 0.0
      %3465 = vmatmul.mubr.f32.gmra.mrb[0].mxu0 %v3298
      %v3466 = vpop.f32.mrb[0].mxu0
      %v3467 = vadd.f32 0.0, %v3466
      %v3468 = vpop.f32.mrb[0].mxu0
      %3469 = vmatprep.mubr.f32.mxu0 0.0
      %3470 = vmatmul.mubr.f32.gmra.mrb[0].mxu0 %v3301
      %v3471 = vpop.f32.mrb[0].mxu0
      %v3472 = vadd.f32 0.0, %v3471
      %v3473 = vpop.f32.mrb[0].mxu0
      %3474 = vmatprep.mubr.f32.mxu0 0.0
      %3475 = vmatmul.mubr.f32.gmra.mrb[0].mxu0 %v3304
      %v3476 = vpop.f32.mrb[0].mxu0
      %v3477 = vadd.f32 0.0, %v3476
      %v3478 = vpop.f32.mrb[0].mxu0
      %3479 = vmatprep.mubr.f32.mxu0 0.0
      %3480 = vmatmul.mubr.f32.gmra.mrb[0].mxu0 %v3307
      %v3481 = vpop.f32.mrb[0].mxu0
      %v3482 = vadd.f32 0.0, %v3481
      %v3483 = vpop.f32.mrb[0].mxu0
      %3484 = vmatprep.mubr.f32.mxu0 0.0
      %3485 = vmatmul.mubr.f32.gmra.mrb[0].mxu0 %v3310
      %v3486 = vpop.f32.mrb[0].mxu0
      %v3487 = vadd.f32 0.0, %v3486
      %v3488 = vpop.f32.mrb[0].mxu0
      %3489 = vmatprep.mubr.f32.mxu0 0.0
      %3490 = vmatmul.mubr.f32.gmra.mrb[0].mxu0 %v3313
      %v3491 = vpop.f32.mrb[0].mxu0
      %v3492 = vadd.f32 0.0, %v3491
      %v3493 = vpop.f32.mrb[0].mxu0
      %3494 = vmatprep.mubr.f32.mxu0 0.0
      %3495 = vmatmul.mubr.f32.gmra.mrb[0].mxu0 %v3316
      %v3496 = vpop.f32.mrb[0].mxu0
      %v3497 = vadd.f32 0.0, %v3496
      %v3498 = vpop.f32.mrb[0].mxu0
      %3499 = vmatprep.mubr.f32.mxu0 0.0
      %3500 = vmatmul.mubr.f32.gmra.mrb[0].mxu0 %v3319
      %v3501 = vpop.f32.mrb[0].mxu0
      %v3502 = vadd.f32 0.0, %v3501
      %v3503 = vpop.f32.mrb[0].mxu0
      %3504 = vmatprep.mubr.f32.mxu0 0.0
      %3505 = vmatmul.mubr.f32.gmra.mrb[0].mxu0 %v3322
      %v3506 = vpop.f32.mrb[0].mxu0
      %v3507 = vadd.f32 0.0, %v3506
      %v3508 = vpop.f32.mrb[0].mxu0
      %3509 = vmatprep.mubr.f32.mxu0 0.0
      %3510 = vmatmul.mubr.f32.gmra.mrb[0].mxu0 %v3325
      %v3511 = vpop.f32.mrb[0].mxu0
      %v3512 = vadd.f32 0.0, %v3511
      %v3513 = vpop.f32.mrb[0].mxu0
      %3514 = vmatprep.mubr.f32.mxu0 0.0
      %3515 = vmatmul.mubr.f32.gmra.mrb[0].mxu0 %v3328
      %v3516 = vpop.f32.mrb[0].mxu0
      %v3517 = vadd.f32 0.0, %v3516
      %v3518 = vpop.f32.mrb[0].mxu0
      %3519 = vmatprep.mubr.f32.mxu0 0.0
      %3520 = vmatmul.mubr.f32.gmra.mrb[0].mxu0 %v3331
      %v3521 = vpop.f32.mrb[0].mxu0
      %v3522 = vadd.f32 0.0, %v3521
      %v3523 = vpop.f32.mrb[0].mxu0
      %3524 = vmatprep.mubr.f32.mxu0 0.0
      %3525 = vmatmul.mubr.f32.gmra.mrb[0].mxu0 %v3334
      %v3526 = vpop.f32.mrb[0].mxu0
      %v3527 = vadd.f32 0.0, %v3526
      %v3528 = vpop.f32.mrb[0].mxu0
      %3529 = vmatprep.mubr.f32.mxu0 0.0
      %3530 = vmatmul.mubr.f32.gmra.mrb[0].mxu0 %v3337
      %v3531 = vpop.f32.mrb[0].mxu0
      %v3532 = vadd.f32 0.0, %v3531
      %v3533 = vpop.f32.mrb[0].mxu0
      %3534 = vmatprep.mubr.f32.mxu0 0.0
      %3535 = vmatmul.mubr.f32.gmra.mrb[0].mxu0 %v3340
      %v3536 = vpop.f32.mrb[0].mxu0
      %v3537 = vadd.f32 0.0, %v3536
      %v3538 = vpop.f32.mrb[0].mxu0
      %3539 = vmatprep.mubr.f32.mxu0 0.0
      %3540 = vmatmul.mubr.f32.gmra.mrb[0].mxu0 %v3343
      %v3541 = vpop.f32.mrb[0].mxu0
      %v3542 = vadd.f32 0.0, %v3541
      %v3543 = vpop.f32.mrb[0].mxu0
      %3544 = vmatprep.mubr.f32.mxu0 0.0
      %3545 = vmatmul.mubr.f32.gmra.mrb[0].mxu0 %v3346
      %v3546 = vpop.f32.mrb[0].mxu0
      %v3547 = vadd.f32 0.0, %v3546
      %v3548 = vpop.f32.mrb[0].mxu0
      %3549 = vmatprep.mubr.f32.mxu0 0.0
      %3550 = vmatmul.mubr.f32.gmra.mrb[0].mxu0 %v3349
      %v3551 = vpop.f32.mrb[0].mxu0
      %v3552 = vadd.f32 0.0, %v3551
      %v3553 = vpop.f32.mrb[0].mxu0
      %3554 = vmatprep.mubr.f32.mxu0 0.0
      %3555 = vmatmul.mubr.f32.gmra.mrb[0].mxu0 %v3352
      %v3556 = vpop.f32.mrb[0].mxu0
      %v3557 = vadd.f32 0.0, %v3556
      %v3558 = vpop.f32.mrb[0].mxu0
      %3559 = vmatprep.mubr.f32.mxu0 0.0
      %3560 = vmatmul.mubr.f32.gmra.mrb[0].mxu0 %v3355
      %v3561 = vpop.f32.mrb[0].mxu0
      %v3562 = vadd.f32 0.0, %v3561
      %v3563 = vpop.f32.mrb[0].mxu0
      %3564 = vmatprep.mubr.f32.mxu0 0.0
      %3565 = vmatmul.mubr.f32.gmra.mrb[0].mxu0 %v3358
      %v3566 = vpop.f32.mrb[0].mxu0
      %v3567 = vadd.f32 0.0, %v3566
      %v3568 = vpop.f32.mrb[0].mxu0
      %3569 = vmatprep.mubr.f32.mxu0 0.0
      %3570 = vmatmul.mubr.f32.gmra.mrb[0].mxu0 %v3361
      %v3571 = vpop.f32.mrb[0].mxu0
      %v3572 = vadd.f32 0.0, %v3571
      %v3573 = vpop.f32.mrb[0].mxu0
      %3574 = vmatprep.mubr.f32.mxu0 0.0
      %3575 = vmatmul.mubr.f32.gmra.mrb[0].mxu0 %v3364
      %v3576 = vpop.f32.mrb[0].mxu0
      %v3577 = vadd.f32 0.0, %v3576
      %v3578 = vpop.f32.mrb[0].mxu0
      %3579 = vmatprep.mubr.f32.mxu0 0.0
      %3580 = vmatmul.mubr.f32.gmra.mrb[0].mxu0 %v3367
      %v3581 = vpop.f32.mrb[0].mxu0
      %v3582 = vadd.f32 0.0, %v3581
      %v3583 = vpop.f32.mrb[0].mxu0
      %3584 = vmatprep.mubr.f32.mxu0 0.0
      %3585 = vmatmul.mubr.f32.gmra.mrb[0].mxu0 %v3370
      %v3586 = vpop.f32.mrb[0].mxu0
      %v3587 = vadd.f32 0.0, %v3586
      %v3588 = vpop.f32.mrb[0].mxu0
      %3589 = vmatprep.mubr.f32.mxu0 0.0
      %3590 = vmatmul.mubr.f32.gmra.mrb[0].mxu0 %v3373
      %v3591 = vpop.f32.mrb[0].mxu0
      %v3592 = vadd.f32 0.0, %v3591
      %v3593 = vpop.f32.mrb[0].mxu0
      %3594 = vmatprep.mubr.f32.mxu0 0.0
      %3595 = vmatmul.mubr.f32.gmra.mrb[0].mxu0 %v3376
      %v3596 = vpop.f32.mrb[0].mxu0
      %v3597 = vadd.f32 0.0, %v3596
      %v3598 = vpop.f32.mrb[0].mxu0
      %3599 = vmatprep.mubr.f32.mxu0 0.0
      %3600 = vmatmul.mubr.f32.gmra.mrb[0].mxu0 %v3379
      %v3601 = vpop.f32.mrb[0].mxu0
      %v3602 = vadd.f32 0.0, %v3601
      %v3603 = vpop.f32.mrb[0].mxu0
      %3604 = vmatprep.mubr.f32.mxu0 0.0
      %3605 = vmatmul.mubr.f32.gmra.mrb[0].mxu0 %v3382
      %v3606 = vpop.f32.mrb[0].mxu0
      %v3607 = vadd.f32 0.0, %v3606
      %v3608 = vpop.f32.mrb[0].mxu0
      %3609 = vmatprep.mubr.f32.mxu0 0.0
      %3610 = vmatmul.mubr.f32.gmra.mrb[0].mxu0 %v3385
      %v3611 = vpop.f32.mrb[0].mxu0
      %v3612 = vadd.f32 0.0, %v3611
      %v3613 = vpop.f32.mrb[0].mxu0
      %3614 = vdwg.mxu0
      %v3615 = vadd.f32 %v3225, %v3457
      %v3616 = vadd.f32 %v3226, %v3462
      %v3617 = vadd.f32 %v3227, %v3467
      %v3618 = vadd.f32 %v3228, %v3472
      %v3619 = vadd.f32 %v3229, %v3477
      %v3620 = vadd.f32 %v3230, %v3482
      %v3621 = vadd.f32 %v3231, %v3487
      %v3622 = vadd.f32 %v3232, %v3492
      %v3623 = vadd.f32 %v3233, %v3497
      %v3624 = vadd.f32 %v3234, %v3502
      %v3625 = vadd.f32 %v3235, %v3507
      %v3626 = vadd.f32 %v3236, %v3512
      %v3627 = vadd.f32 %v3237, %v3517
      %v3628 = vadd.f32 %v3238, %v3522
      %v3629 = vadd.f32 %v3239, %v3527
      %v3630 = vadd.f32 %v3240, %v3532
      %v3631 = vadd.f32 %v3241, %v3537
      %v3632 = vadd.f32 %v3242, %v3542
      %v3633 = vadd.f32 %v3243, %v3547
      %v3634 = vadd.f32 %v3244, %v3552
      %v3635 = vadd.f32 %v3245, %v3557
      %v3636 = vadd.f32 %v3246, %v3562
      %v3637 = vadd.f32 %v3247, %v3567
      %v3638 = vadd.f32 %v3248, %v3572
      %v3639 = vadd.f32 %v3249, %v3577
      %v3640 = vadd.f32 %v3250, %v3582
      %v3641 = vadd.f32 %v3251, %v3587
      %v3642 = vadd.f32 %v3252, %v3592
      %v3643 = vadd.f32 %v3253, %v3597
      %v3644 = vadd.f32 %v3254, %v3602
      %v3645 = vadd.f32 %v3255, %v3607
      %v3646 = vadd.f32 %v3256, %v3612
      %v3647 = vld [vmem:[%s2] sm:$0x1]
      %v3649 = vlaneseq
      %v3650 = vshrl.u32 %v3649, 7
      %v3651 = vsub.s32 0, %v3650
      %v3652 = vrot.slane %v3647, %v3651
      %v3654 = vmul.f32 %v3615, %v3652
      %v3655 = vmul.f32 %v3616, %v3652
      %v3656 = vmul.f32 %v3617, %v3652
      %v3657 = vmul.f32 %v3618, %v3652
      %v3658 = vmul.f32 %v3619, %v3652
      %v3659 = vmul.f32 %v3620, %v3652
      %v3660 = vmul.f32 %v3621, %v3652
      %v3661 = vmul.f32 %v3622, %v3652
      %v3662 = vmul.f32 %v3623, %v3652
      %v3663 = vmul.f32 %v3624, %v3652
      %v3664 = vmul.f32 %v3625, %v3652
      %v3665 = vmul.f32 %v3626, %v3652
      %v3666 = vmul.f32 %v3627, %v3652
      %v3667 = vmul.f32 %v3628, %v3652
      %v3668 = vmul.f32 %v3629, %v3652
      %v3669 = vmul.f32 %v3630, %v3652
      %v3670 = vmul.f32 %v3631, %v3652
      %v3671 = vmul.f32 %v3632, %v3652
      %v3672 = vmul.f32 %v3633, %v3652
      %v3673 = vmul.f32 %v3634, %v3652
      %v3674 = vmul.f32 %v3635, %v3652
      %v3675 = vmul.f32 %v3636, %v3652
      %v3676 = vmul.f32 %v3637, %v3652
      %v3677 = vmul.f32 %v3638, %v3652
      %v3678 = vmul.f32 %v3639, %v3652
      %v3679 = vmul.f32 %v3640, %v3652
      %v3680 = vmul.f32 %v3641, %v3652
      %v3681 = vmul.f32 %v3642, %v3652
      %v3682 = vmul.f32 %v3643, %v3652
      %v3683 = vmul.f32 %v3644, %v3652
      %v3684 = vmul.f32 %v3645, %v3652
      %v3685 = vmul.f32 %v3646, %v3652
      %v3686 = vld [vmem:[%s3] sm:$0x1]
      %v3688 = vlaneseq
      %v3689 = vshrl.u32 %v3688, 7
      %v3690 = vsub.s32 0, %v3689
      %v3691 = vrot.slane %v3686, %v3690
      %v3693 = vadd.f32 %v3654, %v3691
      %v3694 = vadd.f32 %v3655, %v3691
      %v3695 = vadd.f32 %v3656, %v3691
      %v3696 = vadd.f32 %v3657, %v3691
      %v3697 = vadd.f32 %v3658, %v3691
      %v3698 = vadd.f32 %v3659, %v3691
      %v3699 = vadd.f32 %v3660, %v3691
      %v3700 = vadd.f32 %v3661, %v3691
      %v3701 = vadd.f32 %v3662, %v3691
      %v3702 = vadd.f32 %v3663, %v3691
      %v3703 = vadd.f32 %v3664, %v3691
      %v3704 = vadd.f32 %v3665, %v3691
      %v3705 = vadd.f32 %v3666, %v3691
      %v3706 = vadd.f32 %v3667, %v3691
      %v3707 = vadd.f32 %v3668, %v3691
      %v3708 = vadd.f32 %v3669, %v3691
      %v3709 = vadd.f32 %v3670, %v3691
      %v3710 = vadd.f32 %v3671, %v3691
      %v3711 = vadd.f32 %v3672, %v3691
      %v3712 = vadd.f32 %v3673, %v3691
      %v3713 = vadd.f32 %v3674, %v3691
      %v3714 = vadd.f32 %v3675, %v3691
      %v3715 = vadd.f32 %v3676, %v3691
      %v3716 = vadd.f32 %v3677, %v3691
      %v3717 = vadd.f32 %v3678, %v3691
      %v3718 = vadd.f32 %v3679, %v3691
      %v3719 = vadd.f32 %v3680, %v3691
      %v3720 = vadd.f32 %v3681, %v3691
      %v3721 = vadd.f32 %v3682, %v3691
      %v3722 = vadd.f32 %v3683, %v3691
      %v3723 = vadd.f32 %v3684, %v3691
      %v3724 = vadd.f32 %v3685, %v3691
      %v3725 = vxor.u32 %v3693, 2147483648
      %v3726 = vxor.u32 %v3694, 2147483648
      %v3727 = vxor.u32 %v3695, 2147483648
      %v3728 = vxor.u32 %v3696, 2147483648
      %v3729 = vxor.u32 %v3697, 2147483648
      %v3730 = vxor.u32 %v3698, 2147483648
      %v3731 = vxor.u32 %v3699, 2147483648
      %v3732 = vxor.u32 %v3700, 2147483648
      %v3733 = vxor.u32 %v3701, 2147483648
      %v3734 = vxor.u32 %v3702, 2147483648
      %v3735 = vxor.u32 %v3703, 2147483648
      %v3736 = vxor.u32 %v3704, 2147483648
      %v3737 = vxor.u32 %v3705, 2147483648
      %v3738 = vxor.u32 %v3706, 2147483648
      %v3739 = vxor.u32 %v3707, 2147483648
      %v3740 = vxor.u32 %v3708, 2147483648
      %v3741 = vxor.u32 %v3709, 2147483648
      %v3742 = vxor.u32 %v3710, 2147483648
      %v3743 = vxor.u32 %v3711, 2147483648
      %v3744 = vxor.u32 %v3712, 2147483648
      %v3745 = vxor.u32 %v3713, 2147483648
      %v3746 = vxor.u32 %v3714, 2147483648
      %v3747 = vxor.u32 %v3715, 2147483648
      %v3748 = vxor.u32 %v3716, 2147483648
      %v3749 = vxor.u32 %v3717, 2147483648
      %v3750 = vxor.u32 %v3718, 2147483648
      %v3751 = vxor.u32 %v3719, 2147483648
      %v3752 = vxor.u32 %v3720, 2147483648
      %v3753 = vxor.u32 %v3721, 2147483648
      %v3754 = vxor.u32 %v3722, 2147483648
      %v3755 = vxor.u32 %v3723, 2147483648
      %v3756 = vxor.u32 %v3724, 2147483648
      %v3757 = vmul.f32 %v3725, 1.442695
      %v3758 = vpow.pop %v3757
      %v3759 = vmul.f32 %v3726, 1.442695
      %v3760 = vpow.pop %v3759
      %v3761 = vmul.f32 %v3727, 1.442695
      %v3762 = vpow.pop %v3761
      %v3763 = vmul.f32 %v3728, 1.442695
      %v3764 = vpow.pop %v3763
      %v3765 = vmul.f32 %v3729, 1.442695
      %v3766 = vpow.pop %v3765
      %v3767 = vmul.f32 %v3730, 1.442695
      %v3768 = vpow.pop %v3767
      %v3769 = vmul.f32 %v3731, 1.442695
      %v3770 = vpow.pop %v3769
      %v3771 = vmul.f32 %v3732, 1.442695
      %v3772 = vpow.pop %v3771
      %v3773 = vmul.f32 %v3733, 1.442695
      %v3774 = vpow.pop %v3773
      %v3775 = vmul.f32 %v3734, 1.442695
      %v3776 = vpow.pop %v3775
      %v3777 = vmul.f32 %v3735, 1.442695
      %v3778 = vpow.pop %v3777
      %v3779 = vmul.f32 %v3736, 1.442695
      %v3780 = vpow.pop %v3779
      %v3781 = vmul.f32 %v3737, 1.442695
      %v3782 = vpow.pop %v3781
      %v3783 = vmul.f32 %v3738, 1.442695
      %v3784 = vpow.pop %v3783
      %v3785 = vmul.f32 %v3739, 1.442695
      %v3786 = vpow.pop %v3785
      %v3787 = vmul.f32 %v3740, 1.442695
      %v3788 = vpow.pop %v3787
      %v3789 = vmul.f32 %v3741, 1.442695
      %v3790 = vpow.pop %v3789
      %v3791 = vmul.f32 %v3742, 1.442695
      %v3792 = vpow.pop %v3791
      %v3793 = vmul.f32 %v3743, 1.442695
      %v3794 = vpow.pop %v3793
      %v3795 = vmul.f32 %v3744, 1.442695
      %v3796 = vpow.pop %v3795
      %v3797 = vmul.f32 %v3745, 1.442695
      %v3798 = vpow.pop %v3797
      %v3799 = vmul.f32 %v3746, 1.442695
      %v3800 = vpow.pop %v3799
      %v3801 = vmul.f32 %v3747, 1.442695
      %v3802 = vpow.pop %v3801
      %v3803 = vmul.f32 %v3748, 1.442695
      %v3804 = vpow.pop %v3803
      %v3805 = vmul.f32 %v3749, 1.442695
      %v3806 = vpow.pop %v3805
      %v3807 = vmul.f32 %v3750, 1.442695
      %v3808 = vpow.pop %v3807
      %v3809 = vmul.f32 %v3751, 1.442695
      %v3810 = vpow.pop %v3809
      %v3811 = vmul.f32 %v3752, 1.442695
      %v3812 = vpow.pop %v3811
      %v3813 = vmul.f32 %v3753, 1.442695
      %v3814 = vpow.pop %v3813
      %v3815 = vmul.f32 %v3754, 1.442695
      %v3816 = vpow.pop %v3815
      %v3817 = vmul.f32 %v3755, 1.442695
      %v3818 = vpow.pop %v3817
      %v3819 = vmul.f32 %v3756, 1.442695
      %v3820 = vpow.pop %v3819
      %v3821 = vadd.f32 %v3758, 1.0
      %v3822 = vadd.f32 %v3760, 1.0
      %v3823 = vadd.f32 %v3762, 1.0
      %v3824 = vadd.f32 %v3764, 1.0
      %v3825 = vadd.f32 %v3766, 1.0
      %v3826 = vadd.f32 %v3768, 1.0
      %v3827 = vadd.f32 %v3770, 1.0
      %v3828 = vadd.f32 %v3772, 1.0
      %v3829 = vadd.f32 %v3774, 1.0
      %v3830 = vadd.f32 %v3776, 1.0
      %v3831 = vadd.f32 %v3778, 1.0
      %v3832 = vadd.f32 %v3780, 1.0
      %v3833 = vadd.f32 %v3782, 1.0
      %v3834 = vadd.f32 %v3784, 1.0
      %v3835 = vadd.f32 %v3786, 1.0
      %v3836 = vadd.f32 %v3788, 1.0
      %v3837 = vadd.f32 %v3790, 1.0
      %v3838 = vadd.f32 %v3792, 1.0
      %v3839 = vadd.f32 %v3794, 1.0
      %v3840 = vadd.f32 %v3796, 1.0
      %v3841 = vadd.f32 %v3798, 1.0
      %v3842 = vadd.f32 %v3800, 1.0
      %v3843 = vadd.f32 %v3802, 1.0
      %v3844 = vadd.f32 %v3804, 1.0
      %v3845 = vadd.f32 %v3806, 1.0
      %v3846 = vadd.f32 %v3808, 1.0
      %v3847 = vadd.f32 %v3810, 1.0
      %v3848 = vadd.f32 %v3812, 1.0
      %v3849 = vadd.f32 %v3814, 1.0
      %v3850 = vadd.f32 %v3816, 1.0
      %v3851 = vadd.f32 %v3818, 1.0
      %v3852 = vadd.f32 %v3820, 1.0
      %v3853 = vrcp.pop %v3821
      %v3854 = vmul.f32 1.0, %v3853
      %v3855 = vrcp.pop %v3822
      %v3856 = vmul.f32 1.0, %v3855
      %v3857 = vrcp.pop %v3823
      %v3858 = vmul.f32 1.0, %v3857
      %v3859 = vrcp.pop %v3824
      %v3860 = vmul.f32 1.0, %v3859
      %v3861 = vrcp.pop %v3825
      %v3862 = vmul.f32 1.0, %v3861
      %v3863 = vrcp.pop %v3826
      %v3864 = vmul.f32 1.0, %v3863
      %v3865 = vrcp.pop %v3827
      %v3866 = vmul.f32 1.0, %v3865
      %v3867 = vrcp.pop %v3828
      %v3868 = vmul.f32 1.0, %v3867
      %v3869 = vrcp.pop %v3829
      %v3870 = vmul.f32 1.0, %v3869
      %v3871 = vrcp.pop %v3830
      %v3872 = vmul.f32 1.0, %v3871
      %v3873 = vrcp.pop %v3831
      %v3874 = vmul.f32 1.0, %v3873
      %v3875 = vrcp.pop %v3832
      %v3876 = vmul.f32 1.0, %v3875
      %v3877 = vrcp.pop %v3833
      %v3878 = vmul.f32 1.0, %v3877
      %v3879 = vrcp.pop %v3834
      %v3880 = vmul.f32 1.0, %v3879
      %v3881 = vrcp.pop %v3835
      %v3882 = vmul.f32 1.0, %v3881
      %v3883 = vrcp.pop %v3836
      %v3884 = vmul.f32 1.0, %v3883
      %v3885 = vrcp.pop %v3837
      %v3886 = vmul.f32 1.0, %v3885
      %v3887 = vrcp.pop %v3838
      %v3888 = vmul.f32 1.0, %v3887
      %v3889 = vrcp.pop %v3839
      %v3890 = vmul.f32 1.0, %v3889
      %v3891 = vrcp.pop %v3840
      %v3892 = vmul.f32 1.0, %v3891
      %v3893 = vrcp.pop %v3841
      %v3894 = vmul.f32 1.0, %v3893
      %v3895 = vrcp.pop %v3842
      %v3896 = vmul.f32 1.0, %v3895
      %v3897 = vrcp.pop %v3843
      %v3898 = vmul.f32 1.0, %v3897
      %v3899 = vrcp.pop %v3844
      %v3900 = vmul.f32 1.0, %v3899
      %v3901 = vrcp.pop %v3845
      %v3902 = vmul.f32 1.0, %v3901
      %v3903 = vrcp.pop %v3846
      %v3904 = vmul.f32 1.0, %v3903
      %v3905 = vrcp.pop %v3847
      %v3906 = vmul.f32 1.0, %v3905
      %v3907 = vrcp.pop %v3848
      %v3908 = vmul.f32 1.0, %v3907
      %v3909 = vrcp.pop %v3849
      %v3910 = vmul.f32 1.0, %v3909
      %v3911 = vrcp.pop %v3850
      %v3912 = vmul.f32 1.0, %v3911
      %v3913 = vrcp.pop %v3851
      %v3914 = vmul.f32 1.0, %v3913
      %v3915 = vrcp.pop %v3852
      %v3916 = vmul.f32 1.0, %v3915
      %v3917 = vmul.f32 %v3693, %v3854
      %v3918 = vmul.f32 %v3694, %v3856
      %v3919 = vmul.f32 %v3695, %v3858
      %v3920 = vmul.f32 %v3696, %v3860
      %v3921 = vmul.f32 %v3697, %v3862
      %v3922 = vmul.f32 %v3698, %v3864
      %v3923 = vmul.f32 %v3699, %v3866
      %v3924 = vmul.f32 %v3700, %v3868
      %v3925 = vmul.f32 %v3701, %v3870
      %v3926 = vmul.f32 %v3702, %v3872
      %v3927 = vmul.f32 %v3703, %v3874
      %v3928 = vmul.f32 %v3704, %v3876
      %v3929 = vmul.f32 %v3705, %v3878
      %v3930 = vmul.f32 %v3706, %v3880
      %v3931 = vmul.f32 %v3707, %v3882
      %v3932 = vmul.f32 %v3708, %v3884
      %v3933 = vmul.f32 %v3709, %v3886
      %v3934 = vmul.f32 %v3710, %v3888
      %v3935 = vmul.f32 %v3711, %v3890
      %v3936 = vmul.f32 %v3712, %v3892
      %v3937 = vmul.f32 %v3713, %v3894
      %v3938 = vmul.f32 %v3714, %v3896
      %v3939 = vmul.f32 %v3715, %v3898
      %v3940 = vmul.f32 %v3716, %v3900
      %v3941 = vmul.f32 %v3717, %v3902
      %v3942 = vmul.f32 %v3718, %v3904
      %v3943 = vmul.f32 %v3719, %v3906
      %v3944 = vmul.f32 %v3720, %v3908
      %v3945 = vmul.f32 %v3721, %v3910
      %v3946 = vmul.f32 %v3722, %v3912
      %v3947 = vmul.f32 %v3723, %v3914
      %v3948 = vmul.f32 %v3724, %v3916
      %3949 = vst [vmem:[%s197] sm:$0xff] %v3917
      %3950 = vst [vmem:[%s197 + $0x8] sm:$0xff] %v3918
      %3951 = vst [vmem:[%s197 + $0x10] sm:$0xff] %v3919
      %3952 = vst [vmem:[%s197 + $0x18] sm:$0xff] %v3920
      %3953 = vst [vmem:[%s197 + $0x20] sm:$0xff] %v3921
      %3954 = vst [vmem:[%s197 + $0x28] sm:$0xff] %v3922
      %3955 = vst [vmem:[%s197 + $0x30] sm:$0xff] %v3923
      %3956 = vst [vmem:[%s197 + $0x38] sm:$0xff] %v3924
      %3957 = vst [vmem:[%s197 + $0x40] sm:$0xff] %v3925
      %3958 = vst [vmem:[%s197 + $0x48] sm:$0xff] %v3926
      %3959 = vst [vmem:[%s197 + $0x50] sm:$0xff] %v3927
      %3960 = vst [vmem:[%s197 + $0x58] sm:$0xff] %v3928
      %3961 = vst [vmem:[%s197 + $0x60] sm:$0xff] %v3929
      %3962 = vst [vmem:[%s197 + $0x68] sm:$0xff] %v3930
      %3963 = vst [vmem:[%s197 + $0x70] sm:$0xff] %v3931
      %3964 = vst [vmem:[%s197 + $0x78] sm:$0xff] %v3932
      %3965 = vst [vmem:[%s197 + $0x80] sm:$0xff] %v3933
      %3966 = vst [vmem:[%s197 + $0x88] sm:$0xff] %v3934
      %3967 = vst [vmem:[%s197 + $0x90] sm:$0xff] %v3935
      %3968 = vst [vmem:[%s197 + $0x98] sm:$0xff] %v3936
      %3969 = vst [vmem:[%s197 + $0xa0] sm:$0xff] %v3937
      %3970 = vst [vmem:[%s197 + $0xa8] sm:$0xff] %v3938
      %3971 = vst [vmem:[%s197 + $0xb0] sm:$0xff] %v3939
      %3972 = vst [vmem:[%s197 + $0xb8] sm:$0xff] %v3940
      %3973 = vst [vmem:[%s197 + $0xc0] sm:$0xff] %v3941
      %3974 = vst [vmem:[%s197 + $0xc8] sm:$0xff] %v3942
      %3975 = vst [vmem:[%s197 + $0xd0] sm:$0xff] %v3943
      %3976 = vst [vmem:[%s197 + $0xd8] sm:$0xff] %v3944
      %3977 = vst [vmem:[%s197 + $0xe0] sm:$0xff] %v3945
      %3978 = vst [vmem:[%s197 + $0xe8] sm:$0xff] %v3946
      %3979 = vst [vmem:[%s197 + $0xf0] sm:$0xff] %v3947
      %3980 = vst [vmem:[%s197 + $0xf8] sm:$0xff] %v3948
      %p3981 = scmp.lt.s32.totalorder %s15, 1
      %s3982 = scalar_select %p3981, %s15, 1
      %s3983 = smul.addr %s3982, 32
      %s3984 = smul.addr %s3983, 8
      %s3985 = scalar_lea.vmem %s4, %s3984
      // Predicated region
      $region37: #{conv_module_forward.1} parent=35 // pred_check
        %p3986 = pneg %p122
      $region38: #{conv_module_forward.1} parent=35 // pred_check_branch
        %3988 = sbr.rel (%p3986) target = $region40
      $region39: #{conv_module_forward.1} parent=35 // pred_region
        _
      $region40: #{conv_module_forward.1} parent=35 // pred_fallthru
        _
    $region36: #{conv_module_forward.1} parent=5 // pred_fallthru
      _
    %p3989 = scmp.le.s32.totalorder 2, %s10
    // Predicated region
    $region41: #{conv_module_forward.1} parent=5 // pred_check
      %p3990 = pneg %p3989
    $region42: #{conv_module_forward.1} parent=5 // pred_check_branch
      %3992 = sbr.rel (%p3990) target = $region44
    $region43: #{conv_module_forward.1} parent=5 // pred_region
      %s3993 = ssub.s32 %s10, 2
      // Predicated region
      $region45: #{conv_module_forward.1} parent=43 // pred_check
        %p3994 = pneg %p128
      $region46: #{conv_module_forward.1} parent=43 // pred_check_branch
        %3996 = sbr.rel (%p3994) target = $region48
      $region47: #{conv_module_forward.1} parent=43 // pred_region
        %p3997 = scmp.lt.s32.totalorder %s16, 1
        %s3998 = scalar_select %p3997, %s16, 1
        %s3999 = smul.addr %s3998, 32
        %s4000 = smul.addr %s3999, 8
        %s4001 = scalar_lea.vmem %s4, %s4000
      $region48: #{conv_module_forward.1} parent=43 // pred_fallthru
        _
    $region44: #{conv_module_forward.1} parent=5 // pred_fallthru
      _
  $region6: #{conv_module_forward.1} parent=0 // loop_footer
    %s14 = sadd.s32 1, %s10
  $region7: #{conv_module_forward.1} parent=0 // loop_footer_branch
    %9 = sbr.rel target = $region3
  $region8: #{conv_module_forward.1} parent=0 // loop_exit
    _

</llo_original>
